<compile_context>
chip_gen: v7x
topology: tpu7x:2x2x1
jax: 0.10.0
libtpu: 0.0.40
codegen_flags: <defaults>
</compile_context>

<pallas_src>
import functools
import math

import jax
import jax.numpy as jnp
from jax import lax
from jax.experimental import pallas as pl
from jax.experimental.pallas import tpu as pltpu


# ----------------------------------------------------------------------------
# Config (small, synthetic GPT-2-like model).  The real module resizes the
# embedding table by +5 special tokens; we mirror that: 123 base + 5 = 128.
# ----------------------------------------------------------------------------
BASE_VOCAB = 123
NUM_SPECIAL = 5
VOCAB = BASE_VOCAB + NUM_SPECIAL          # 128 (lane-dense LM head)
D_MODEL = 32
N_HEAD = 2
D_HEAD = D_MODEL // N_HEAD                # 16
N_LAYER = 2
D_MLP = 4 * D_MODEL                       # 128
MAX_LEN = 512                             # module's max_length (we use S <= MAX_LEN)


# ----------------------------------------------------------------------------
# Fused forward kernel: one grid step == one batch element, whole model.
# ----------------------------------------------------------------------------
def _gelu_new(y):
    # GPT-2 "gelu_new" (tanh approximation)
    return 0.5 * y * (1.0 + jnp.tanh(0.7978845608028654 * (y + 0.044715 * y * y * y)))


def _ln(x, g, b, eps=1e-5):
    mu = jnp.mean(x, axis=-1, keepdims=True)
    var = jnp.mean((x - mu) * (x - mu), axis=-1, keepdims=True)
    return (x - mu) * lax.rsqrt(var + eps) * g + b


def _policy_forward_kernel(ids_ref, mask_ref, wte_ref, wpe_ref,
                           ln1_g_ref, ln1_b_ref, attn_w_ref, attn_b_ref,
                           proj_w_ref, proj_b_ref, ln2_g_ref, ln2_b_ref,
                           fc_w_ref, fc_b_ref, fc2_w_ref, fc2_b_ref,
                           lnf_g_ref, lnf_b_ref, o_ref,
                           *, n_layer, n_head, d_head):
    S = ids_ref.shape[0]                               # ids block: (S, 1)
    V, D = wte_ref.shape                               # (VOCAB, D_MODEL)
    scale = 1.0 / math.sqrt(d_head)

    wte = wte_ref[...].astype(jnp.float32)             # (V, D)

    # --- token embedding via one-hot MXU matmul (in-kernel gather) ----------
    ids = ids_ref[...]                                 # (S, 1) int32
    vocab_iota = lax.broadcasted_iota(jnp.int32, (S, V), 1)
    onehot = (vocab_iota == ids).astype(jnp.float32)   # (S, V)
    x = jnp.dot(onehot, wte, preferred_element_type=jnp.float32)
    x = x + wpe_ref[...].astype(jnp.float32)           # (S, D)

    # --- causal + key-padding mask, computed once, reused everywhere --------
    row = lax.broadcasted_iota(jnp.int32, (S, S), 0)
    col = lax.broadcasted_iota(jnp.int32, (S, S), 1)
    causal = col <= row
    key_keep = mask_ref[...] > 0.5                     # (1, S) broadcasts over rows
    keep = jnp.logical_and(causal, key_keep)           # (S, S)
    neg_inf = jnp.float32(-1e30)

    for l in range(n_layer):
        # ------------------------- attention block --------------------------
        h = _ln(x, ln1_g_ref[l], ln1_b_ref[l])
        qkv = jnp.dot(h, attn_w_ref[l],
                      preferred_element_type=jnp.float32) + attn_b_ref[l]  # (S, 3D)
        head_outs = []
        for hd in range(n_head):
            q = qkv[:, hd * d_head:(hd + 1) * d_head] * scale       # fold scale into q
            k = qkv[:, D + hd * d_head:D + (hd + 1) * d_head]
            v = qkv[:, 2 * D + hd * d_head:2 * D + (hd + 1) * d_head]
            s = lax.dot_general(q, k, (((1,), (1,)), ((), ())),
                                preferred_element_type=jnp.float32)  # (S, S)
            s = jnp.where(keep, s, neg_inf)
            m = jnp.max(s, axis=-1, keepdims=True)
            p = jnp.exp(s - m)
            denom = jnp.sum(p, axis=-1, keepdims=True)
            p = p * pl.reciprocal(denom, approx=True)
            head_outs.append(jnp.dot(p, v, preferred_element_type=jnp.float32))
        attn_out = jnp.concatenate(head_outs, axis=-1)               # (S, D)
        proj = jnp.dot(attn_out, proj_w_ref[l],
                       preferred_element_type=jnp.float32) + proj_b_ref[l]
        x = x + proj

        # ---------------------------- MLP block -----------------------------
        h = _ln(x, ln2_g_ref[l], ln2_b_ref[l])
        h = jnp.dot(h, fc_w_ref[l],
                    preferred_element_type=jnp.float32) + fc_b_ref[l]
        h = _gelu_new(h)
        h = jnp.dot(h, fc2_w_ref[l],
                    preferred_element_type=jnp.float32) + fc2_b_ref[l]
        x = x + h

    # --- final LN + tied LM head (contract against wte directly, no .T) -----
    xf = _ln(x, lnf_g_ref[...], lnf_b_ref[...])
    logits = lax.dot_general(xf, wte, (((1,), (1,)), ((), ())),
                             preferred_element_type=jnp.float32)     # (S, V) lane-dense
    o_ref[...] = logits.astype(o_ref.dtype)


# ----------------------------------------------------------------------------
# Parameter init (deterministic, GPT-2-style: N(0, 0.02), zero biases).
# Per-layer params are pre-stacked along a leading layer axis so the fused
# kernel can index them with a static layer id.
# ----------------------------------------------------------------------------
def init_params(key):
    def nrm(k, shape):
        return 0.02 * jax.random.normal(k, shape, dtype=jnp.float32)

    keys = iter(jax.random.split(key, 2 + N_LAYER * 4))
    params = {
        "wte": nrm(next(keys), (VOCAB, D_MODEL)),
        "wpe": nrm(next(keys), (MAX_LEN, D_MODEL)),
        "lnf_g": jnp.ones((1, D_MODEL), jnp.float32),
        "lnf_b": jnp.zeros((1, D_MODEL), jnp.float32),
        "ln1_g": jnp.ones((N_LAYER, 1, D_MODEL), jnp.float32),
        "ln1_b": jnp.zeros((N_LAYER, 1, D_MODEL), jnp.float32),
        "ln2_g": jnp.ones((N_LAYER, 1, D_MODEL), jnp.float32),
        "ln2_b": jnp.zeros((N_LAYER, 1, D_MODEL), jnp.float32),
        "attn_b": jnp.zeros((N_LAYER, 1, 3 * D_MODEL), jnp.float32),
        "proj_b": jnp.zeros((N_LAYER, 1, D_MODEL), jnp.float32),
        "fc_b": jnp.zeros((N_LAYER, 1, D_MLP), jnp.float32),
        "fc2_b": jnp.zeros((N_LAYER, 1, D_MODEL), jnp.float32),
    }
    attn_w, proj_w, fc_w, fc2_w = [], [], [], []
    for _ in range(N_LAYER):
        attn_w.append(nrm(next(keys), (D_MODEL, 3 * D_MODEL)))
        proj_w.append(nrm(next(keys), (D_MODEL, D_MODEL)))
        fc_w.append(nrm(next(keys), (D_MODEL, D_MLP)))
        fc2_w.append(nrm(next(keys), (D_MLP, D_MODEL)))
    params["attn_w"] = jnp.stack(attn_w)
    params["proj_w"] = jnp.stack(proj_w)
    params["fc_w"] = jnp.stack(fc_w)
    params["fc2_w"] = jnp.stack(fc2_w)
    return params


# ----------------------------------------------------------------------------
# PolicyModel.forward equivalent: (input_ids, attention_mask) -> logits [B,S,V]
# ----------------------------------------------------------------------------
def policy_model_forward(params, input_ids, attention_mask=None):
    B, S = input_ids.shape
    assert S <= MAX_LEN
    if attention_mask is None:
        attention_mask = jnp.ones((B, S), jnp.int32)

    ids3 = input_ids.astype(jnp.int32).reshape(B, S, 1)
    mask3 = attention_mask.astype(jnp.float32).reshape(B, 1, S)
    wpe_s = lax.slice(params["wpe"], (0, 0), (S, D_MODEL))

    def full_spec(shape):
        nd = len(shape)
        return pl.BlockSpec(shape, lambda b, _nd=nd: (0,) * _nd)

    kernel = functools.partial(_policy_forward_kernel,
                               n_layer=N_LAYER, n_head=N_HEAD, d_head=D_HEAD)

    logits = pl.pallas_call(
        kernel,
        out_shape=jax.ShapeDtypeStruct((B, S, VOCAB), jnp.float32),
        grid=(B,),
        in_specs=[
            pl.BlockSpec((None, S, 1), lambda b: (b, 0, 0)),      # input_ids
            pl.BlockSpec((None, 1, S), lambda b: (b, 0, 0)),      # attention_mask
            full_spec((VOCAB, D_MODEL)),                          # wte (tied head)
            full_spec((S, D_MODEL)),                              # wpe[:S]
            full_spec((N_LAYER, 1, D_MODEL)),                     # ln1_g
            full_spec((N_LAYER, 1, D_MODEL)),                     # ln1_b
            full_spec((N_LAYER, D_MODEL, 3 * D_MODEL)),           # attn_w
            full_spec((N_LAYER, 1, 3 * D_MODEL)),                 # attn_b
            full_spec((N_LAYER, D_MODEL, D_MODEL)),               # proj_w
            full_spec((N_LAYER, 1, D_MODEL)),                     # proj_b
            full_spec((N_LAYER, 1, D_MODEL)),                     # ln2_g
            full_spec((N_LAYER, 1, D_MODEL)),                     # ln2_b
            full_spec((N_LAYER, D_MODEL, D_MLP)),                 # fc_w
            full_spec((N_LAYER, 1, D_MLP)),                       # fc_b
            full_spec((N_LAYER, D_MLP, D_MODEL)),                 # fc2_w
            full_spec((N_LAYER, 1, D_MODEL)),                     # fc2_b
            full_spec((1, D_MODEL)),                              # lnf_g
            full_spec((1, D_MODEL)),                              # lnf_b
        ],
        out_specs=pl.BlockSpec((None, S, VOCAB), lambda b: (b, 0, 0)),
        compiler_params=pltpu.CompilerParams(
            dimension_semantics=("parallel",)),                   # batch split across TCs on v7x
    )(ids3, mask3, params["wte"], wpe_s,
      params["ln1_g"], params["ln1_b"], params["attn_w"], params["attn_b"],
      params["proj_w"], params["proj_b"], params["ln2_g"], params["ln2_b"],
      params["fc_w"], params["fc_b"], params["fc2_w"], params["fc2_b"],
      params["lnf_g"], params["lnf_b"])
    return logits


if __name__ == "__main__":
    key = jax.random.PRNGKey(0)
    pkey, ikey = jax.random.split(key)
    params = init_params(pkey)

    B, S = 2, 8
    input_ids = jax.random.randint(ikey, (B, S), 0, VOCAB, dtype=jnp.int32)
    # Emulate right-padding on the second sequence.
    attention_mask = jnp.array(
        [[1, 1, 1, 1, 1, 1, 1, 1],
         [1, 1, 1, 1, 1, 1, 0, 0]], dtype=jnp.int32)

    logits = jax.jit(policy_model_forward)(params, input_ids, attention_mask)
    logits = jax.block_until_ready(logits)

    assert logits.shape == (B, S, VOCAB), logits.shape
    assert logits.dtype == jnp.float32
    assert bool(jnp.all(jnp.isfinite(logits)))
    print("KERNEL_OK")
</pallas_src>

<mosaic_0001>
module attributes {stable_mosaic.version = 11 : i64} {
  func.func @_policy_forward_kernel(%arg0: i32, %arg1: memref<1x8x1xi32, #tpu.memory_space<vmem>>, %arg2: memref<1x1x8xf32, #tpu.memory_space<vmem>>, %arg3: memref<128x32xf32, #tpu.memory_space<vmem>>, %arg4: memref<8x32xf32, #tpu.memory_space<vmem>>, %arg5: memref<2x1x32xf32, #tpu.memory_space<vmem>>, %arg6: memref<2x1x32xf32, #tpu.memory_space<vmem>>, %arg7: memref<2x32x96xf32, #tpu.memory_space<vmem>>, %arg8: memref<2x1x96xf32, #tpu.memory_space<vmem>>, %arg9: memref<2x32x32xf32, #tpu.memory_space<vmem>>, %arg10: memref<2x1x32xf32, #tpu.memory_space<vmem>>, %arg11: memref<2x1x32xf32, #tpu.memory_space<vmem>>, %arg12: memref<2x1x32xf32, #tpu.memory_space<vmem>>, %arg13: memref<2x32x128xf32, #tpu.memory_space<vmem>>, %arg14: memref<2x1x128xf32, #tpu.memory_space<vmem>>, %arg15: memref<2x128x32xf32, #tpu.memory_space<vmem>>, %arg16: memref<2x1x32xf32, #tpu.memory_space<vmem>>, %arg17: memref<1x32xf32, #tpu.memory_space<vmem>>, %arg18: memref<1x32xf32, #tpu.memory_space<vmem>>, %arg19: memref<1x8x128xf32, #tpu.memory_space<vmem>>) attributes {dimension_semantics = [#tpu.dimension_semantics<parallel>], iteration_bounds = array<i64: 2>, scalar_prefetch = 0 : i64, scratch_operands = 0 : i64, tpu.core_type = #tpu.core_type<tc>, window_params = [{transform_indices = @transform_0, window_bounds = array<i64: 1, 8, 1>}, {transform_indices = @transform_1, window_bounds = array<i64: 1, 1, 8>}, {pipeline_mode = #tpu.pipeline_mode<synchronous>, transform_indices = @transform_2, window_bounds = array<i64: 128, 32>}, {pipeline_mode = #tpu.pipeline_mode<synchronous>, transform_indices = @transform_3, window_bounds = array<i64: 8, 32>}, {pipeline_mode = #tpu.pipeline_mode<synchronous>, transform_indices = @transform_4, window_bounds = array<i64: 2, 1, 32>}, {pipeline_mode = #tpu.pipeline_mode<synchronous>, transform_indices = @transform_5, window_bounds = array<i64: 2, 1, 32>}, {pipeline_mode = #tpu.pipeline_mode<synchronous>, transform_indices = @transform_6, window_bounds = array<i64: 2, 32, 96>}, {pipeline_mode = #tpu.pipeline_mode<synchronous>, transform_indices = @transform_7, window_bounds = array<i64: 2, 1, 96>}, {pipeline_mode = #tpu.pipeline_mode<synchronous>, transform_indices = @transform_8, window_bounds = array<i64: 2, 32, 32>}, {pipeline_mode = #tpu.pipeline_mode<synchronous>, transform_indices = @transform_9, window_bounds = array<i64: 2, 1, 32>}, {pipeline_mode = #tpu.pipeline_mode<synchronous>, transform_indices = @transform_10, window_bounds = array<i64: 2, 1, 32>}, {pipeline_mode = #tpu.pipeline_mode<synchronous>, transform_indices = @transform_11, window_bounds = array<i64: 2, 1, 32>}, {pipeline_mode = #tpu.pipeline_mode<synchronous>, transform_indices = @transform_12, window_bounds = array<i64: 2, 32, 128>}, {pipeline_mode = #tpu.pipeline_mode<synchronous>, transform_indices = @transform_13, window_bounds = array<i64: 2, 1, 128>}, {pipeline_mode = #tpu.pipeline_mode<synchronous>, transform_indices = @transform_14, window_bounds = array<i64: 2, 128, 32>}, {pipeline_mode = #tpu.pipeline_mode<synchronous>, transform_indices = @transform_15, window_bounds = array<i64: 2, 1, 32>}, {pipeline_mode = #tpu.pipeline_mode<synchronous>, transform_indices = @transform_16, window_bounds = array<i64: 1, 32>}, {pipeline_mode = #tpu.pipeline_mode<synchronous>, transform_indices = @transform_17, window_bounds = array<i64: 1, 32>}, {transform_indices = @transform_18, window_bounds = array<i64: 1, 8, 128>}]} {
    %c0 = arith.constant 0 : index
    %c0_0 = arith.constant 0 : index
    %0 = vector.load %arg3[%c0, %c0_0] : memref<128x32xf32, #tpu.memory_space<vmem>>, vector<128x32xf32>
    %c0_1 = arith.constant 0 : index
    %c0_2 = arith.constant 0 : index
    %c0_3 = arith.constant 0 : index
    %1 = vector.load %arg1[%c0_1, %c0_2, %c0_3] : memref<1x8x1xi32, #tpu.memory_space<vmem>>, vector<1x8x1xi32>
    %2 = vector.shape_cast %1 : vector<1x8x1xi32> to vector<8x1xi32>
    %3 = tpu.iota {dimensions = array<i32: 1>} : vector<8x128xi32>
    %4 = vector.broadcast %2 : vector<8x1xi32> to vector<8x128xi32>
    %5 = arith.cmpi eq, %3, %4 : vector<8x128xi32>
    %6 = arith.extui %5 : vector<8x128xi1> to vector<8x128xi32>
    %7 = arith.sitofp %6 : vector<8x128xi32> to vector<8x128xf32>
    %cst = arith.constant dense<0.000000e+00> : vector<8x32xf32>
    %8 = tpu.matmul %7, %0, %cst {dimension_numbers = #tpu.dot_dimension_numbers<[1], [0], [0], [1], [0, 0, 1, 1], [], []>} : vector<8x128xf32>, vector<128x32xf32>, vector<8x32xf32> -> vector<8x32xf32>
    %c0_4 = arith.constant 0 : index
    %c0_5 = arith.constant 0 : index
    %9 = vector.load %arg4[%c0_4, %c0_5] : memref<8x32xf32, #tpu.memory_space<vmem>>, vector<8x32xf32>
    %10 = arith.addf %8, %9 : vector<8x32xf32>
    %11 = tpu.iota {dimensions = array<i32: 0>} : vector<8x8xi32>
    %12 = tpu.iota {dimensions = array<i32: 1>} : vector<8x8xi32>
    %13 = arith.cmpi sle, %12, %11 : vector<8x8xi32>
    %c0_6 = arith.constant 0 : index
    %c0_7 = arith.constant 0 : index
    %c0_8 = arith.constant 0 : index
    %14 = vector.load %arg2[%c0_6, %c0_7, %c0_8] : memref<1x1x8xf32, #tpu.memory_space<vmem>>, vector<1x1x8xf32>
    %15 = vector.shape_cast %14 : vector<1x1x8xf32> to vector<1x8xf32>
    %cst_9 = arith.constant 5.000000e-01 : f32
    %16 = vector.broadcast %cst_9 : f32 to vector<1x8xf32>
    %17 = arith.cmpf ogt, %15, %16 : vector<1x8xf32>
    %18 = vector.broadcast %17 : vector<1x8xi1> to vector<8x8xi1>
    %19 = arith.andi %13, %18 : vector<8x8xi1>
    %c0_10 = arith.constant 0 : index
    %c0_11 = arith.constant 0 : index
    %c0_12 = arith.constant 0 : index
    %20 = vector.load %arg5[%c0_10, %c0_11, %c0_12] : memref<2x1x32xf32, #tpu.memory_space<vmem>>, vector<1x1x32xf32>
    %21 = vector.shape_cast %20 : vector<1x1x32xf32> to vector<1x32xf32>
    %c0_13 = arith.constant 0 : index
    %c0_14 = arith.constant 0 : index
    %c0_15 = arith.constant 0 : index
    %22 = vector.load %arg6[%c0_13, %c0_14, %c0_15] : memref<2x1x32xf32, #tpu.memory_space<vmem>>, vector<1x1x32xf32>
    %23 = vector.shape_cast %22 : vector<1x1x32xf32> to vector<1x32xf32>
    %cst_16 = arith.constant dense<0.000000e+00> : vector<8xf32>
    %24 = vector.multi_reduction <add>, %10, %cst_16 [1] : vector<8x32xf32> to vector<8xf32>
    %25 = vector.shape_cast %24 : vector<8xf32> to vector<8x1xf32>
    %cst_17 = arith.constant 3.200000e+01 : f32
    %26 = vector.broadcast %cst_17 : f32 to vector<8x1xf32>
    %27 = arith.divf %25, %26 : vector<8x1xf32>
    %28 = vector.broadcast %27 : vector<8x1xf32> to vector<8x32xf32>
    %29 = arith.subf %10, %28 : vector<8x32xf32>
    %30 = vector.broadcast %27 : vector<8x1xf32> to vector<8x32xf32>
    %31 = arith.subf %10, %30 : vector<8x32xf32>
    %32 = arith.mulf %29, %31 : vector<8x32xf32>
    %cst_18 = arith.constant dense<0.000000e+00> : vector<8xf32>
    %33 = vector.multi_reduction <add>, %32, %cst_18 [1] : vector<8x32xf32> to vector<8xf32>
    %34 = vector.shape_cast %33 : vector<8xf32> to vector<8x1xf32>
    %cst_19 = arith.constant 3.200000e+01 : f32
    %35 = vector.broadcast %cst_19 : f32 to vector<8x1xf32>
    %36 = arith.divf %34, %35 : vector<8x1xf32>
    %37 = vector.broadcast %27 : vector<8x1xf32> to vector<8x32xf32>
    %38 = arith.subf %10, %37 : vector<8x32xf32>
    %cst_20 = arith.constant 9.99999974E-6 : f32
    %39 = vector.broadcast %cst_20 : f32 to vector<8x1xf32>
    %40 = arith.addf %36, %39 : vector<8x1xf32>
    %41 = math.rsqrt %40 : vector<8x1xf32>
    %42 = vector.broadcast %41 : vector<8x1xf32> to vector<8x32xf32>
    %43 = arith.mulf %38, %42 : vector<8x32xf32>
    %44 = vector.broadcast %21 : vector<1x32xf32> to vector<8x32xf32>
    %45 = arith.mulf %43, %44 : vector<8x32xf32>
    %46 = vector.broadcast %23 : vector<1x32xf32> to vector<8x32xf32>
    %47 = arith.addf %45, %46 : vector<8x32xf32>
    %c0_21 = arith.constant 0 : index
    %c0_22 = arith.constant 0 : index
    %c0_23 = arith.constant 0 : index
    %48 = vector.load %arg7[%c0_21, %c0_22, %c0_23] : memref<2x32x96xf32, #tpu.memory_space<vmem>>, vector<1x32x96xf32>
    %49 = vector.shape_cast %48 : vector<1x32x96xf32> to vector<32x96xf32>
    %cst_24 = arith.constant dense<0.000000e+00> : vector<8x96xf32>
    %50 = tpu.matmul %47, %49, %cst_24 {dimension_numbers = #tpu.dot_dimension_numbers<[1], [0], [0], [1], [0, 0, 1, 1], [], []>} : vector<8x32xf32>, vector<32x96xf32>, vector<8x96xf32> -> vector<8x96xf32>
    %c0_25 = arith.constant 0 : index
    %c0_26 = arith.constant 0 : index
    %c0_27 = arith.constant 0 : index
    %51 = vector.load %arg8[%c0_25, %c0_26, %c0_27] : memref<2x1x96xf32, #tpu.memory_space<vmem>>, vector<1x1x96xf32>
    %52 = vector.shape_cast %51 : vector<1x1x96xf32> to vector<1x96xf32>
    %53 = vector.broadcast %52 : vector<1x96xf32> to vector<8x96xf32>
    %54 = arith.addf %50, %53 : vector<8x96xf32>
    %55 = vector.extract_strided_slice %54 {offsets = [0, 0], sizes = [8, 16], strides = [1, 1]} : vector<8x96xf32> to vector<8x16xf32>
    %cst_28 = arith.constant 2.500000e-01 : f32
    %56 = vector.broadcast %cst_28 : f32 to vector<8x16xf32>
    %57 = arith.mulf %55, %56 : vector<8x16xf32>
    %58 = vector.extract_strided_slice %54 {offsets = [0, 32], sizes = [8, 16], strides = [1, 1]} : vector<8x96xf32> to vector<8x16xf32>
    %59 = vector.extract_strided_slice %54 {offsets = [0, 64], sizes = [8, 16], strides = [1, 1]} : vector<8x96xf32> to vector<8x16xf32>
    %cst_29 = arith.constant dense<0.000000e+00> : vector<8x8xf32>
    %60 = tpu.matmul %57, %58, %cst_29 {dimension_numbers = #tpu.dot_dimension_numbers<[1], [1], [0], [0], [0, 0, 1, 0], [], []>} : vector<8x16xf32>, vector<8x16xf32>, vector<8x8xf32> -> vector<8x8xf32>
    %cst_30 = arith.constant -1.000000e+30 : f32
    %61 = vector.broadcast %cst_30 : f32 to vector<8x8xf32>
    %62 = arith.select %19, %60, %61 : vector<8x8xi1>, vector<8x8xf32>
    %cst_31 = arith.constant dense<0xFF800000> : vector<8xf32>
    %63 = vector.multi_reduction <maximumf>, %62, %cst_31 [1] : vector<8x8xf32> to vector<8xf32>
    %64 = vector.shape_cast %63 : vector<8xf32> to vector<8x1xf32>
    %65 = vector.broadcast %64 : vector<8x1xf32> to vector<8x8xf32>
    %66 = arith.subf %62, %65 : vector<8x8xf32>
    %67 = math.exp %66 : vector<8x8xf32>
    %cst_32 = arith.constant dense<0.000000e+00> : vector<8xf32>
    %68 = vector.multi_reduction <add>, %67, %cst_32 [1] : vector<8x8xf32> to vector<8xf32>
    %69 = vector.shape_cast %68 : vector<8xf32> to vector<8x1xf32>
    %70 = tpu.reciprocal %69 {approx = true} : vector<8x1xf32> -> vector<8x1xf32>
    %71 = vector.broadcast %70 : vector<8x1xf32> to vector<8x8xf32>
    %72 = arith.mulf %67, %71 : vector<8x8xf32>
    %cst_33 = arith.constant dense<0.000000e+00> : vector<8x16xf32>
    %73 = tpu.matmul %72, %59, %cst_33 {dimension_numbers = #tpu.dot_dimension_numbers<[1], [0], [0], [1], [0, 0, 1, 1], [], []>} : vector<8x8xf32>, vector<8x16xf32>, vector<8x16xf32> -> vector<8x16xf32>
    %74 = vector.extract_strided_slice %54 {offsets = [0, 16], sizes = [8, 16], strides = [1, 1]} : vector<8x96xf32> to vector<8x16xf32>
    %cst_34 = arith.constant 2.500000e-01 : f32
    %75 = vector.broadcast %cst_34 : f32 to vector<8x16xf32>
    %76 = arith.mulf %74, %75 : vector<8x16xf32>
    %77 = vector.extract_strided_slice %54 {offsets = [0, 48], sizes = [8, 16], strides = [1, 1]} : vector<8x96xf32> to vector<8x16xf32>
    %78 = vector.extract_strided_slice %54 {offsets = [0, 80], sizes = [8, 16], strides = [1, 1]} : vector<8x96xf32> to vector<8x16xf32>
    %cst_35 = arith.constant dense<0.000000e+00> : vector<8x8xf32>
    %79 = tpu.matmul %76, %77, %cst_35 {dimension_numbers = #tpu.dot_dimension_numbers<[1], [1], [0], [0], [0, 0, 1, 0], [], []>} : vector<8x16xf32>, vector<8x16xf32>, vector<8x8xf32> -> vector<8x8xf32>
    %cst_36 = arith.constant -1.000000e+30 : f32
    %80 = vector.broadcast %cst_36 : f32 to vector<8x8xf32>
    %81 = arith.select %19, %79, %80 : vector<8x8xi1>, vector<8x8xf32>
    %cst_37 = arith.constant dense<0xFF800000> : vector<8xf32>
    %82 = vector.multi_reduction <maximumf>, %81, %cst_37 [1] : vector<8x8xf32> to vector<8xf32>
    %83 = vector.shape_cast %82 : vector<8xf32> to vector<8x1xf32>
    %84 = vector.broadcast %83 : vector<8x1xf32> to vector<8x8xf32>
    %85 = arith.subf %81, %84 : vector<8x8xf32>
    %86 = math.exp %85 : vector<8x8xf32>
    %cst_38 = arith.constant dense<0.000000e+00> : vector<8xf32>
    %87 = vector.multi_reduction <add>, %86, %cst_38 [1] : vector<8x8xf32> to vector<8xf32>
    %88 = vector.shape_cast %87 : vector<8xf32> to vector<8x1xf32>
    %89 = tpu.reciprocal %88 {approx = true} : vector<8x1xf32> -> vector<8x1xf32>
    %90 = vector.broadcast %89 : vector<8x1xf32> to vector<8x8xf32>
    %91 = arith.mulf %86, %90 : vector<8x8xf32>
    %cst_39 = arith.constant dense<0.000000e+00> : vector<8x16xf32>
    %92 = tpu.matmul %91, %78, %cst_39 {dimension_numbers = #tpu.dot_dimension_numbers<[1], [0], [0], [1], [0, 0, 1, 1], [], []>} : vector<8x8xf32>, vector<8x16xf32>, vector<8x16xf32> -> vector<8x16xf32>
    %93 = tpu.concatenate %73, %92 in 1 : vector<8x16xf32>, vector<8x16xf32> -> vector<8x32xf32>
    %c0_40 = arith.constant 0 : index
    %c0_41 = arith.constant 0 : index
    %c0_42 = arith.constant 0 : index
    %94 = vector.load %arg9[%c0_40, %c0_41, %c0_42] : memref<2x32x32xf32, #tpu.memory_space<vmem>>, vector<1x32x32xf32>
    %95 = vector.shape_cast %94 : vector<1x32x32xf32> to vector<32x32xf32>
    %cst_43 = arith.constant dense<0.000000e+00> : vector<8x32xf32>
    %96 = tpu.matmul %93, %95, %cst_43 {dimension_numbers = #tpu.dot_dimension_numbers<[1], [0], [0], [1], [0, 0, 1, 1], [], []>} : vector<8x32xf32>, vector<32x32xf32>, vector<8x32xf32> -> vector<8x32xf32>
    %c0_44 = arith.constant 0 : index
    %c0_45 = arith.constant 0 : index
    %c0_46 = arith.constant 0 : index
    %97 = vector.load %arg10[%c0_44, %c0_45, %c0_46] : memref<2x1x32xf32, #tpu.memory_space<vmem>>, vector<1x1x32xf32>
    %98 = vector.shape_cast %97 : vector<1x1x32xf32> to vector<1x32xf32>
    %99 = vector.broadcast %98 : vector<1x32xf32> to vector<8x32xf32>
    %100 = arith.addf %96, %99 : vector<8x32xf32>
    %101 = arith.addf %10, %100 : vector<8x32xf32>
    %c0_47 = arith.constant 0 : index
    %c0_48 = arith.constant 0 : index
    %c0_49 = arith.constant 0 : index
    %102 = vector.load %arg11[%c0_47, %c0_48, %c0_49] : memref<2x1x32xf32, #tpu.memory_space<vmem>>, vector<1x1x32xf32>
    %103 = vector.shape_cast %102 : vector<1x1x32xf32> to vector<1x32xf32>
    %c0_50 = arith.constant 0 : index
    %c0_51 = arith.constant 0 : index
    %c0_52 = arith.constant 0 : index
    %104 = vector.load %arg12[%c0_50, %c0_51, %c0_52] : memref<2x1x32xf32, #tpu.memory_space<vmem>>, vector<1x1x32xf32>
    %105 = vector.shape_cast %104 : vector<1x1x32xf32> to vector<1x32xf32>
    %cst_53 = arith.constant dense<0.000000e+00> : vector<8xf32>
    %106 = vector.multi_reduction <add>, %101, %cst_53 [1] : vector<8x32xf32> to vector<8xf32>
    %107 = vector.shape_cast %106 : vector<8xf32> to vector<8x1xf32>
    %cst_54 = arith.constant 3.200000e+01 : f32
    %108 = vector.broadcast %cst_54 : f32 to vector<8x1xf32>
    %109 = arith.divf %107, %108 : vector<8x1xf32>
    %110 = vector.broadcast %109 : vector<8x1xf32> to vector<8x32xf32>
    %111 = arith.subf %101, %110 : vector<8x32xf32>
    %112 = vector.broadcast %109 : vector<8x1xf32> to vector<8x32xf32>
    %113 = arith.subf %101, %112 : vector<8x32xf32>
    %114 = arith.mulf %111, %113 : vector<8x32xf32>
    %cst_55 = arith.constant dense<0.000000e+00> : vector<8xf32>
    %115 = vector.multi_reduction <add>, %114, %cst_55 [1] : vector<8x32xf32> to vector<8xf32>
    %116 = vector.shape_cast %115 : vector<8xf32> to vector<8x1xf32>
    %cst_56 = arith.constant 3.200000e+01 : f32
    %117 = vector.broadcast %cst_56 : f32 to vector<8x1xf32>
    %118 = arith.divf %116, %117 : vector<8x1xf32>
    %119 = vector.broadcast %109 : vector<8x1xf32> to vector<8x32xf32>
    %120 = arith.subf %101, %119 : vector<8x32xf32>
    %cst_57 = arith.constant 9.99999974E-6 : f32
    %121 = vector.broadcast %cst_57 : f32 to vector<8x1xf32>
    %122 = arith.addf %118, %121 : vector<8x1xf32>
    %123 = math.rsqrt %122 : vector<8x1xf32>
    %124 = vector.broadcast %123 : vector<8x1xf32> to vector<8x32xf32>
    %125 = arith.mulf %120, %124 : vector<8x32xf32>
    %126 = vector.broadcast %103 : vector<1x32xf32> to vector<8x32xf32>
    %127 = arith.mulf %125, %126 : vector<8x32xf32>
    %128 = vector.broadcast %105 : vector<1x32xf32> to vector<8x32xf32>
    %129 = arith.addf %127, %128 : vector<8x32xf32>
    %c0_58 = arith.constant 0 : index
    %c0_59 = arith.constant 0 : index
    %c0_60 = arith.constant 0 : index
    %130 = vector.load %arg13[%c0_58, %c0_59, %c0_60] : memref<2x32x128xf32, #tpu.memory_space<vmem>>, vector<1x32x128xf32>
    %131 = vector.shape_cast %130 : vector<1x32x128xf32> to vector<32x128xf32>
    %cst_61 = arith.constant dense<0.000000e+00> : vector<8x128xf32>
    %132 = tpu.matmul %129, %131, %cst_61 {dimension_numbers = #tpu.dot_dimension_numbers<[1], [0], [0], [1], [0, 0, 1, 1], [], []>} : vector<8x32xf32>, vector<32x128xf32>, vector<8x128xf32> -> vector<8x128xf32>
    %c0_62 = arith.constant 0 : index
    %c0_63 = arith.constant 0 : index
    %c0_64 = arith.constant 0 : index
    %133 = vector.load %arg14[%c0_62, %c0_63, %c0_64] : memref<2x1x128xf32, #tpu.memory_space<vmem>>, vector<1x1x128xf32>
    %134 = vector.shape_cast %133 : vector<1x1x128xf32> to vector<1x128xf32>
    %135 = vector.broadcast %134 : vector<1x128xf32> to vector<8x128xf32>
    %136 = arith.addf %132, %135 : vector<8x128xf32>
    %cst_65 = arith.constant 5.000000e-01 : f32
    %137 = vector.broadcast %cst_65 : f32 to vector<8x128xf32>
    %138 = arith.mulf %137, %136 : vector<8x128xf32>
    %cst_66 = arith.constant 4.471500e-02 : f32
    %139 = vector.broadcast %cst_66 : f32 to vector<8x128xf32>
    %140 = arith.mulf %139, %136 : vector<8x128xf32>
    %141 = arith.mulf %140, %136 : vector<8x128xf32>
    %142 = arith.mulf %141, %136 : vector<8x128xf32>
    %143 = arith.addf %136, %142 : vector<8x128xf32>
    %cst_67 = arith.constant 0.797884583 : f32
    %144 = vector.broadcast %cst_67 : f32 to vector<8x128xf32>
    %145 = arith.mulf %144, %143 : vector<8x128xf32>
    %146 = math.tanh %145 : vector<8x128xf32>
    %cst_68 = arith.constant 1.000000e+00 : f32
    %147 = vector.broadcast %cst_68 : f32 to vector<8x128xf32>
    %148 = arith.addf %147, %146 : vector<8x128xf32>
    %149 = arith.mulf %138, %148 : vector<8x128xf32>
    %c0_69 = arith.constant 0 : index
    %c0_70 = arith.constant 0 : index
    %c0_71 = arith.constant 0 : index
    %150 = vector.load %arg15[%c0_69, %c0_70, %c0_71] : memref<2x128x32xf32, #tpu.memory_space<vmem>>, vector<1x128x32xf32>
    %151 = vector.shape_cast %150 : vector<1x128x32xf32> to vector<128x32xf32>
    %cst_72 = arith.constant dense<0.000000e+00> : vector<8x32xf32>
    %152 = tpu.matmul %149, %151, %cst_72 {dimension_numbers = #tpu.dot_dimension_numbers<[1], [0], [0], [1], [0, 0, 1, 1], [], []>} : vector<8x128xf32>, vector<128x32xf32>, vector<8x32xf32> -> vector<8x32xf32>
    %c0_73 = arith.constant 0 : index
    %c0_74 = arith.constant 0 : index
    %c0_75 = arith.constant 0 : index
    %153 = vector.load %arg16[%c0_73, %c0_74, %c0_75] : memref<2x1x32xf32, #tpu.memory_space<vmem>>, vector<1x1x32xf32>
    %154 = vector.shape_cast %153 : vector<1x1x32xf32> to vector<1x32xf32>
    %155 = vector.broadcast %154 : vector<1x32xf32> to vector<8x32xf32>
    %156 = arith.addf %152, %155 : vector<8x32xf32>
    %157 = arith.addf %101, %156 : vector<8x32xf32>
    %c1 = arith.constant 1 : index
    %c0_76 = arith.constant 0 : index
    %c0_77 = arith.constant 0 : index
    %158 = vector.load %arg5[%c1, %c0_76, %c0_77] : memref<2x1x32xf32, #tpu.memory_space<vmem>>, vector<1x1x32xf32>
    %159 = vector.shape_cast %158 : vector<1x1x32xf32> to vector<1x32xf32>
    %c1_78 = arith.constant 1 : index
    %c0_79 = arith.constant 0 : index
    %c0_80 = arith.constant 0 : index
    %160 = vector.load %arg6[%c1_78, %c0_79, %c0_80] : memref<2x1x32xf32, #tpu.memory_space<vmem>>, vector<1x1x32xf32>
    %161 = vector.shape_cast %160 : vector<1x1x32xf32> to vector<1x32xf32>
    %cst_81 = arith.constant dense<0.000000e+00> : vector<8xf32>
    %162 = vector.multi_reduction <add>, %157, %cst_81 [1] : vector<8x32xf32> to vector<8xf32>
    %163 = vector.shape_cast %162 : vector<8xf32> to vector<8x1xf32>
    %cst_82 = arith.constant 3.200000e+01 : f32
    %164 = vector.broadcast %cst_82 : f32 to vector<8x1xf32>
    %165 = arith.divf %163, %164 : vector<8x1xf32>
    %166 = vector.broadcast %165 : vector<8x1xf32> to vector<8x32xf32>
    %167 = arith.subf %157, %166 : vector<8x32xf32>
    %168 = vector.broadcast %165 : vector<8x1xf32> to vector<8x32xf32>
    %169 = arith.subf %157, %168 : vector<8x32xf32>
    %170 = arith.mulf %167, %169 : vector<8x32xf32>
    %cst_83 = arith.constant dense<0.000000e+00> : vector<8xf32>
    %171 = vector.multi_reduction <add>, %170, %cst_83 [1] : vector<8x32xf32> to vector<8xf32>
    %172 = vector.shape_cast %171 : vector<8xf32> to vector<8x1xf32>
    %cst_84 = arith.constant 3.200000e+01 : f32
    %173 = vector.broadcast %cst_84 : f32 to vector<8x1xf32>
    %174 = arith.divf %172, %173 : vector<8x1xf32>
    %175 = vector.broadcast %165 : vector<8x1xf32> to vector<8x32xf32>
    %176 = arith.subf %157, %175 : vector<8x32xf32>
    %cst_85 = arith.constant 9.99999974E-6 : f32
    %177 = vector.broadcast %cst_85 : f32 to vector<8x1xf32>
    %178 = arith.addf %174, %177 : vector<8x1xf32>
    %179 = math.rsqrt %178 : vector<8x1xf32>
    %180 = vector.broadcast %179 : vector<8x1xf32> to vector<8x32xf32>
    %181 = arith.mulf %176, %180 : vector<8x32xf32>
    %182 = vector.broadcast %159 : vector<1x32xf32> to vector<8x32xf32>
    %183 = arith.mulf %181, %182 : vector<8x32xf32>
    %184 = vector.broadcast %161 : vector<1x32xf32> to vector<8x32xf32>
    %185 = arith.addf %183, %184 : vector<8x32xf32>
    %c1_86 = arith.constant 1 : index
    %c0_87 = arith.constant 0 : index
    %c0_88 = arith.constant 0 : index
    %186 = vector.load %arg7[%c1_86, %c0_87, %c0_88] : memref<2x32x96xf32, #tpu.memory_space<vmem>>, vector<1x32x96xf32>
    %187 = vector.shape_cast %186 : vector<1x32x96xf32> to vector<32x96xf32>
    %cst_89 = arith.constant dense<0.000000e+00> : vector<8x96xf32>
    %188 = tpu.matmul %185, %187, %cst_89 {dimension_numbers = #tpu.dot_dimension_numbers<[1], [0], [0], [1], [0, 0, 1, 1], [], []>} : vector<8x32xf32>, vector<32x96xf32>, vector<8x96xf32> -> vector<8x96xf32>
    %c1_90 = arith.constant 1 : index
    %c0_91 = arith.constant 0 : index
    %c0_92 = arith.constant 0 : index
    %189 = vector.load %arg8[%c1_90, %c0_91, %c0_92] : memref<2x1x96xf32, #tpu.memory_space<vmem>>, vector<1x1x96xf32>
    %190 = vector.shape_cast %189 : vector<1x1x96xf32> to vector<1x96xf32>
    %191 = vector.broadcast %190 : vector<1x96xf32> to vector<8x96xf32>
    %192 = arith.addf %188, %191 : vector<8x96xf32>
    %193 = vector.extract_strided_slice %192 {offsets = [0, 0], sizes = [8, 16], strides = [1, 1]} : vector<8x96xf32> to vector<8x16xf32>
    %cst_93 = arith.constant 2.500000e-01 : f32
    %194 = vector.broadcast %cst_93 : f32 to vector<8x16xf32>
    %195 = arith.mulf %193, %194 : vector<8x16xf32>
    %196 = vector.extract_strided_slice %192 {offsets = [0, 32], sizes = [8, 16], strides = [1, 1]} : vector<8x96xf32> to vector<8x16xf32>
    %197 = vector.extract_strided_slice %192 {offsets = [0, 64], sizes = [8, 16], strides = [1, 1]} : vector<8x96xf32> to vector<8x16xf32>
    %cst_94 = arith.constant dense<0.000000e+00> : vector<8x8xf32>
    %198 = tpu.matmul %195, %196, %cst_94 {dimension_numbers = #tpu.dot_dimension_numbers<[1], [1], [0], [0], [0, 0, 1, 0], [], []>} : vector<8x16xf32>, vector<8x16xf32>, vector<8x8xf32> -> vector<8x8xf32>
    %cst_95 = arith.constant -1.000000e+30 : f32
    %199 = vector.broadcast %cst_95 : f32 to vector<8x8xf32>
    %200 = arith.select %19, %198, %199 : vector<8x8xi1>, vector<8x8xf32>
    %cst_96 = arith.constant dense<0xFF800000> : vector<8xf32>
    %201 = vector.multi_reduction <maximumf>, %200, %cst_96 [1] : vector<8x8xf32> to vector<8xf32>
    %202 = vector.shape_cast %201 : vector<8xf32> to vector<8x1xf32>
    %203 = vector.broadcast %202 : vector<8x1xf32> to vector<8x8xf32>
    %204 = arith.subf %200, %203 : vector<8x8xf32>
    %205 = math.exp %204 : vector<8x8xf32>
    %cst_97 = arith.constant dense<0.000000e+00> : vector<8xf32>
    %206 = vector.multi_reduction <add>, %205, %cst_97 [1] : vector<8x8xf32> to vector<8xf32>
    %207 = vector.shape_cast %206 : vector<8xf32> to vector<8x1xf32>
    %208 = tpu.reciprocal %207 {approx = true} : vector<8x1xf32> -> vector<8x1xf32>
    %209 = vector.broadcast %208 : vector<8x1xf32> to vector<8x8xf32>
    %210 = arith.mulf %205, %209 : vector<8x8xf32>
    %cst_98 = arith.constant dense<0.000000e+00> : vector<8x16xf32>
    %211 = tpu.matmul %210, %197, %cst_98 {dimension_numbers = #tpu.dot_dimension_numbers<[1], [0], [0], [1], [0, 0, 1, 1], [], []>} : vector<8x8xf32>, vector<8x16xf32>, vector<8x16xf32> -> vector<8x16xf32>
    %212 = vector.extract_strided_slice %192 {offsets = [0, 16], sizes = [8, 16], strides = [1, 1]} : vector<8x96xf32> to vector<8x16xf32>
    %cst_99 = arith.constant 2.500000e-01 : f32
    %213 = vector.broadcast %cst_99 : f32 to vector<8x16xf32>
    %214 = arith.mulf %212, %213 : vector<8x16xf32>
    %215 = vector.extract_strided_slice %192 {offsets = [0, 48], sizes = [8, 16], strides = [1, 1]} : vector<8x96xf32> to vector<8x16xf32>
    %216 = vector.extract_strided_slice %192 {offsets = [0, 80], sizes = [8, 16], strides = [1, 1]} : vector<8x96xf32> to vector<8x16xf32>
    %cst_100 = arith.constant dense<0.000000e+00> : vector<8x8xf32>
    %217 = tpu.matmul %214, %215, %cst_100 {dimension_numbers = #tpu.dot_dimension_numbers<[1], [1], [0], [0], [0, 0, 1, 0], [], []>} : vector<8x16xf32>, vector<8x16xf32>, vector<8x8xf32> -> vector<8x8xf32>
    %cst_101 = arith.constant -1.000000e+30 : f32
    %218 = vector.broadcast %cst_101 : f32 to vector<8x8xf32>
    %219 = arith.select %19, %217, %218 : vector<8x8xi1>, vector<8x8xf32>
    %cst_102 = arith.constant dense<0xFF800000> : vector<8xf32>
    %220 = vector.multi_reduction <maximumf>, %219, %cst_102 [1] : vector<8x8xf32> to vector<8xf32>
    %221 = vector.shape_cast %220 : vector<8xf32> to vector<8x1xf32>
    %222 = vector.broadcast %221 : vector<8x1xf32> to vector<8x8xf32>
    %223 = arith.subf %219, %222 : vector<8x8xf32>
    %224 = math.exp %223 : vector<8x8xf32>
    %cst_103 = arith.constant dense<0.000000e+00> : vector<8xf32>
    %225 = vector.multi_reduction <add>, %224, %cst_103 [1] : vector<8x8xf32> to vector<8xf32>
    %226 = vector.shape_cast %225 : vector<8xf32> to vector<8x1xf32>
    %227 = tpu.reciprocal %226 {approx = true} : vector<8x1xf32> -> vector<8x1xf32>
    %228 = vector.broadcast %227 : vector<8x1xf32> to vector<8x8xf32>
    %229 = arith.mulf %224, %228 : vector<8x8xf32>
    %cst_104 = arith.constant dense<0.000000e+00> : vector<8x16xf32>
    %230 = tpu.matmul %229, %216, %cst_104 {dimension_numbers = #tpu.dot_dimension_numbers<[1], [0], [0], [1], [0, 0, 1, 1], [], []>} : vector<8x8xf32>, vector<8x16xf32>, vector<8x16xf32> -> vector<8x16xf32>
    %231 = tpu.concatenate %211, %230 in 1 : vector<8x16xf32>, vector<8x16xf32> -> vector<8x32xf32>
    %c1_105 = arith.constant 1 : index
    %c0_106 = arith.constant 0 : index
    %c0_107 = arith.constant 0 : index
    %232 = vector.load %arg9[%c1_105, %c0_106, %c0_107] : memref<2x32x32xf32, #tpu.memory_space<vmem>>, vector<1x32x32xf32>
    %233 = vector.shape_cast %232 : vector<1x32x32xf32> to vector<32x32xf32>
    %cst_108 = arith.constant dense<0.000000e+00> : vector<8x32xf32>
    %234 = tpu.matmul %231, %233, %cst_108 {dimension_numbers = #tpu.dot_dimension_numbers<[1], [0], [0], [1], [0, 0, 1, 1], [], []>} : vector<8x32xf32>, vector<32x32xf32>, vector<8x32xf32> -> vector<8x32xf32>
    %c1_109 = arith.constant 1 : index
    %c0_110 = arith.constant 0 : index
    %c0_111 = arith.constant 0 : index
    %235 = vector.load %arg10[%c1_109, %c0_110, %c0_111] : memref<2x1x32xf32, #tpu.memory_space<vmem>>, vector<1x1x32xf32>
    %236 = vector.shape_cast %235 : vector<1x1x32xf32> to vector<1x32xf32>
    %237 = vector.broadcast %236 : vector<1x32xf32> to vector<8x32xf32>
    %238 = arith.addf %234, %237 : vector<8x32xf32>
    %239 = arith.addf %157, %238 : vector<8x32xf32>
    %c1_112 = arith.constant 1 : index
    %c0_113 = arith.constant 0 : index
    %c0_114 = arith.constant 0 : index
    %240 = vector.load %arg11[%c1_112, %c0_113, %c0_114] : memref<2x1x32xf32, #tpu.memory_space<vmem>>, vector<1x1x32xf32>
    %241 = vector.shape_cast %240 : vector<1x1x32xf32> to vector<1x32xf32>
    %c1_115 = arith.constant 1 : index
    %c0_116 = arith.constant 0 : index
    %c0_117 = arith.constant 0 : index
    %242 = vector.load %arg12[%c1_115, %c0_116, %c0_117] : memref<2x1x32xf32, #tpu.memory_space<vmem>>, vector<1x1x32xf32>
    %243 = vector.shape_cast %242 : vector<1x1x32xf32> to vector<1x32xf32>
    %cst_118 = arith.constant dense<0.000000e+00> : vector<8xf32>
    %244 = vector.multi_reduction <add>, %239, %cst_118 [1] : vector<8x32xf32> to vector<8xf32>
    %245 = vector.shape_cast %244 : vector<8xf32> to vector<8x1xf32>
    %cst_119 = arith.constant 3.200000e+01 : f32
    %246 = vector.broadcast %cst_119 : f32 to vector<8x1xf32>
    %247 = arith.divf %245, %246 : vector<8x1xf32>
    %248 = vector.broadcast %247 : vector<8x1xf32> to vector<8x32xf32>
    %249 = arith.subf %239, %248 : vector<8x32xf32>
    %250 = vector.broadcast %247 : vector<8x1xf32> to vector<8x32xf32>
    %251 = arith.subf %239, %250 : vector<8x32xf32>
    %252 = arith.mulf %249, %251 : vector<8x32xf32>
    %cst_120 = arith.constant dense<0.000000e+00> : vector<8xf32>
    %253 = vector.multi_reduction <add>, %252, %cst_120 [1] : vector<8x32xf32> to vector<8xf32>
    %254 = vector.shape_cast %253 : vector<8xf32> to vector<8x1xf32>
    %cst_121 = arith.constant 3.200000e+01 : f32
    %255 = vector.broadcast %cst_121 : f32 to vector<8x1xf32>
    %256 = arith.divf %254, %255 : vector<8x1xf32>
    %257 = vector.broadcast %247 : vector<8x1xf32> to vector<8x32xf32>
    %258 = arith.subf %239, %257 : vector<8x32xf32>
    %cst_122 = arith.constant 9.99999974E-6 : f32
    %259 = vector.broadcast %cst_122 : f32 to vector<8x1xf32>
    %260 = arith.addf %256, %259 : vector<8x1xf32>
    %261 = math.rsqrt %260 : vector<8x1xf32>
    %262 = vector.broadcast %261 : vector<8x1xf32> to vector<8x32xf32>
    %263 = arith.mulf %258, %262 : vector<8x32xf32>
    %264 = vector.broadcast %241 : vector<1x32xf32> to vector<8x32xf32>
    %265 = arith.mulf %263, %264 : vector<8x32xf32>
    %266 = vector.broadcast %243 : vector<1x32xf32> to vector<8x32xf32>
    %267 = arith.addf %265, %266 : vector<8x32xf32>
    %c1_123 = arith.constant 1 : index
    %c0_124 = arith.constant 0 : index
    %c0_125 = arith.constant 0 : index
    %268 = vector.load %arg13[%c1_123, %c0_124, %c0_125] : memref<2x32x128xf32, #tpu.memory_space<vmem>>, vector<1x32x128xf32>
    %269 = vector.shape_cast %268 : vector<1x32x128xf32> to vector<32x128xf32>
    %cst_126 = arith.constant dense<0.000000e+00> : vector<8x128xf32>
    %270 = tpu.matmul %267, %269, %cst_126 {dimension_numbers = #tpu.dot_dimension_numbers<[1], [0], [0], [1], [0, 0, 1, 1], [], []>} : vector<8x32xf32>, vector<32x128xf32>, vector<8x128xf32> -> vector<8x128xf32>
    %c1_127 = arith.constant 1 : index
    %c0_128 = arith.constant 0 : index
    %c0_129 = arith.constant 0 : index
    %271 = vector.load %arg14[%c1_127, %c0_128, %c0_129] : memref<2x1x128xf32, #tpu.memory_space<vmem>>, vector<1x1x128xf32>
    %272 = vector.shape_cast %271 : vector<1x1x128xf32> to vector<1x128xf32>
    %273 = vector.broadcast %272 : vector<1x128xf32> to vector<8x128xf32>
    %274 = arith.addf %270, %273 : vector<8x128xf32>
    %cst_130 = arith.constant 5.000000e-01 : f32
    %275 = vector.broadcast %cst_130 : f32 to vector<8x128xf32>
    %276 = arith.mulf %275, %274 : vector<8x128xf32>
    %cst_131 = arith.constant 4.471500e-02 : f32
    %277 = vector.broadcast %cst_131 : f32 to vector<8x128xf32>
    %278 = arith.mulf %277, %274 : vector<8x128xf32>
    %279 = arith.mulf %278, %274 : vector<8x128xf32>
    %280 = arith.mulf %279, %274 : vector<8x128xf32>
    %281 = arith.addf %274, %280 : vector<8x128xf32>
    %cst_132 = arith.constant 0.797884583 : f32
    %282 = vector.broadcast %cst_132 : f32 to vector<8x128xf32>
    %283 = arith.mulf %282, %281 : vector<8x128xf32>
    %284 = math.tanh %283 : vector<8x128xf32>
    %cst_133 = arith.constant 1.000000e+00 : f32
    %285 = vector.broadcast %cst_133 : f32 to vector<8x128xf32>
    %286 = arith.addf %285, %284 : vector<8x128xf32>
    %287 = arith.mulf %276, %286 : vector<8x128xf32>
    %c1_134 = arith.constant 1 : index
    %c0_135 = arith.constant 0 : index
    %c0_136 = arith.constant 0 : index
    %288 = vector.load %arg15[%c1_134, %c0_135, %c0_136] : memref<2x128x32xf32, #tpu.memory_space<vmem>>, vector<1x128x32xf32>
    %289 = vector.shape_cast %288 : vector<1x128x32xf32> to vector<128x32xf32>
    %cst_137 = arith.constant dense<0.000000e+00> : vector<8x32xf32>
    %290 = tpu.matmul %287, %289, %cst_137 {dimension_numbers = #tpu.dot_dimension_numbers<[1], [0], [0], [1], [0, 0, 1, 1], [], []>} : vector<8x128xf32>, vector<128x32xf32>, vector<8x32xf32> -> vector<8x32xf32>
    %c1_138 = arith.constant 1 : index
    %c0_139 = arith.constant 0 : index
    %c0_140 = arith.constant 0 : index
    %291 = vector.load %arg16[%c1_138, %c0_139, %c0_140] : memref<2x1x32xf32, #tpu.memory_space<vmem>>, vector<1x1x32xf32>
    %292 = vector.shape_cast %291 : vector<1x1x32xf32> to vector<1x32xf32>
    %293 = vector.broadcast %292 : vector<1x32xf32> to vector<8x32xf32>
    %294 = arith.addf %290, %293 : vector<8x32xf32>
    %295 = arith.addf %239, %294 : vector<8x32xf32>
    %c0_141 = arith.constant 0 : index
    %c0_142 = arith.constant 0 : index
    %296 = vector.load %arg17[%c0_141, %c0_142] : memref<1x32xf32, #tpu.memory_space<vmem>>, vector<1x32xf32>
    %c0_143 = arith.constant 0 : index
    %c0_144 = arith.constant 0 : index
    %297 = vector.load %arg18[%c0_143, %c0_144] : memref<1x32xf32, #tpu.memory_space<vmem>>, vector<1x32xf32>
    %cst_145 = arith.constant dense<0.000000e+00> : vector<8xf32>
    %298 = vector.multi_reduction <add>, %295, %cst_145 [1] : vector<8x32xf32> to vector<8xf32>
    %299 = vector.shape_cast %298 : vector<8xf32> to vector<8x1xf32>
    %cst_146 = arith.constant 3.200000e+01 : f32
    %300 = vector.broadcast %cst_146 : f32 to vector<8x1xf32>
    %301 = arith.divf %299, %300 : vector<8x1xf32>
    %302 = vector.broadcast %301 : vector<8x1xf32> to vector<8x32xf32>
    %303 = arith.subf %295, %302 : vector<8x32xf32>
    %304 = vector.broadcast %301 : vector<8x1xf32> to vector<8x32xf32>
    %305 = arith.subf %295, %304 : vector<8x32xf32>
    %306 = arith.mulf %303, %305 : vector<8x32xf32>
    %cst_147 = arith.constant dense<0.000000e+00> : vector<8xf32>
    %307 = vector.multi_reduction <add>, %306, %cst_147 [1] : vector<8x32xf32> to vector<8xf32>
    %308 = vector.shape_cast %307 : vector<8xf32> to vector<8x1xf32>
    %cst_148 = arith.constant 3.200000e+01 : f32
    %309 = vector.broadcast %cst_148 : f32 to vector<8x1xf32>
    %310 = arith.divf %308, %309 : vector<8x1xf32>
    %311 = vector.broadcast %301 : vector<8x1xf32> to vector<8x32xf32>
    %312 = arith.subf %295, %311 : vector<8x32xf32>
    %cst_149 = arith.constant 9.99999974E-6 : f32
    %313 = vector.broadcast %cst_149 : f32 to vector<8x1xf32>
    %314 = arith.addf %310, %313 : vector<8x1xf32>
    %315 = math.rsqrt %314 : vector<8x1xf32>
    %316 = vector.broadcast %315 : vector<8x1xf32> to vector<8x32xf32>
    %317 = arith.mulf %312, %316 : vector<8x32xf32>
    %318 = vector.broadcast %296 : vector<1x32xf32> to vector<8x32xf32>
    %319 = arith.mulf %317, %318 : vector<8x32xf32>
    %320 = vector.broadcast %297 : vector<1x32xf32> to vector<8x32xf32>
    %321 = arith.addf %319, %320 : vector<8x32xf32>
    %cst_150 = arith.constant dense<0.000000e+00> : vector<8x128xf32>
    %322 = tpu.matmul %321, %0, %cst_150 {dimension_numbers = #tpu.dot_dimension_numbers<[1], [1], [0], [0], [0, 0, 1, 0], [], []>} : vector<8x32xf32>, vector<128x32xf32>, vector<8x128xf32> -> vector<8x128xf32>
    %c0_151 = arith.constant 0 : index
    %c0_152 = arith.constant 0 : index
    %c0_153 = arith.constant 0 : index
    %323 = vector.load %arg19[%c0_151, %c0_152, %c0_153] : memref<1x8x128xf32, #tpu.memory_space<vmem>>, vector<1x8x128xf32>
    %324 = vector.shape_cast %323 : vector<1x8x128xf32> to vector<8x128xf32>
    %325 = vector.shape_cast %322 : vector<8x128xf32> to vector<1x8x128xf32>
    tpu.vector_store %arg19[%c0_151, %c0_152, %c0_153], %325 {strides = array<i32>} : memref<1x8x128xf32, #tpu.memory_space<vmem>>, vector<1x8x128xf32>,
    return
  }
  func.func @transform_0(%arg0: i32) -> (i32, i32, i32) {
    %c0_i32 = arith.constant 0 : i32
    %c0_i32_0 = arith.constant 0 : i32
    %c0_i32_1 = arith.constant 0 : i32
    return %arg0, %c0_i32, %c0_i32_0 : i32, i32, i32
  }
  func.func @transform_1(%arg0: i32) -> (i32, i32, i32) {
    %c0_i32 = arith.constant 0 : i32
    %c0_i32_0 = arith.constant 0 : i32
    %c0_i32_1 = arith.constant 0 : i32
    return %arg0, %c0_i32, %c0_i32_0 : i32, i32, i32
  }
  func.func @transform_2(%arg0: i32) -> (i32, i32) {
    %c0_i32 = arith.constant 0 : i32
    %c0_i32_0 = arith.constant 0 : i32
    %c0_i32_1 = arith.constant 0 : i32
    return %c0_i32, %c0_i32_0 : i32, i32
  }
  func.func @transform_3(%arg0: i32) -> (i32, i32) {
    %c0_i32 = arith.constant 0 : i32
    %c0_i32_0 = arith.constant 0 : i32
    %c0_i32_1 = arith.constant 0 : i32
    return %c0_i32, %c0_i32_0 : i32, i32
  }
  func.func @transform_4(%arg0: i32) -> (i32, i32, i32) {
    %c0_i32 = arith.constant 0 : i32
    %c0_i32_0 = arith.constant 0 : i32
    %c0_i32_1 = arith.constant 0 : i32
    %c0_i32_2 = arith.constant 0 : i32
    return %c0_i32, %c0_i32_0, %c0_i32_1 : i32, i32, i32
  }
  func.func @transform_5(%arg0: i32) -> (i32, i32, i32) {
    %c0_i32 = arith.constant 0 : i32
    %c0_i32_0 = arith.constant 0 : i32
    %c0_i32_1 = arith.constant 0 : i32
    %c0_i32_2 = arith.constant 0 : i32
    return %c0_i32, %c0_i32_0, %c0_i32_1 : i32, i32, i32
  }
  func.func @transform_6(%arg0: i32) -> (i32, i32, i32) {
    %c0_i32 = arith.constant 0 : i32
    %c0_i32_0 = arith.constant 0 : i32
    %c0_i32_1 = arith.constant 0 : i32
    %c0_i32_2 = arith.constant 0 : i32
    return %c0_i32, %c0_i32_0, %c0_i32_1 : i32, i32, i32
  }
  func.func @transform_7(%arg0: i32) -> (i32, i32, i32) {
    %c0_i32 = arith.constant 0 : i32
    %c0_i32_0 = arith.constant 0 : i32
    %c0_i32_1 = arith.constant 0 : i32
    %c0_i32_2 = arith.constant 0 : i32
    return %c0_i32, %c0_i32_0, %c0_i32_1 : i32, i32, i32
  }
  func.func @transform_8(%arg0: i32) -> (i32, i32, i32) {
    %c0_i32 = arith.constant 0 : i32
    %c0_i32_0 = arith.constant 0 : i32
    %c0_i32_1 = arith.constant 0 : i32
    %c0_i32_2 = arith.constant 0 : i32
    return %c0_i32, %c0_i32_0, %c0_i32_1 : i32, i32, i32
  }
  func.func @transform_9(%arg0: i32) -> (i32, i32, i32) {
    %c0_i32 = arith.constant 0 : i32
    %c0_i32_0 = arith.constant 0 : i32
    %c0_i32_1 = arith.constant 0 : i32
    %c0_i32_2 = arith.constant 0 : i32
    return %c0_i32, %c0_i32_0, %c0_i32_1 : i32, i32, i32
  }
  func.func @transform_10(%arg0: i32) -> (i32, i32, i32) {
    %c0_i32 = arith.constant 0 : i32
    %c0_i32_0 = arith.constant 0 : i32
    %c0_i32_1 = arith.constant 0 : i32
    %c0_i32_2 = arith.constant 0 : i32
    return %c0_i32, %c0_i32_0, %c0_i32_1 : i32, i32, i32
  }
  func.func @transform_11(%arg0: i32) -> (i32, i32, i32) {
    %c0_i32 = arith.constant 0 : i32
    %c0_i32_0 = arith.constant 0 : i32
    %c0_i32_1 = arith.constant 0 : i32
    %c0_i32_2 = arith.constant 0 : i32
    return %c0_i32, %c0_i32_0, %c0_i32_1 : i32, i32, i32
  }
  func.func @transform_12(%arg0: i32) -> (i32, i32, i32) {
    %c0_i32 = arith.constant 0 : i32
    %c0_i32_0 = arith.constant 0 : i32
    %c0_i32_1 = arith.constant 0 : i32
    %c0_i32_2 = arith.constant 0 : i32
    return %c0_i32, %c0_i32_0, %c0_i32_1 : i32, i32, i32
  }
  func.func @transform_13(%arg0: i32) -> (i32, i32, i32) {
    %c0_i32 = arith.constant 0 : i32
    %c0_i32_0 = arith.constant 0 : i32
    %c0_i32_1 = arith.constant 0 : i32
    %c0_i32_2 = arith.constant 0 : i32
    return %c0_i32, %c0_i32_0, %c0_i32_1 : i32, i32, i32
  }
  func.func @transform_14(%arg0: i32) -> (i32, i32, i32) {
    %c0_i32 = arith.constant 0 : i32
    %c0_i32_0 = arith.constant 0 : i32
    %c0_i32_1 = arith.constant 0 : i32
    %c0_i32_2 = arith.constant 0 : i32
    return %c0_i32, %c0_i32_0, %c0_i32_1 : i32, i32, i32
  }
  func.func @transform_15(%arg0: i32) -> (i32, i32, i32) {
    %c0_i32 = arith.constant 0 : i32
    %c0_i32_0 = arith.constant 0 : i32
    %c0_i32_1 = arith.constant 0 : i32
    %c0_i32_2 = arith.constant 0 : i32
    return %c0_i32, %c0_i32_0, %c0_i32_1 : i32, i32, i32
  }
  func.func @transform_16(%arg0: i32) -> (i32, i32) {
    %c0_i32 = arith.constant 0 : i32
    %c0_i32_0 = arith.constant 0 : i32
    %c0_i32_1 = arith.constant 0 : i32
    return %c0_i32, %c0_i32_0 : i32, i32
  }
  func.func @transform_17(%arg0: i32) -> (i32, i32) {
    %c0_i32 = arith.constant 0 : i32
    %c0_i32_0 = arith.constant 0 : i32
    %c0_i32_1 = arith.constant 0 : i32
    return %c0_i32, %c0_i32_0 : i32, i32
  }
  func.func @transform_18(%arg0: i32) -> (i32, i32, i32) {
    %c0_i32 = arith.constant 0 : i32
    %c0_i32_0 = arith.constant 0 : i32
    %c0_i32_1 = arith.constant 0 : i32
    return %arg0, %c0_i32, %c0_i32_0 : i32, i32, i32
  }
}

</mosaic_0001>

<llo_original>
// kernel: policy_model_forward.1
$region0: #{policy_model_forward.1}
  #allocation0 [shape = 'u32[]', space=smem, size = 0x4, offset = 0x4, fixed_abs, tag = 'smem constant byte address 0x4 - core index']
  #allocation1 [shape = 'u32[144,128]{1,0:T(1,128)}', space=vmem, size = 0x12000, scoped, tag = 'internal scratch']
  %s0 = inlined_call_operand.vmem [shape: s32[2,8,1], index: 0, kind: input, shape index: {}]
  %s1 = inlined_call_operand.vmem [shape: f32[2,1,8], index: 1, kind: input, shape index: {}]
  %s2 = inlined_call_operand.vmem [shape: f32[128,32], index: 2, kind: input, shape index: {}]
  %s3 = inlined_call_operand.vmem [shape: f32[8,32], index: 3, kind: input, shape index: {}]
  %s4 = inlined_call_operand.vmem [shape: f32[2,1,32], index: 4, kind: input, shape index: {}]
  %s5 = inlined_call_operand.vmem [shape: f32[2,1,32], index: 5, kind: input, shape index: {}]
  %s6 = inlined_call_operand.vmem [shape: f32[2,32,96], index: 6, kind: input, shape index: {}]
  %s7 = inlined_call_operand.vmem [shape: f32[2,1,96], index: 7, kind: input, shape index: {}]
  %s8 = inlined_call_operand.vmem [shape: f32[2,32,32], index: 8, kind: input, shape index: {}]
  %s9 = inlined_call_operand.vmem [shape: f32[2,1,32], index: 9, kind: input, shape index: {}]
  %s10 = inlined_call_operand.vmem [shape: f32[2,1,32], index: 10, kind: input, shape index: {}]
  %s11 = inlined_call_operand.vmem [shape: f32[2,1,32], index: 11, kind: input, shape index: {}]
  %s12 = inlined_call_operand.vmem [shape: f32[2,32,128], index: 12, kind: input, shape index: {}]
  %s13 = inlined_call_operand.vmem [shape: f32[2,1,128], index: 13, kind: input, shape index: {}]
  %s14 = inlined_call_operand.vmem [shape: f32[2,128,32], index: 14, kind: input, shape index: {}]
  %s15 = inlined_call_operand.vmem [shape: f32[2,1,32], index: 15, kind: input, shape index: {}]
  %s16 = inlined_call_operand.vmem [shape: f32[1,32], index: 16, kind: input, shape index: {}]
  %s17 = inlined_call_operand.vmem [shape: f32[1,32], index: 17, kind: input, shape index: {}]
  %s18 = inlined_call_operand.hbm [shape: f32[2,8,128], index: 18, kind: output, shape index: {}]
  %s19 = sld [smem:[#allocation0]]
  $region105: #{policy_model_forward.1} parent=0
    _
  %s21 = ssub.s32 1, %s19
  %s22 = scalar_select 0, %s21, %s19
  $region1: #{policy_model_forward.1} parent=0
    #allocation2 [shape = 'u8[8192]{0}', space=vmem, size = 0x2000, scoped, tag = 'output window, operand 0']
    #allocation3 [shape = 's32[2]{0}', space=sflag, size = 0x8, scoped, tag = 'scoped memory for policy_model_forward.1']
    %23 = vsyncpa [#allocation3], 0
    %s24 = scalar_lea.sflag [#allocation3], 1
    %25 = vsyncpa %s24, 0
    loop: start=0, step=1, limit=4
    $region2: #{policy_model_forward.1} parent=1 // loop_pre_header
      _
    $region3: #{policy_model_forward.1} parent=1 // loop_header
      %s27 = sphi 0, %s31
      %p28 = scmp.ge.s32.totalorder %s27, 4
      %s37 = sphi 0, %s39
      %s40 = sphi 0, %s37
      %s41 = sphi 0, %s40
      %s57 = sphi 0, %s41
      %s63 = sphi 0, %s65
      %s66 = sphi 0, %s63
      %s67 = sphi 0, %s66
      %s83 = sphi 0, %s67
      %s87 = sphi 0, %s87
      %s89 = sphi 0, %s87
      %s90 = sphi 0, %s89
      %s104 = sphi 0, %s90
      %s108 = sphi 0, %s108
      %s110 = sphi 0, %s108
      %s111 = sphi 0, %s110
      %s125 = sphi 0, %s111
      %s129 = sphi 0, %s129
      %s131 = sphi 0, %s129
      %s132 = sphi 0, %s131
      %s146 = sphi 0, %s132
      %s150 = sphi 0, %s150
      %s152 = sphi 0, %s150
      %s153 = sphi 0, %s152
      %s167 = sphi 0, %s153
      %s171 = sphi 0, %s171
      %s173 = sphi 0, %s171
      %s174 = sphi 0, %s173
      %s188 = sphi 0, %s174
      %s192 = sphi 0, %s192
      %s194 = sphi 0, %s192
      %s195 = sphi 0, %s194
      %s209 = sphi 0, %s195
      %s213 = sphi 0, %s213
      %s215 = sphi 0, %s213
      %s216 = sphi 0, %s215
      %s230 = sphi 0, %s216
      %s234 = sphi 0, %s234
      %s236 = sphi 0, %s234
      %s237 = sphi 0, %s236
      %s251 = sphi 0, %s237
      %s255 = sphi 0, %s255
      %s257 = sphi 0, %s255
      %s258 = sphi 0, %s257
      %s272 = sphi 0, %s258
      %s276 = sphi 0, %s276
      %s278 = sphi 0, %s276
      %s279 = sphi 0, %s278
      %s293 = sphi 0, %s279
      %s297 = sphi 0, %s297
      %s299 = sphi 0, %s297
      %s300 = sphi 0, %s299
      %s314 = sphi 0, %s300
      %s318 = sphi 0, %s318
      %s320 = sphi 0, %s318
      %s321 = sphi 0, %s320
      %s335 = sphi 0, %s321
      %s339 = sphi 0, %s339
      %s341 = sphi 0, %s339
      %s342 = sphi 0, %s341
      %s356 = sphi 0, %s342
      %s360 = sphi 0, %s360
      %s362 = sphi 0, %s360
      %s363 = sphi 0, %s362
      %s377 = sphi 0, %s363
      %s381 = sphi 0, %s381
      %s383 = sphi 0, %s381
      %s384 = sphi 0, %s383
      %s398 = sphi 0, %s384
      %s402 = sphi 0, %s402
      %s404 = sphi 0, %s402
      %s405 = sphi 0, %s404
      %s419 = sphi 0, %s405
      %s425 = sphi 0, %s427
      %s428 = sphi 0, %s425
      %s429 = sphi 0, %s428
      %s445 = sphi 0, %s429
    $region4: #{policy_model_forward.1} parent=1 // loop_header_branch
      %30 = sbr.rel (%p28) target = $region8
    $region5: #{policy_model_forward.1} parent=1 // loop_body
      %s32 = ssub.s32 %s27, 1
      %s33 = ssub.s32 %s27, 2
      %s34 = sadd.s32 %s27, 1
      %s35 = ssub.s32 %s27, %s34
      %p36 = scmp.eq.s32.totalorder %s35, 0
      %s38 = sadd.s32 %s37, 1
      %s39 = scalar_select %p36, %s37, %s38
      %p42 = pneg %p36
      %p43 = scmp.eq.s32.totalorder %s27, 1
      %p44 = por %p42, %p43
      %p45 = scmp.ne.s32.totalorder %s37, %s40
      %p46 = scmp.eq.s32.totalorder %s27, 0
      %p47 = por %p45, %p46
      %p48 = scmp.ne.s32.totalorder %s37, %s40
      %p49 = scmp.eq.s32.totalorder %s32, 1
      %p50 = por %p48, %p49
      %p51 = scmp.ne.s32.totalorder %s40, %s41
      %p52 = scmp.eq.s32.totalorder %s32, 0
      %p53 = por %p51, %p52
      %p54 = scmp.ne.s32.totalorder %s40, %s41
      %p55 = scmp.eq.s32.totalorder %s33, 1
      %p56 = por %p54, %p55
      %p58 = scmp.ne.s32.totalorder %s41, %s57
      %p59 = scmp.eq.s32.totalorder %s33, 0
      %p60 = por %p58, %p59
      %s61 = ssub.s32 %s27, %s34
      %p62 = scmp.eq.s32.totalorder %s61, 0
      %s64 = sadd.s32 %s63, 1
      %s65 = scalar_select %p62, %s63, %s64
      %p68 = pneg %p62
      %p69 = scmp.eq.s32.totalorder %s27, 1
      %p70 = por %p68, %p69
      %p71 = scmp.ne.s32.totalorder %s63, %s66
      %p72 = scmp.eq.s32.totalorder %s27, 0
      %p73 = por %p71, %p72
      %p74 = scmp.ne.s32.totalorder %s63, %s66
      %p75 = scmp.eq.s32.totalorder %s32, 1
      %p76 = por %p74, %p75
      %p77 = scmp.ne.s32.totalorder %s66, %s67
      %p78 = scmp.eq.s32.totalorder %s32, 0
      %p79 = por %p77, %p78
      %p80 = scmp.ne.s32.totalorder %s66, %s67
      %p81 = scmp.eq.s32.totalorder %s33, 1
      %p82 = por %p80, %p81
      %p84 = scmp.ne.s32.totalorder %s67, %s83
      %p85 = scmp.eq.s32.totalorder %s33, 0
      %p86 = por %p84, %p85
      %s88 = sadd.s32 %s87, 1
      %p91 = scmp.eq.s32.totalorder %s27, 1
      %p92 = scmp.ne.s32.totalorder %s87, %s89
      %p93 = scmp.eq.s32.totalorder %s27, 0
      %p94 = por %p92, %p93
      %p95 = scmp.ne.s32.totalorder %s87, %s89
      %p96 = scmp.eq.s32.totalorder %s32, 1
      %p97 = por %p95, %p96
      %p98 = scmp.ne.s32.totalorder %s89, %s90
      %p99 = scmp.eq.s32.totalorder %s32, 0
      %p100 = por %p98, %p99
      %p101 = scmp.ne.s32.totalorder %s89, %s90
      %p102 = scmp.eq.s32.totalorder %s33, 1
      %p103 = por %p101, %p102
      %p105 = scmp.ne.s32.totalorder %s90, %s104
      %p106 = scmp.eq.s32.totalorder %s33, 0
      %p107 = por %p105, %p106
      %s109 = sadd.s32 %s108, 1
      %p112 = scmp.eq.s32.totalorder %s27, 1
      %p113 = scmp.ne.s32.totalorder %s108, %s110
      %p114 = scmp.eq.s32.totalorder %s27, 0
      %p115 = por %p113, %p114
      %p116 = scmp.ne.s32.totalorder %s108, %s110
      %p117 = scmp.eq.s32.totalorder %s32, 1
      %p118 = por %p116, %p117
      %p119 = scmp.ne.s32.totalorder %s110, %s111
      %p120 = scmp.eq.s32.totalorder %s32, 0
      %p121 = por %p119, %p120
      %p122 = scmp.ne.s32.totalorder %s110, %s111
      %p123 = scmp.eq.s32.totalorder %s33, 1
      %p124 = por %p122, %p123
      %p126 = scmp.ne.s32.totalorder %s111, %s125
      %p127 = scmp.eq.s32.totalorder %s33, 0
      %p128 = por %p126, %p127
      %s130 = sadd.s32 %s129, 1
      %p133 = scmp.eq.s32.totalorder %s27, 1
      %p134 = scmp.ne.s32.totalorder %s129, %s131
      %p135 = scmp.eq.s32.totalorder %s27, 0
      %p136 = por %p134, %p135
      %p137 = scmp.ne.s32.totalorder %s129, %s131
      %p138 = scmp.eq.s32.totalorder %s32, 1
      %p139 = por %p137, %p138
      %p140 = scmp.ne.s32.totalorder %s131, %s132
      %p141 = scmp.eq.s32.totalorder %s32, 0
      %p142 = por %p140, %p141
      %p143 = scmp.ne.s32.totalorder %s131, %s132
      %p144 = scmp.eq.s32.totalorder %s33, 1
      %p145 = por %p143, %p144
      %p147 = scmp.ne.s32.totalorder %s132, %s146
      %p148 = scmp.eq.s32.totalorder %s33, 0
      %p149 = por %p147, %p148
      %s151 = sadd.s32 %s150, 1
      %p154 = scmp.eq.s32.totalorder %s27, 1
      %p155 = scmp.ne.s32.totalorder %s150, %s152
      %p156 = scmp.eq.s32.totalorder %s27, 0
      %p157 = por %p155, %p156
      %p158 = scmp.ne.s32.totalorder %s150, %s152
      %p159 = scmp.eq.s32.totalorder %s32, 1
      %p160 = por %p158, %p159
      %p161 = scmp.ne.s32.totalorder %s152, %s153
      %p162 = scmp.eq.s32.totalorder %s32, 0
      %p163 = por %p161, %p162
      %p164 = scmp.ne.s32.totalorder %s152, %s153
      %p165 = scmp.eq.s32.totalorder %s33, 1
      %p166 = por %p164, %p165
      %p168 = scmp.ne.s32.totalorder %s153, %s167
      %p169 = scmp.eq.s32.totalorder %s33, 0
      %p170 = por %p168, %p169
      %s172 = sadd.s32 %s171, 1
      %p175 = scmp.eq.s32.totalorder %s27, 1
      %p176 = scmp.ne.s32.totalorder %s171, %s173
      %p177 = scmp.eq.s32.totalorder %s27, 0
      %p178 = por %p176, %p177
      %p179 = scmp.ne.s32.totalorder %s171, %s173
      %p180 = scmp.eq.s32.totalorder %s32, 1
      %p181 = por %p179, %p180
      %p182 = scmp.ne.s32.totalorder %s173, %s174
      %p183 = scmp.eq.s32.totalorder %s32, 0
      %p184 = por %p182, %p183
      %p185 = scmp.ne.s32.totalorder %s173, %s174
      %p186 = scmp.eq.s32.totalorder %s33, 1
      %p187 = por %p185, %p186
      %p189 = scmp.ne.s32.totalorder %s174, %s188
      %p190 = scmp.eq.s32.totalorder %s33, 0
      %p191 = por %p189, %p190
      %s193 = sadd.s32 %s192, 1
      %p196 = scmp.eq.s32.totalorder %s27, 1
      %p197 = scmp.ne.s32.totalorder %s192, %s194
      %p198 = scmp.eq.s32.totalorder %s27, 0
      %p199 = por %p197, %p198
      %p200 = scmp.ne.s32.totalorder %s192, %s194
      %p201 = scmp.eq.s32.totalorder %s32, 1
      %p202 = por %p200, %p201
      %p203 = scmp.ne.s32.totalorder %s194, %s195
      %p204 = scmp.eq.s32.totalorder %s32, 0
      %p205 = por %p203, %p204
      %p206 = scmp.ne.s32.totalorder %s194, %s195
      %p207 = scmp.eq.s32.totalorder %s33, 1
      %p208 = por %p206, %p207
      %p210 = scmp.ne.s32.totalorder %s195, %s209
      %p211 = scmp.eq.s32.totalorder %s33, 0
      %p212 = por %p210, %p211
      %s214 = sadd.s32 %s213, 1
      %p217 = scmp.eq.s32.totalorder %s27, 1
      %p218 = scmp.ne.s32.totalorder %s213, %s215
      %p219 = scmp.eq.s32.totalorder %s27, 0
      %p220 = por %p218, %p219
      %p221 = scmp.ne.s32.totalorder %s213, %s215
      %p222 = scmp.eq.s32.totalorder %s32, 1
      %p223 = por %p221, %p222
      %p224 = scmp.ne.s32.totalorder %s215, %s216
      %p225 = scmp.eq.s32.totalorder %s32, 0
      %p226 = por %p224, %p225
      %p227 = scmp.ne.s32.totalorder %s215, %s216
      %p228 = scmp.eq.s32.totalorder %s33, 1
      %p229 = por %p227, %p228
      %p231 = scmp.ne.s32.totalorder %s216, %s230
      %p232 = scmp.eq.s32.totalorder %s33, 0
      %p233 = por %p231, %p232
      %s235 = sadd.s32 %s234, 1
      %p238 = scmp.eq.s32.totalorder %s27, 1
      %p239 = scmp.ne.s32.totalorder %s234, %s236
      %p240 = scmp.eq.s32.totalorder %s27, 0
      %p241 = por %p239, %p240
      %p242 = scmp.ne.s32.totalorder %s234, %s236
      %p243 = scmp.eq.s32.totalorder %s32, 1
      %p244 = por %p242, %p243
      %p245 = scmp.ne.s32.totalorder %s236, %s237
      %p246 = scmp.eq.s32.totalorder %s32, 0
      %p247 = por %p245, %p246
      %p248 = scmp.ne.s32.totalorder %s236, %s237
      %p249 = scmp.eq.s32.totalorder %s33, 1
      %p250 = por %p248, %p249
      %p252 = scmp.ne.s32.totalorder %s237, %s251
      %p253 = scmp.eq.s32.totalorder %s33, 0
      %p254 = por %p252, %p253
      %s256 = sadd.s32 %s255, 1
      %p259 = scmp.eq.s32.totalorder %s27, 1
      %p260 = scmp.ne.s32.totalorder %s255, %s257
      %p261 = scmp.eq.s32.totalorder %s27, 0
      %p262 = por %p260, %p261
      %p263 = scmp.ne.s32.totalorder %s255, %s257
      %p264 = scmp.eq.s32.totalorder %s32, 1
      %p265 = por %p263, %p264
      %p266 = scmp.ne.s32.totalorder %s257, %s258
      %p267 = scmp.eq.s32.totalorder %s32, 0
      %p268 = por %p266, %p267
      %p269 = scmp.ne.s32.totalorder %s257, %s258
      %p270 = scmp.eq.s32.totalorder %s33, 1
      %p271 = por %p269, %p270
      %p273 = scmp.ne.s32.totalorder %s258, %s272
      %p274 = scmp.eq.s32.totalorder %s33, 0
      %p275 = por %p273, %p274
      %s277 = sadd.s32 %s276, 1
      %p280 = scmp.eq.s32.totalorder %s27, 1
      %p281 = scmp.ne.s32.totalorder %s276, %s278
      %p282 = scmp.eq.s32.totalorder %s27, 0
      %p283 = por %p281, %p282
      %p284 = scmp.ne.s32.totalorder %s276, %s278
      %p285 = scmp.eq.s32.totalorder %s32, 1
      %p286 = por %p284, %p285
      %p287 = scmp.ne.s32.totalorder %s278, %s279
      %p288 = scmp.eq.s32.totalorder %s32, 0
      %p289 = por %p287, %p288
      %p290 = scmp.ne.s32.totalorder %s278, %s279
      %p291 = scmp.eq.s32.totalorder %s33, 1
      %p292 = por %p290, %p291
      %p294 = scmp.ne.s32.totalorder %s279, %s293
      %p295 = scmp.eq.s32.totalorder %s33, 0
      %p296 = por %p294, %p295
      %s298 = sadd.s32 %s297, 1
      %p301 = scmp.eq.s32.totalorder %s27, 1
      %p302 = scmp.ne.s32.totalorder %s297, %s299
      %p303 = scmp.eq.s32.totalorder %s27, 0
      %p304 = por %p302, %p303
      %p305 = scmp.ne.s32.totalorder %s297, %s299
      %p306 = scmp.eq.s32.totalorder %s32, 1
      %p307 = por %p305, %p306
      %p308 = scmp.ne.s32.totalorder %s299, %s300
      %p309 = scmp.eq.s32.totalorder %s32, 0
      %p310 = por %p308, %p309
      %p311 = scmp.ne.s32.totalorder %s299, %s300
      %p312 = scmp.eq.s32.totalorder %s33, 1
      %p313 = por %p311, %p312
      %p315 = scmp.ne.s32.totalorder %s300, %s314
      %p316 = scmp.eq.s32.totalorder %s33, 0
      %p317 = por %p315, %p316
      %s319 = sadd.s32 %s318, 1
      %p322 = scmp.eq.s32.totalorder %s27, 1
      %p323 = scmp.ne.s32.totalorder %s318, %s320
      %p324 = scmp.eq.s32.totalorder %s27, 0
      %p325 = por %p323, %p324
      %p326 = scmp.ne.s32.totalorder %s318, %s320
      %p327 = scmp.eq.s32.totalorder %s32, 1
      %p328 = por %p326, %p327
      %p329 = scmp.ne.s32.totalorder %s320, %s321
      %p330 = scmp.eq.s32.totalorder %s32, 0
      %p331 = por %p329, %p330
      %p332 = scmp.ne.s32.totalorder %s320, %s321
      %p333 = scmp.eq.s32.totalorder %s33, 1
      %p334 = por %p332, %p333
      %p336 = scmp.ne.s32.totalorder %s321, %s335
      %p337 = scmp.eq.s32.totalorder %s33, 0
      %p338 = por %p336, %p337
      %s340 = sadd.s32 %s339, 1
      %p343 = scmp.eq.s32.totalorder %s27, 1
      %p344 = scmp.ne.s32.totalorder %s339, %s341
      %p345 = scmp.eq.s32.totalorder %s27, 0
      %p346 = por %p344, %p345
      %p347 = scmp.ne.s32.totalorder %s339, %s341
      %p348 = scmp.eq.s32.totalorder %s32, 1
      %p349 = por %p347, %p348
      %p350 = scmp.ne.s32.totalorder %s341, %s342
      %p351 = scmp.eq.s32.totalorder %s32, 0
      %p352 = por %p350, %p351
      %p353 = scmp.ne.s32.totalorder %s341, %s342
      %p354 = scmp.eq.s32.totalorder %s33, 1
      %p355 = por %p353, %p354
      %p357 = scmp.ne.s32.totalorder %s342, %s356
      %p358 = scmp.eq.s32.totalorder %s33, 0
      %p359 = por %p357, %p358
      %s361 = sadd.s32 %s360, 1
      %p364 = scmp.eq.s32.totalorder %s27, 1
      %p365 = scmp.ne.s32.totalorder %s360, %s362
      %p366 = scmp.eq.s32.totalorder %s27, 0
      %p367 = por %p365, %p366
      %p368 = scmp.ne.s32.totalorder %s360, %s362
      %p369 = scmp.eq.s32.totalorder %s32, 1
      %p370 = por %p368, %p369
      %p371 = scmp.ne.s32.totalorder %s362, %s363
      %p372 = scmp.eq.s32.totalorder %s32, 0
      %p373 = por %p371, %p372
      %p374 = scmp.ne.s32.totalorder %s362, %s363
      %p375 = scmp.eq.s32.totalorder %s33, 1
      %p376 = por %p374, %p375
      %p378 = scmp.ne.s32.totalorder %s363, %s377
      %p379 = scmp.eq.s32.totalorder %s33, 0
      %p380 = por %p378, %p379
      %s382 = sadd.s32 %s381, 1
      %p385 = scmp.eq.s32.totalorder %s27, 1
      %p386 = scmp.ne.s32.totalorder %s381, %s383
      %p387 = scmp.eq.s32.totalorder %s27, 0
      %p388 = por %p386, %p387
      %p389 = scmp.ne.s32.totalorder %s381, %s383
      %p390 = scmp.eq.s32.totalorder %s32, 1
      %p391 = por %p389, %p390
      %p392 = scmp.ne.s32.totalorder %s383, %s384
      %p393 = scmp.eq.s32.totalorder %s32, 0
      %p394 = por %p392, %p393
      %p395 = scmp.ne.s32.totalorder %s383, %s384
      %p396 = scmp.eq.s32.totalorder %s33, 1
      %p397 = por %p395, %p396
      %p399 = scmp.ne.s32.totalorder %s384, %s398
      %p400 = scmp.eq.s32.totalorder %s33, 0
      %p401 = por %p399, %p400
      %s403 = sadd.s32 %s402, 1
      %p406 = scmp.eq.s32.totalorder %s27, 1
      %p407 = scmp.ne.s32.totalorder %s402, %s404
      %p408 = scmp.eq.s32.totalorder %s27, 0
      %p409 = por %p407, %p408
      %p410 = scmp.ne.s32.totalorder %s402, %s404
      %p411 = scmp.eq.s32.totalorder %s32, 1
      %p412 = por %p410, %p411
      %p413 = scmp.ne.s32.totalorder %s404, %s405
      %p414 = scmp.eq.s32.totalorder %s32, 0
      %p415 = por %p413, %p414
      %p416 = scmp.ne.s32.totalorder %s404, %s405
      %p417 = scmp.eq.s32.totalorder %s33, 1
      %p418 = por %p416, %p417
      %p420 = scmp.ne.s32.totalorder %s405, %s419
      %p421 = scmp.eq.s32.totalorder %s33, 0
      %p422 = por %p420, %p421
      %s423 = ssub.s32 %s27, %s34
      %p424 = scmp.eq.s32.totalorder %s423, 0
      %s426 = sadd.s32 %s425, 1
      %s427 = scalar_select %p424, %s425, %s426
      %p430 = pneg %p424
      %p431 = scmp.eq.s32.totalorder %s27, 1
      %p432 = por %p430, %p431
      %p433 = scmp.ne.s32.totalorder %s425, %s428
      %p434 = scmp.eq.s32.totalorder %s27, 0
      %p435 = por %p433, %p434
      %p436 = scmp.ne.s32.totalorder %s425, %s428
      %p437 = scmp.eq.s32.totalorder %s32, 1
      %p438 = por %p436, %p437
      %p439 = scmp.ne.s32.totalorder %s428, %s429
      %p440 = scmp.eq.s32.totalorder %s32, 0
      %p441 = por %p439, %p440
      %p442 = scmp.ne.s32.totalorder %s428, %s429
      %p443 = scmp.eq.s32.totalorder %s33, 1
      %p444 = por %p442, %p443
      %p446 = scmp.ne.s32.totalorder %s429, %s445
      %p447 = scmp.eq.s32.totalorder %s33, 0
      %p448 = por %p446, %p447
      %p449 = scmp.le.s32.totalorder 1, %s27
      %p450 = scmp.lt.s32.totalorder %s27, 3
      %p451 = pnand %p449, %p450
      %p452 = pneg %p451
      // Predicated region
      $region9: #{policy_model_forward.1} parent=5 // pred_check
        _
      $region10: #{policy_model_forward.1} parent=5 // pred_check_branch
        %454 = sbr.rel (%p451) target = $region12
      $region11: #{policy_model_forward.1} parent=5 // pred_region
        %s455 = ssub.s32 %s27, 1
        // Predicated region
        $region13: #{policy_model_forward.1} parent=11 // pred_check
          %p456 = pneg %p100
        $region14: #{policy_model_forward.1} parent=11 // pred_check_branch
          %458 = sbr.rel (%p456) target = $region16
        $region15: #{policy_model_forward.1} parent=11 // pred_region
          _
        $region16: #{policy_model_forward.1} parent=11 // pred_fallthru
          _
        // Predicated region
        $region17: #{policy_model_forward.1} parent=11 // pred_check
          %p459 = pneg %p121
        $region18: #{policy_model_forward.1} parent=11 // pred_check_branch
          %461 = sbr.rel (%p459) target = $region20
        $region19: #{policy_model_forward.1} parent=11 // pred_region
          _
        $region20: #{policy_model_forward.1} parent=11 // pred_fallthru
          _
        // Predicated region
        $region21: #{policy_model_forward.1} parent=11 // pred_check
          %p462 = pneg %p142
        $region22: #{policy_model_forward.1} parent=11 // pred_check_branch
          %464 = sbr.rel (%p462) target = $region24
        $region23: #{policy_model_forward.1} parent=11 // pred_region
          _
        $region24: #{policy_model_forward.1} parent=11 // pred_fallthru
          _
        // Predicated region
        $region25: #{policy_model_forward.1} parent=11 // pred_check
          %p465 = pneg %p163
        $region26: #{policy_model_forward.1} parent=11 // pred_check_branch
          %467 = sbr.rel (%p465) target = $region28
        $region27: #{policy_model_forward.1} parent=11 // pred_region
          _
        $region28: #{policy_model_forward.1} parent=11 // pred_fallthru
          _
        // Predicated region
        $region29: #{policy_model_forward.1} parent=11 // pred_check
          %p468 = pneg %p184
        $region30: #{policy_model_forward.1} parent=11 // pred_check_branch
          %470 = sbr.rel (%p468) target = $region32
        $region31: #{policy_model_forward.1} parent=11 // pred_region
          _
        $region32: #{policy_model_forward.1} parent=11 // pred_fallthru
          _
        // Predicated region
        $region33: #{policy_model_forward.1} parent=11 // pred_check
          %p471 = pneg %p205
        $region34: #{policy_model_forward.1} parent=11 // pred_check_branch
          %473 = sbr.rel (%p471) target = $region36
        $region35: #{policy_model_forward.1} parent=11 // pred_region
          _
        $region36: #{policy_model_forward.1} parent=11 // pred_fallthru
          _
        // Predicated region
        $region37: #{policy_model_forward.1} parent=11 // pred_check
          %p474 = pneg %p226
        $region38: #{policy_model_forward.1} parent=11 // pred_check_branch
          %476 = sbr.rel (%p474) target = $region40
        $region39: #{policy_model_forward.1} parent=11 // pred_region
          _
        $region40: #{policy_model_forward.1} parent=11 // pred_fallthru
          _
        // Predicated region
        $region41: #{policy_model_forward.1} parent=11 // pred_check
          %p477 = pneg %p247
        $region42: #{policy_model_forward.1} parent=11 // pred_check_branch
          %479 = sbr.rel (%p477) target = $region44
        $region43: #{policy_model_forward.1} parent=11 // pred_region
          _
        $region44: #{policy_model_forward.1} parent=11 // pred_fallthru
          _
        // Predicated region
        $region45: #{policy_model_forward.1} parent=11 // pred_check
          %p480 = pneg %p268
        $region46: #{policy_model_forward.1} parent=11 // pred_check_branch
          %482 = sbr.rel (%p480) target = $region48
        $region47: #{policy_model_forward.1} parent=11 // pred_region
          _
        $region48: #{policy_model_forward.1} parent=11 // pred_fallthru
          _
        // Predicated region
        $region49: #{policy_model_forward.1} parent=11 // pred_check
          %p483 = pneg %p289
        $region50: #{policy_model_forward.1} parent=11 // pred_check_branch
          %485 = sbr.rel (%p483) target = $region52
        $region51: #{policy_model_forward.1} parent=11 // pred_region
          _
        $region52: #{policy_model_forward.1} parent=11 // pred_fallthru
          _
        // Predicated region
        $region53: #{policy_model_forward.1} parent=11 // pred_check
          %p486 = pneg %p310
        $region54: #{policy_model_forward.1} parent=11 // pred_check_branch
          %488 = sbr.rel (%p486) target = $region56
        $region55: #{policy_model_forward.1} parent=11 // pred_region
          _
        $region56: #{policy_model_forward.1} parent=11 // pred_fallthru
          _
        // Predicated region
        $region57: #{policy_model_forward.1} parent=11 // pred_check
          %p489 = pneg %p331
        $region58: #{policy_model_forward.1} parent=11 // pred_check_branch
          %491 = sbr.rel (%p489) target = $region60
        $region59: #{policy_model_forward.1} parent=11 // pred_region
          _
        $region60: #{policy_model_forward.1} parent=11 // pred_fallthru
          _
        // Predicated region
        $region61: #{policy_model_forward.1} parent=11 // pred_check
          %p492 = pneg %p352
        $region62: #{policy_model_forward.1} parent=11 // pred_check_branch
          %494 = sbr.rel (%p492) target = $region64
        $region63: #{policy_model_forward.1} parent=11 // pred_region
          _
        $region64: #{policy_model_forward.1} parent=11 // pred_fallthru
          _
        // Predicated region
        $region65: #{policy_model_forward.1} parent=11 // pred_check
          %p495 = pneg %p373
        $region66: #{policy_model_forward.1} parent=11 // pred_check_branch
          %497 = sbr.rel (%p495) target = $region68
        $region67: #{policy_model_forward.1} parent=11 // pred_region
          _
        $region68: #{policy_model_forward.1} parent=11 // pred_fallthru
          _
        // Predicated region
        $region69: #{policy_model_forward.1} parent=11 // pred_check
          %p498 = pneg %p394
        $region70: #{policy_model_forward.1} parent=11 // pred_check_branch
          %500 = sbr.rel (%p498) target = $region72
        $region71: #{policy_model_forward.1} parent=11 // pred_region
          _
        $region72: #{policy_model_forward.1} parent=11 // pred_fallthru
          _
        // Predicated region
        $region73: #{policy_model_forward.1} parent=11 // pred_check
          %p501 = pneg %p415
        $region74: #{policy_model_forward.1} parent=11 // pred_check_branch
          %503 = sbr.rel (%p501) target = $region76
        $region75: #{policy_model_forward.1} parent=11 // pred_region
          _
        $region76: #{policy_model_forward.1} parent=11 // pred_fallthru
          _
      $region12: #{policy_model_forward.1} parent=5 // pred_fallthru
        _
      %p504 = scmp.lt.s32.totalorder %s27, 2
      // Predicated region
      $region77: #{policy_model_forward.1} parent=5 // pred_check
        %p505 = pneg %p504
      $region78: #{policy_model_forward.1} parent=5 // pred_check_branch
        %507 = sbr.rel (%p505) target = $region80
      $region79: #{policy_model_forward.1} parent=5 // pred_region
        // Predicated region
        $region81: #{policy_model_forward.1} parent=79 // pred_check
          %p508 = pneg %p47
        $region82: #{policy_model_forward.1} parent=79 // pred_check_branch
          %510 = sbr.rel (%p508) target = $region84
        $region83: #{policy_model_forward.1} parent=79 // pred_region
          %p511 = scmp.lt.s32.totalorder %s27, 1
          %s512 = scalar_select %p511, %s27, 1
          %s513 = smul.addr %s512, 8
          %s514 = scalar_lea.vmem %s0, %s513
        $region84: #{policy_model_forward.1} parent=79 // pred_fallthru
          _
        // Predicated region
        $region85: #{policy_model_forward.1} parent=79 // pred_check
          %p515 = pneg %p73
        $region86: #{policy_model_forward.1} parent=79 // pred_check_branch
          %517 = sbr.rel (%p515) target = $region88
        $region87: #{policy_model_forward.1} parent=79 // pred_region
          %p518 = scmp.lt.s32.totalorder %s27, 1
          %s519 = scalar_select %p518, %s27, 1
          %s520 = scalar_lea.vmem %s1, %s519
        $region88: #{policy_model_forward.1} parent=79 // pred_fallthru
          _
      $region80: #{policy_model_forward.1} parent=5 // pred_fallthru
        _
      %p521 = scmp.le.s32.totalorder 1, %s27
      %p522 = scmp.lt.s32.totalorder %s27, 3
      %p523 = pnand %p521, %p522
      %p524 = pneg %p523
      // Predicated region
      $region89: #{policy_model_forward.1} parent=5 // pred_check
        _
      $region90: #{policy_model_forward.1} parent=5 // pred_check_branch
        %526 = sbr.rel (%p523) target = $region92
      $region91: #{policy_model_forward.1} parent=5 // pred_region
        %s527 = ssub.s32 %s27, 1
        %p528 = scmp.lt.s32.totalorder %s32, 1
        %s529 = scalar_select %p528, %s32, 1
        %s530 = smul.addr %s529, 8
        %s531 = scalar_lea.vmem %s0, %s530
        %p532 = pneg %p53
        %p533 = pneg %p50
        %p534 = scmp.lt.s32.totalorder %s32, 1
        %s535 = scalar_select %p534, %s32, 1
        %s536 = scalar_lea.vmem %s1, %s535
        %p537 = pneg %p79
        %p538 = pneg %p76
        %p539 = pneg %p100
        %p540 = pneg %p97
        %p541 = pneg %p121
        %p542 = pneg %p118
        %p543 = pneg %p142
        %p544 = pneg %p139
        %p545 = pneg %p163
        %p546 = pneg %p160
        %p547 = pneg %p184
        %p548 = pneg %p181
        %p549 = pneg %p205
        %p550 = pneg %p202
        %p551 = pneg %p226
        %p552 = pneg %p223
        %p553 = pneg %p247
        %p554 = pneg %p244
        %p555 = pneg %p268
        %p556 = pneg %p265
        %p557 = pneg %p289
        %p558 = pneg %p286
        %p559 = pneg %p310
        %p560 = pneg %p307
        %p561 = pneg %p331
        %p562 = pneg %p328
        %p563 = pneg %p352
        %p564 = pneg %p349
        %p565 = pneg %p373
        %p566 = pneg %p370
        %p567 = pneg %p394
        %p568 = pneg %p391
        %p569 = pneg %p415
        %p570 = pneg %p412
        %p571 = pneg %p441
        %p572 = pneg %p438
        %s573 = sand.u32 %s428, 1
        %s574 = scalar_lea.sflag [#allocation3], %s573
        %s575 = sand.u32 %s428, 1
        %s576 = smul.addr %s575, 8
        %s577 = scalar_lea.vmem [#allocation2], %s576
        %p578 = scmp.lt.s32.totalorder %s32, 1
        %s579 = scalar_select %p578, %s32, 1
        %s580 = smul.addr %s579, 8
        %s581 = scalar_lea.vmem %s0, %s580
        %p582 = scmp.lt.s32.totalorder %s32, 1
        %s583 = scalar_select %p582, %s32, 1
        %s584 = scalar_lea.vmem %s1, %s583
        %v585 = vld [vmem:[%s2] sm:$0xff]
        %v586 = vld [vmem:[%s2 + $0x8] sm:$0xff]
        %v587 = vld [vmem:[%s2 + $0x10] sm:$0xff]
        %v588 = vld [vmem:[%s2 + $0x18] sm:$0xff]
        %v589 = vld [vmem:[%s2 + $0x20] sm:$0xff]
        %v590 = vld [vmem:[%s2 + $0x28] sm:$0xff]
        %v591 = vld [vmem:[%s2 + $0x30] sm:$0xff]
        %v592 = vld [vmem:[%s2 + $0x38] sm:$0xff]
        %v593 = vld [vmem:[%s2 + $0x40] sm:$0xff]
        %v594 = vld [vmem:[%s2 + $0x48] sm:$0xff]
        %v595 = vld [vmem:[%s2 + $0x50] sm:$0xff]
        %v596 = vld [vmem:[%s2 + $0x58] sm:$0xff]
        %v597 = vld [vmem:[%s2 + $0x60] sm:$0xff]
        %v598 = vld [vmem:[%s2 + $0x68] sm:$0xff]
        %v599 = vld [vmem:[%s2 + $0x70] sm:$0xff]
        %v600 = vld [vmem:[%s2 + $0x78] sm:$0xff]
        %v601 = vld [vmem:[%s581] sm:$0xff]
        %v602 = vlaneseq
        %v603 = vand.u32 %v602, 127
        %604 = vset.pattern.permute.xlu0 0
        %605 = vperm.xlu0 %604, %v601
        %v606 = vpop.permute.xlu0 %605
        %vm607 = vcmp.eq.s32.totalorder %v603, %v606
        %v608 = vsel %vm607, 1, 0
        %v609 = vcvt.s32.f32 %v608
        %v610 = vld [vmem:[%s3] sm:$0xff]
        %611 = vmatprep.subr.mxu0 0.0
        %612 = vmatpush1.msra.mxu0 %v585
        %613 = vmatprep.subr.mxu0 0.0
        %614 = vmatpush1.msra.mxu0 %v586
        %615 = vmatprep.subr.mxu0 0.0
        %616 = vmatpush1.msra.mxu0 %v587
        %617 = vmatprep.subr.mxu0 0.0
        %618 = vmatpush1.msra.mxu0 %v588
        %619 = vmatprep.subr.mxu0 0.0
        %620 = vmatpush1.msra.mxu0 %v589
        %621 = vmatprep.subr.mxu0 0.0
        %622 = vmatpush1.msra.mxu0 %v590
        %623 = vmatprep.subr.mxu0 0.0
        %624 = vmatpush1.msra.mxu0 %v591
        %625 = vmatprep.subr.mxu0 0.0
        %626 = vmatpush1.msra.mxu0 %v592
        %627 = vmatprep.subr.mxu0 0.0
        %628 = vmatpush1.msra.mxu0 %v593
        %629 = vmatprep.subr.mxu0 0.0
        %630 = vmatpush1.msra.mxu0 %v594
        %631 = vmatprep.subr.mxu0 0.0
        %632 = vmatpush1.msra.mxu0 %v595
        %633 = vmatprep.subr.mxu0 0.0
        %634 = vmatpush1.msra.mxu0 %v596
        %635 = vmatprep.subr.mxu0 0.0
        %636 = vmatpush1.msra.mxu0 %v597
        %637 = vmatprep.subr.mxu0 0.0
        %638 = vmatpush1.msra.mxu0 %v598
        %639 = vmatprep.subr.mxu0 0.0
        %640 = vmatpush1.msra.mxu0 %v599
        %641 = vmatprep.subr.mxu0 0.0
        %642 = vmatpush1.msra.mxu0 %v600
        %643 = vmatprep.subr.mxu0 0.0
        %644 = vmatpush1.msra.mxu0 0.0
        %645 = vmatprep.subr.mxu0 0.0
        %646 = vmatpush1.msra.mxu0 0.0
        %647 = vmatprep.subr.mxu0 0.0
        %648 = vmatpush1.msra.mxu0 0.0
        %649 = vmatprep.subr.mxu0 0.0
        %650 = vmatpush1.msra.mxu0 0.0
        %651 = vmatprep.subr.mxu0 0.0
        %652 = vmatpush1.msra.mxu0 0.0
        %653 = vmatprep.subr.mxu0 0.0
        %654 = vmatpush1.msra.mxu0 0.0
        %655 = vmatprep.subr.mxu0 0.0
        %656 = vmatpush1.msra.mxu0 0.0
        %657 = vmatprep.subr.mxu0 0.0
        %658 = vmatpush1.msra.mxu0 0.0
        %659 = vmatprep.subr.mxu0 0.0
        %660 = vmatpush1.msra.mxu0 0.0
        %661 = vmatprep.subr.mxu0 0.0
        %662 = vmatpush1.msra.mxu0 0.0
        %663 = vmatprep.subr.mxu0 0.0
        %664 = vmatpush1.msra.mxu0 0.0
        %665 = vmatprep.subr.mxu0 0.0
        %666 = vmatpush1.msra.mxu0 0.0
        %667 = vmatprep.subr.mxu0 0.0
        %668 = vmatpush1.msra.mxu0 0.0
        %669 = vmatprep.subr.mxu0 0.0
        %670 = vmatpush1.msra.mxu0 0.0
        %671 = vmatprep.subr.mxu0 0.0
        %672 = vmatpush1.msra.mxu0 0.0
        %673 = vmatprep.subr.mxu0 0.0
        %674 = vmatpush1.msra.mxu0 0.0
        %675 = vmatprep.mubr.f32.mxu0 0.0
        %676 = vmatmul.mubr.f32.gmra.mrb[0].mxu0 %v609
        %v677 = vpop.f32.mrb[0].mxu0
        %v678 = vadd.f32 %v610, %v677
        %v679 = vpop.f32.mrb[0].mxu0
        %680 = vdwg.mxu0
        %v681 = vlaneseq
        %v682 = vshrl.u32 %v681, 7
        %vm683 = vcmp.le.s32.totalorder %v603, %v682
        %v684 = vld [vmem:[%s584] sm:$0x1]
        %vm685 = vcmp.gt.f32.partialorder %v684, 0.5
        %v686 = vsel %vm685, 1, 0
        %v687 = vlaneseq
        %v688 = vshrl.u32 %v687, 7
        %v689 = vsub.s32 0, %v688
        %v690 = vrot.slane %v686, %v689
        %vm691 = vcmp.eq.s32.totalorder %v690, 1
        %vm692 = vmand %vm683, %vm691
        %v693 = vld [vmem:[%s4] sm:$0x1]
        %v694 = vld [vmem:[%s5] sm:$0x1]
        %vm695 = vcmask 261120
        %v696 = vsel %vm695, %v678, 0.0
        %697 = vadd.xlane.f32.xlu0 %v696
        %v698 = vpop.xlane.xlu0 %697
        %v699 = vrcp.pop 32.0
        %v700 = vmul.f32 %v698, %v699
        %v701 = vsub.f32 %v678, %v700
        %v702 = vmul.f32 %v701, %v701
        %v703 = vsel %vm695, %v702, 0.0
        %704 = vadd.xlane.f32.xlu0 %v703
        %v705 = vpop.xlane.xlu0 %704
        %v706 = vmul.f32 %v705, %v699
        %v707 = vadd.f32 %v706, 1e-05
        %v708 = vrsqrt.pop %v707
        %v709 = vmul.f32 %v701, %v708
        %v711 = vlaneseq
        %v712 = vshrl.u32 %v711, 7
        %v713 = vsub.s32 0, %v712
        %v714 = vrot.slane %v693, %v713
        %v716 = vmul.f32 %v709, %v714
        %v718 = vlaneseq
        %v719 = vshrl.u32 %v718, 7
        %v720 = vsub.s32 0, %v719
        %v721 = vrot.slane %v694, %v720
        %v723 = vadd.f32 %v716, %v721
        %v724 = vld [vmem:[%s6] sm:$0xff]
        %v725 = vld [vmem:[%s6 + $0x8] sm:$0xff]
        %v726 = vld [vmem:[%s6 + $0x10] sm:$0xff]
        %v727 = vld [vmem:[%s6 + $0x18] sm:$0xff]
        %v728 = vld [vmem:[%s7] sm:$0x1]
        %v730 = vlaneseq
        %v731 = vshrl.u32 %v730, 7
        %v732 = vsub.s32 0, %v731
        %v733 = vrot.slane %v728, %v732
        %v736 = vsel %vm695, %v723, 0
        %738 = vmatprep.subr.mxu0 0.0
        %739 = vmatpush1.msra.mxu0 %v724
        %740 = vmatprep.subr.mxu0 0.0
        %741 = vmatpush1.msra.mxu0 %v725
        %742 = vmatprep.subr.mxu0 0.0
        %743 = vmatpush1.msra.mxu0 %v726
        %744 = vmatprep.subr.mxu0 0.0
        %745 = vmatpush1.msra.mxu0 %v727
        %746 = vmatprep.subr.mxu0 0.0
        %747 = vmatpush1.msra.mxu0 0.0
        %748 = vmatprep.subr.mxu0 0.0
        %749 = vmatpush1.msra.mxu0 0.0
        %750 = vmatprep.subr.mxu0 0.0
        %751 = vmatpush1.msra.mxu0 0.0
        %752 = vmatprep.subr.mxu0 0.0
        %753 = vmatpush1.msra.mxu0 0.0
        %754 = vmatprep.subr.mxu0 0.0
        %755 = vmatpush1.msra.mxu0 0.0
        %756 = vmatprep.subr.mxu0 0.0
        %757 = vmatpush1.msra.mxu0 0.0
        %758 = vmatprep.subr.mxu0 0.0
        %759 = vmatpush1.msra.mxu0 0.0
        %760 = vmatprep.subr.mxu0 0.0
        %761 = vmatpush1.msra.mxu0 0.0
        %762 = vmatprep.subr.mxu0 0.0
        %763 = vmatpush1.msra.mxu0 0.0
        %764 = vmatprep.subr.mxu0 0.0
        %765 = vmatpush1.msra.mxu0 0.0
        %766 = vmatprep.subr.mxu0 0.0
        %767 = vmatpush1.msra.mxu0 0.0
        %768 = vmatprep.subr.mxu0 0.0
        %769 = vmatpush1.msra.mxu0 0.0
        %770 = vmatprep.subr.mxu0 0.0
        %771 = vmatpush1.msra.mxu0 0.0
        %772 = vmatprep.subr.mxu0 0.0
        %773 = vmatpush1.msra.mxu0 0.0
        %774 = vmatprep.subr.mxu0 0.0
        %775 = vmatpush1.msra.mxu0 0.0
        %776 = vmatprep.subr.mxu0 0.0
        %777 = vmatpush1.msra.mxu0 0.0
        %778 = vmatprep.subr.mxu0 0.0
        %779 = vmatpush1.msra.mxu0 0.0
        %780 = vmatprep.subr.mxu0 0.0
        %781 = vmatpush1.msra.mxu0 0.0
        %782 = vmatprep.subr.mxu0 0.0
        %783 = vmatpush1.msra.mxu0 0.0
        %784 = vmatprep.subr.mxu0 0.0
        %785 = vmatpush1.msra.mxu0 0.0
        %786 = vmatprep.subr.mxu0 0.0
        %787 = vmatpush1.msra.mxu0 0.0
        %788 = vmatprep.subr.mxu0 0.0
        %789 = vmatpush1.msra.mxu0 0.0
        %790 = vmatprep.subr.mxu0 0.0
        %791 = vmatpush1.msra.mxu0 0.0
        %792 = vmatprep.subr.mxu0 0.0
        %793 = vmatpush1.msra.mxu0 0.0
        %794 = vmatprep.subr.mxu0 0.0
        %795 = vmatpush1.msra.mxu0 0.0
        %796 = vmatprep.subr.mxu0 0.0
        %797 = vmatpush1.msra.mxu0 0.0
        %798 = vmatprep.subr.mxu0 0.0
        %799 = vmatpush1.msra.mxu0 0.0
        %800 = vmatprep.subr.mxu0 0.0
        %801 = vmatpush1.msra.mxu0 0.0
        %802 = vmatprep.mubr.f32.mxu0 0.0
        %803 = vmatmul.mubr.f32.gmra.mrb[0].mxu0 %v736
        %v804 = vpop.f32.mrb[0].mxu0
        %v805 = vadd.f32 %v733, %v804
        %v806 = vpop.f32.mrb[0].mxu0
        %807 = vdwg.mxu0
        %v808 = vmul.f32 %v805, 0.25
        %810 = vrot.lane.b32.xlu0 %v805, 96
        %v811 = vpop.permute.xlu0 %810
        %vm812 = vcmask 130048
        %v814 = vsel %vm812, %v808, 0
        %v816 = vsel %vm812, %v811, 0
        %818 = vmatprep.subr.mxu0 0.0
        %819 = vmatpush1.xpose.msra.mxu0 %v816
        %820 = vmatprep.subr.mxu0 0.0
        %821 = vmatpush1.xpose.msra.mxu0 0.0
        %822 = vmatprep.subr.mxu0 0.0
        %823 = vmatpush1.xpose.msra.mxu0 0.0
        %824 = vmatprep.subr.mxu0 0.0
        %825 = vmatpush1.xpose.msra.mxu0 0.0
        %826 = vmatprep.subr.mxu0 0.0
        %827 = vmatpush1.xpose.msra.mxu0 0.0
        %828 = vmatprep.subr.mxu0 0.0
        %829 = vmatpush1.xpose.msra.mxu0 0.0
        %830 = vmatprep.subr.mxu0 0.0
        %831 = vmatpush1.xpose.msra.mxu0 0.0
        %832 = vmatprep.subr.mxu0 0.0
        %833 = vmatpush1.xpose.msra.mxu0 0.0
        %834 = vmatprep.subr.mxu0 0.0
        %835 = vmatpush1.xpose.msra.mxu0 0.0
        %836 = vmatprep.subr.mxu0 0.0
        %837 = vmatpush1.xpose.msra.mxu0 0.0
        %838 = vmatprep.subr.mxu0 0.0
        %839 = vmatpush1.xpose.msra.mxu0 0.0
        %840 = vmatprep.subr.mxu0 0.0
        %841 = vmatpush1.xpose.msra.mxu0 0.0
        %842 = vmatprep.subr.mxu0 0.0
        %843 = vmatpush1.xpose.msra.mxu0 0.0
        %844 = vmatprep.subr.mxu0 0.0
        %845 = vmatpush1.xpose.msra.mxu0 0.0
        %846 = vmatprep.subr.mxu0 0.0
        %847 = vmatpush1.xpose.msra.mxu0 0.0
        %848 = vmatprep.subr.mxu0 0.0
        %849 = vmatpush1.xpose.msra.mxu0 0.0
        %850 = vmatprep.subr.mxu0 0.0
        %851 = vmatpush1.xpose.msra.mxu0 0.0
        %852 = vmatprep.subr.mxu0 0.0
        %853 = vmatpush1.xpose.msra.mxu0 0.0
        %854 = vmatprep.subr.mxu0 0.0
        %855 = vmatpush1.xpose.msra.mxu0 0.0
        %856 = vmatprep.subr.mxu0 0.0
        %857 = vmatpush1.xpose.msra.mxu0 0.0
        %858 = vmatprep.subr.mxu0 0.0
        %859 = vmatpush1.xpose.msra.mxu0 0.0
        %860 = vmatprep.subr.mxu0 0.0
        %861 = vmatpush1.xpose.msra.mxu0 0.0
        %862 = vmatprep.subr.mxu0 0.0
        %863 = vmatpush1.xpose.msra.mxu0 0.0
        %864 = vmatprep.subr.mxu0 0.0
        %865 = vmatpush1.xpose.msra.mxu0 0.0
        %866 = vmatprep.subr.mxu0 0.0
        %867 = vmatpush1.xpose.msra.mxu0 0.0
        %868 = vmatprep.subr.mxu0 0.0
        %869 = vmatpush1.xpose.msra.mxu0 0.0
        %870 = vmatprep.subr.mxu0 0.0
        %871 = vmatpush1.xpose.msra.mxu0 0.0
        %872 = vmatprep.subr.mxu0 0.0
        %873 = vmatpush1.xpose.msra.mxu0 0.0
        %874 = vmatprep.subr.mxu0 0.0
        %875 = vmatpush1.xpose.msra.mxu0 0.0
        %876 = vmatprep.subr.mxu0 0.0
        %877 = vmatpush1.xpose.msra.mxu0 0.0
        %878 = vmatprep.subr.mxu0 0.0
        %879 = vmatpush1.xpose.msra.mxu0 0.0
        %880 = vmatprep.subr.mxu0 0.0
        %881 = vmatpush1.xpose.msra.mxu0 0.0
        %882 = vmatprep.mubr.f32.mxu0 0.0
        %883 = vmatmul.mubr.f32.gmra.mrb[0].mxu0 %v814
        %v884 = vpop.f32.mrb[0].mxu0
        %v885 = vadd.f32 0.0, %v884
        %v886 = vpop.f32.mrb[0].mxu0
        %887 = vdwg.mxu0
        %v888 = vsel %vm692, %v885, -1e+30
        %vm889 = vcmask 64512
        %v890 = vsel %vm889, %v888, -inf
        %891 = vmax.xlane.f32.xlu0 %v890
        %v892 = vpop.xlane.xlu0 %891
        %v893 = vsub.f32 %v888, %v892
        %v894 = vmul.f32 %v893, 1.442695
        %v895 = vpow.pop %v894
        %v896 = vsel %vm889, %v895, 0.0
        %897 = vadd.xlane.f32.xlu0 %v896
        %v898 = vpop.xlane.xlu0 %897
        %v899 = vrcp.pop %v898
        %v900 = vmul.f32 %v895, %v899
        %901 = vrot.lane.b32.xlu0 %v805, 64
        %v902 = vpop.permute.xlu0 %901
        %v905 = vsel %vm889, %v900, 0
        %907 = vmatprep.subr.mxu0 0.0
        %908 = vmatpush1.msra.mxu0 %v902
        %909 = vmatprep.subr.mxu0 0.0
        %910 = vmatpush1.msra.mxu0 0.0
        %911 = vmatprep.subr.mxu0 0.0
        %912 = vmatpush1.msra.mxu0 0.0
        %913 = vmatprep.subr.mxu0 0.0
        %914 = vmatpush1.msra.mxu0 0.0
        %915 = vmatprep.subr.mxu0 0.0
        %916 = vmatpush1.msra.mxu0 0.0
        %917 = vmatprep.subr.mxu0 0.0
        %918 = vmatpush1.msra.mxu0 0.0
        %919 = vmatprep.subr.mxu0 0.0
        %920 = vmatpush1.msra.mxu0 0.0
        %921 = vmatprep.subr.mxu0 0.0
        %922 = vmatpush1.msra.mxu0 0.0
        %923 = vmatprep.subr.mxu0 0.0
        %924 = vmatpush1.msra.mxu0 0.0
        %925 = vmatprep.subr.mxu0 0.0
        %926 = vmatpush1.msra.mxu0 0.0
        %927 = vmatprep.subr.mxu0 0.0
        %928 = vmatpush1.msra.mxu0 0.0
        %929 = vmatprep.subr.mxu0 0.0
        %930 = vmatpush1.msra.mxu0 0.0
        %931 = vmatprep.subr.mxu0 0.0
        %932 = vmatpush1.msra.mxu0 0.0
        %933 = vmatprep.subr.mxu0 0.0
        %934 = vmatpush1.msra.mxu0 0.0
        %935 = vmatprep.subr.mxu0 0.0
        %936 = vmatpush1.msra.mxu0 0.0
        %937 = vmatprep.subr.mxu0 0.0
        %938 = vmatpush1.msra.mxu0 0.0
        %939 = vmatprep.subr.mxu0 0.0
        %940 = vmatpush1.msra.mxu0 0.0
        %941 = vmatprep.subr.mxu0 0.0
        %942 = vmatpush1.msra.mxu0 0.0
        %943 = vmatprep.subr.mxu0 0.0
        %944 = vmatpush1.msra.mxu0 0.0
        %945 = vmatprep.subr.mxu0 0.0
        %946 = vmatpush1.msra.mxu0 0.0
        %947 = vmatprep.subr.mxu0 0.0
        %948 = vmatpush1.msra.mxu0 0.0
        %949 = vmatprep.subr.mxu0 0.0
        %950 = vmatpush1.msra.mxu0 0.0
        %951 = vmatprep.subr.mxu0 0.0
        %952 = vmatpush1.msra.mxu0 0.0
        %953 = vmatprep.subr.mxu0 0.0
        %954 = vmatpush1.msra.mxu0 0.0
        %955 = vmatprep.subr.mxu0 0.0
        %956 = vmatpush1.msra.mxu0 0.0
        %957 = vmatprep.subr.mxu0 0.0
        %958 = vmatpush1.msra.mxu0 0.0
        %959 = vmatprep.subr.mxu0 0.0
        %960 = vmatpush1.msra.mxu0 0.0
        %961 = vmatprep.subr.mxu0 0.0
        %962 = vmatpush1.msra.mxu0 0.0
        %963 = vmatprep.subr.mxu0 0.0
        %964 = vmatpush1.msra.mxu0 0.0
        %965 = vmatprep.subr.mxu0 0.0
        %966 = vmatpush1.msra.mxu0 0.0
        %967 = vmatprep.subr.mxu0 0.0
        %968 = vmatpush1.msra.mxu0 0.0
        %969 = vmatprep.subr.mxu0 0.0
        %970 = vmatpush1.msra.mxu0 0.0
        %971 = vmatprep.mubr.f32.mxu0 0.0
        %972 = vmatmul.mubr.f32.gmra.mrb[0].mxu0 %v905
        %v973 = vpop.f32.mrb[0].mxu0
        %v974 = vadd.f32 0.0, %v973
        %v975 = vpop.f32.mrb[0].mxu0
        %976 = vdwg.mxu0
        %977 = vrot.lane.b32.xlu0 %v808, 112
        %v978 = vpop.permute.xlu0 %977
        %979 = vrot.lane.b32.xlu0 %v805, 80
        %v980 = vpop.permute.xlu0 %979
        %v981 = vsel %vm812, %v978, 0
        %v983 = vsel %vm812, %v980, 0
        %985 = vmatprep.subr.mxu0 0.0
        %986 = vmatpush1.xpose.msra.mxu0 %v983
        %987 = vmatprep.subr.mxu0 0.0
        %988 = vmatpush1.xpose.msra.mxu0 0.0
        %989 = vmatprep.subr.mxu0 0.0
        %990 = vmatpush1.xpose.msra.mxu0 0.0
        %991 = vmatprep.subr.mxu0 0.0
        %992 = vmatpush1.xpose.msra.mxu0 0.0
        %993 = vmatprep.subr.mxu0 0.0
        %994 = vmatpush1.xpose.msra.mxu0 0.0
        %995 = vmatprep.subr.mxu0 0.0
        %996 = vmatpush1.xpose.msra.mxu0 0.0
        %997 = vmatprep.subr.mxu0 0.0
        %998 = vmatpush1.xpose.msra.mxu0 0.0
        %999 = vmatprep.subr.mxu0 0.0
        %1000 = vmatpush1.xpose.msra.mxu0 0.0
        %1001 = vmatprep.subr.mxu0 0.0
        %1002 = vmatpush1.xpose.msra.mxu0 0.0
        %1003 = vmatprep.subr.mxu0 0.0
        %1004 = vmatpush1.xpose.msra.mxu0 0.0
        %1005 = vmatprep.subr.mxu0 0.0
        %1006 = vmatpush1.xpose.msra.mxu0 0.0
        %1007 = vmatprep.subr.mxu0 0.0
        %1008 = vmatpush1.xpose.msra.mxu0 0.0
        %1009 = vmatprep.subr.mxu0 0.0
        %1010 = vmatpush1.xpose.msra.mxu0 0.0
        %1011 = vmatprep.subr.mxu0 0.0
        %1012 = vmatpush1.xpose.msra.mxu0 0.0
        %1013 = vmatprep.subr.mxu0 0.0
        %1014 = vmatpush1.xpose.msra.mxu0 0.0
        %1015 = vmatprep.subr.mxu0 0.0
        %1016 = vmatpush1.xpose.msra.mxu0 0.0
        %1017 = vmatprep.subr.mxu0 0.0
        %1018 = vmatpush1.xpose.msra.mxu0 0.0
        %1019 = vmatprep.subr.mxu0 0.0
        %1020 = vmatpush1.xpose.msra.mxu0 0.0
        %1021 = vmatprep.subr.mxu0 0.0
        %1022 = vmatpush1.xpose.msra.mxu0 0.0
        %1023 = vmatprep.subr.mxu0 0.0
        %1024 = vmatpush1.xpose.msra.mxu0 0.0
        %1025 = vmatprep.subr.mxu0 0.0
        %1026 = vmatpush1.xpose.msra.mxu0 0.0
        %1027 = vmatprep.subr.mxu0 0.0
        %1028 = vmatpush1.xpose.msra.mxu0 0.0
        %1029 = vmatprep.subr.mxu0 0.0
        %1030 = vmatpush1.xpose.msra.mxu0 0.0
        %1031 = vmatprep.subr.mxu0 0.0
        %1032 = vmatpush1.xpose.msra.mxu0 0.0
        %1033 = vmatprep.subr.mxu0 0.0
        %1034 = vmatpush1.xpose.msra.mxu0 0.0
        %1035 = vmatprep.subr.mxu0 0.0
        %1036 = vmatpush1.xpose.msra.mxu0 0.0
        %1037 = vmatprep.subr.mxu0 0.0
        %1038 = vmatpush1.xpose.msra.mxu0 0.0
        %1039 = vmatprep.subr.mxu0 0.0
        %1040 = vmatpush1.xpose.msra.mxu0 0.0
        %1041 = vmatprep.subr.mxu0 0.0
        %1042 = vmatpush1.xpose.msra.mxu0 0.0
        %1043 = vmatprep.subr.mxu0 0.0
        %1044 = vmatpush1.xpose.msra.mxu0 0.0
        %1045 = vmatprep.subr.mxu0 0.0
        %1046 = vmatpush1.xpose.msra.mxu0 0.0
        %1047 = vmatprep.subr.mxu0 0.0
        %1048 = vmatpush1.xpose.msra.mxu0 0.0
        %1049 = vmatprep.mubr.f32.mxu0 0.0
        %1050 = vmatmul.mubr.f32.gmra.mrb[0].mxu0 %v981
        %v1051 = vpop.f32.mrb[0].mxu0
        %v1052 = vadd.f32 0.0, %v1051
        %v1053 = vpop.f32.mrb[0].mxu0
        %1054 = vdwg.mxu0
        %v1055 = vsel %vm692, %v1052, -1e+30
        %v1056 = vsel %vm889, %v1055, -inf
        %1057 = vmax.xlane.f32.xlu0 %v1056
        %v1058 = vpop.xlane.xlu0 %1057
        %v1059 = vsub.f32 %v1055, %v1058
        %v1060 = vmul.f32 %v1059, 1.442695
        %v1061 = vpow.pop %v1060
        %v1062 = vsel %vm889, %v1061, 0.0
        %1063 = vadd.xlane.f32.xlu0 %v1062
        %v1064 = vpop.xlane.xlu0 %1063
        %v1065 = vrcp.pop %v1064
        %v1066 = vmul.f32 %v1061, %v1065
        %1067 = vrot.lane.b32.xlu0 %v805, 48
        %v1068 = vpop.permute.xlu0 %1067
        %v1071 = vsel %vm889, %v1066, 0
        %1073 = vmatprep.subr.mxu0 0.0
        %1074 = vmatpush1.msra.mxu0 %v1068
        %1075 = vmatprep.subr.mxu0 0.0
        %1076 = vmatpush1.msra.mxu0 0.0
        %1077 = vmatprep.subr.mxu0 0.0
        %1078 = vmatpush1.msra.mxu0 0.0
        %1079 = vmatprep.subr.mxu0 0.0
        %1080 = vmatpush1.msra.mxu0 0.0
        %1081 = vmatprep.subr.mxu0 0.0
        %1082 = vmatpush1.msra.mxu0 0.0
        %1083 = vmatprep.subr.mxu0 0.0
        %1084 = vmatpush1.msra.mxu0 0.0
        %1085 = vmatprep.subr.mxu0 0.0
        %1086 = vmatpush1.msra.mxu0 0.0
        %1087 = vmatprep.subr.mxu0 0.0
        %1088 = vmatpush1.msra.mxu0 0.0
        %1089 = vmatprep.subr.mxu0 0.0
        %1090 = vmatpush1.msra.mxu0 0.0
        %1091 = vmatprep.subr.mxu0 0.0
        %1092 = vmatpush1.msra.mxu0 0.0
        %1093 = vmatprep.subr.mxu0 0.0
        %1094 = vmatpush1.msra.mxu0 0.0
        %1095 = vmatprep.subr.mxu0 0.0
        %1096 = vmatpush1.msra.mxu0 0.0
        %1097 = vmatprep.subr.mxu0 0.0
        %1098 = vmatpush1.msra.mxu0 0.0
        %1099 = vmatprep.subr.mxu0 0.0
        %1100 = vmatpush1.msra.mxu0 0.0
        %1101 = vmatprep.subr.mxu0 0.0
        %1102 = vmatpush1.msra.mxu0 0.0
        %1103 = vmatprep.subr.mxu0 0.0
        %1104 = vmatpush1.msra.mxu0 0.0
        %1105 = vmatprep.subr.mxu0 0.0
        %1106 = vmatpush1.msra.mxu0 0.0
        %1107 = vmatprep.subr.mxu0 0.0
        %1108 = vmatpush1.msra.mxu0 0.0
        %1109 = vmatprep.subr.mxu0 0.0
        %1110 = vmatpush1.msra.mxu0 0.0
        %1111 = vmatprep.subr.mxu0 0.0
        %1112 = vmatpush1.msra.mxu0 0.0
        %1113 = vmatprep.subr.mxu0 0.0
        %1114 = vmatpush1.msra.mxu0 0.0
        %1115 = vmatprep.subr.mxu0 0.0
        %1116 = vmatpush1.msra.mxu0 0.0
        %1117 = vmatprep.subr.mxu0 0.0
        %1118 = vmatpush1.msra.mxu0 0.0
        %1119 = vmatprep.subr.mxu0 0.0
        %1120 = vmatpush1.msra.mxu0 0.0
        %1121 = vmatprep.subr.mxu0 0.0
        %1122 = vmatpush1.msra.mxu0 0.0
        %1123 = vmatprep.subr.mxu0 0.0
        %1124 = vmatpush1.msra.mxu0 0.0
        %1125 = vmatprep.subr.mxu0 0.0
        %1126 = vmatpush1.msra.mxu0 0.0
        %1127 = vmatprep.subr.mxu0 0.0
        %1128 = vmatpush1.msra.mxu0 0.0
        %1129 = vmatprep.subr.mxu0 0.0
        %1130 = vmatpush1.msra.mxu0 0.0
        %1131 = vmatprep.subr.mxu0 0.0
        %1132 = vmatpush1.msra.mxu0 0.0
        %1133 = vmatprep.subr.mxu0 0.0
        %1134 = vmatpush1.msra.mxu0 0.0
        %1135 = vmatprep.subr.mxu0 0.0
        %1136 = vmatpush1.msra.mxu0 0.0
        %1137 = vmatprep.mubr.f32.mxu0 0.0
        %1138 = vmatmul.mubr.f32.gmra.mrb[0].mxu0 %v1071
        %v1139 = vpop.f32.mrb[0].mxu0
        %v1140 = vadd.f32 0.0, %v1139
        %v1141 = vpop.f32.mrb[0].mxu0
        %1142 = vdwg.mxu0
        %1144 = vrot.lane.b32.xlu0 %v1140, 16
        %v1145 = vpop.permute.xlu0 %1144
        %v1147 = vsel %vm812, %v974, %v1145
        %v1148 = vld [vmem:[%s8] sm:$0xff]
        %v1149 = vld [vmem:[%s8 + $0x8] sm:$0xff]
        %v1150 = vld [vmem:[%s8 + $0x10] sm:$0xff]
        %v1151 = vld [vmem:[%s8 + $0x18] sm:$0xff]
        %v1152 = vld [vmem:[%s9] sm:$0x1]
        %v1154 = vlaneseq
        %v1155 = vshrl.u32 %v1154, 7
        %v1156 = vsub.s32 0, %v1155
        %v1157 = vrot.slane %v1152, %v1156
        %v1160 = vsel %vm695, %v1147, 0
        %1162 = vmatprep.subr.mxu0 0.0
        %1163 = vmatpush1.msra.mxu0 %v1148
        %1164 = vmatprep.subr.mxu0 0.0
        %1165 = vmatpush1.msra.mxu0 %v1149
        %1166 = vmatprep.subr.mxu0 0.0
        %1167 = vmatpush1.msra.mxu0 %v1150
        %1168 = vmatprep.subr.mxu0 0.0
        %1169 = vmatpush1.msra.mxu0 %v1151
        %1170 = vmatprep.subr.mxu0 0.0
        %1171 = vmatpush1.msra.mxu0 0.0
        %1172 = vmatprep.subr.mxu0 0.0
        %1173 = vmatpush1.msra.mxu0 0.0
        %1174 = vmatprep.subr.mxu0 0.0
        %1175 = vmatpush1.msra.mxu0 0.0
        %1176 = vmatprep.subr.mxu0 0.0
        %1177 = vmatpush1.msra.mxu0 0.0
        %1178 = vmatprep.subr.mxu0 0.0
        %1179 = vmatpush1.msra.mxu0 0.0
        %1180 = vmatprep.subr.mxu0 0.0
        %1181 = vmatpush1.msra.mxu0 0.0
        %1182 = vmatprep.subr.mxu0 0.0
        %1183 = vmatpush1.msra.mxu0 0.0
        %1184 = vmatprep.subr.mxu0 0.0
        %1185 = vmatpush1.msra.mxu0 0.0
        %1186 = vmatprep.subr.mxu0 0.0
        %1187 = vmatpush1.msra.mxu0 0.0
        %1188 = vmatprep.subr.mxu0 0.0
        %1189 = vmatpush1.msra.mxu0 0.0
        %1190 = vmatprep.subr.mxu0 0.0
        %1191 = vmatpush1.msra.mxu0 0.0
        %1192 = vmatprep.subr.mxu0 0.0
        %1193 = vmatpush1.msra.mxu0 0.0
        %1194 = vmatprep.subr.mxu0 0.0
        %1195 = vmatpush1.msra.mxu0 0.0
        %1196 = vmatprep.subr.mxu0 0.0
        %1197 = vmatpush1.msra.mxu0 0.0
        %1198 = vmatprep.subr.mxu0 0.0
        %1199 = vmatpush1.msra.mxu0 0.0
        %1200 = vmatprep.subr.mxu0 0.0
        %1201 = vmatpush1.msra.mxu0 0.0
        %1202 = vmatprep.subr.mxu0 0.0
        %1203 = vmatpush1.msra.mxu0 0.0
        %1204 = vmatprep.subr.mxu0 0.0
        %1205 = vmatpush1.msra.mxu0 0.0
        %1206 = vmatprep.subr.mxu0 0.0
        %1207 = vmatpush1.msra.mxu0 0.0
        %1208 = vmatprep.subr.mxu0 0.0
        %1209 = vmatpush1.msra.mxu0 0.0
        %1210 = vmatprep.subr.mxu0 0.0
        %1211 = vmatpush1.msra.mxu0 0.0
        %1212 = vmatprep.subr.mxu0 0.0
        %1213 = vmatpush1.msra.mxu0 0.0
        %1214 = vmatprep.subr.mxu0 0.0
        %1215 = vmatpush1.msra.mxu0 0.0
        %1216 = vmatprep.subr.mxu0 0.0
        %1217 = vmatpush1.msra.mxu0 0.0
        %1218 = vmatprep.subr.mxu0 0.0
        %1219 = vmatpush1.msra.mxu0 0.0
        %1220 = vmatprep.subr.mxu0 0.0
        %1221 = vmatpush1.msra.mxu0 0.0
        %1222 = vmatprep.subr.mxu0 0.0
        %1223 = vmatpush1.msra.mxu0 0.0
        %1224 = vmatprep.subr.mxu0 0.0
        %1225 = vmatpush1.msra.mxu0 0.0
        %1226 = vmatprep.mubr.f32.mxu0 0.0
        %1227 = vmatmul.mubr.f32.gmra.mrb[0].mxu0 %v1160
        %v1228 = vpop.f32.mrb[0].mxu0
        %v1229 = vadd.f32 %v1157, %v1228
        %v1230 = vpop.f32.mrb[0].mxu0
        %1231 = vdwg.mxu0
        %v1232 = vadd.f32 %v678, %v1229
        %v1233 = vld [vmem:[%s10] sm:$0x1]
        %v1234 = vld [vmem:[%s11] sm:$0x1]
        %v1235 = vsel %vm695, %v1232, 0.0
        %1236 = vadd.xlane.f32.xlu0 %v1235
        %v1237 = vpop.xlane.xlu0 %1236
        %v1238 = vmul.f32 %v1237, %v699
        %v1239 = vsub.f32 %v1232, %v1238
        %v1240 = vmul.f32 %v1239, %v1239
        %v1241 = vsel %vm695, %v1240, 0.0
        %1242 = vadd.xlane.f32.xlu0 %v1241
        %v1243 = vpop.xlane.xlu0 %1242
        %v1244 = vmul.f32 %v1243, %v699
        %v1245 = vadd.f32 %v1244, 1e-05
        %v1246 = vrsqrt.pop %v1245
        %v1247 = vmul.f32 %v1239, %v1246
        %v1249 = vlaneseq
        %v1250 = vshrl.u32 %v1249, 7
        %v1251 = vsub.s32 0, %v1250
        %v1252 = vrot.slane %v1233, %v1251
        %v1254 = vmul.f32 %v1247, %v1252
        %v1256 = vlaneseq
        %v1257 = vshrl.u32 %v1256, 7
        %v1258 = vsub.s32 0, %v1257
        %v1259 = vrot.slane %v1234, %v1258
        %v1261 = vadd.f32 %v1254, %v1259
        %v1262 = vld [vmem:[%s12] sm:$0xff]
        %v1263 = vld [vmem:[%s12 + $0x8] sm:$0xff]
        %v1264 = vld [vmem:[%s12 + $0x10] sm:$0xff]
        %v1265 = vld [vmem:[%s12 + $0x18] sm:$0xff]
        %v1266 = vld [vmem:[%s13] sm:$0x1]
        %v1268 = vlaneseq
        %v1269 = vshrl.u32 %v1268, 7
        %v1270 = vsub.s32 0, %v1269
        %v1271 = vrot.slane %v1266, %v1270
        %v1274 = vsel %vm695, %v1261, 0
        %1276 = vmatprep.subr.mxu0 0.0
        %1277 = vmatpush1.msra.mxu0 %v1262
        %1278 = vmatprep.subr.mxu0 0.0
        %1279 = vmatpush1.msra.mxu0 %v1263
        %1280 = vmatprep.subr.mxu0 0.0
        %1281 = vmatpush1.msra.mxu0 %v1264
        %1282 = vmatprep.subr.mxu0 0.0
        %1283 = vmatpush1.msra.mxu0 %v1265
        %1284 = vmatprep.subr.mxu0 0.0
        %1285 = vmatpush1.msra.mxu0 0.0
        %1286 = vmatprep.subr.mxu0 0.0
        %1287 = vmatpush1.msra.mxu0 0.0
        %1288 = vmatprep.subr.mxu0 0.0
        %1289 = vmatpush1.msra.mxu0 0.0
        %1290 = vmatprep.subr.mxu0 0.0
        %1291 = vmatpush1.msra.mxu0 0.0
        %1292 = vmatprep.subr.mxu0 0.0
        %1293 = vmatpush1.msra.mxu0 0.0
        %1294 = vmatprep.subr.mxu0 0.0
        %1295 = vmatpush1.msra.mxu0 0.0
        %1296 = vmatprep.subr.mxu0 0.0
        %1297 = vmatpush1.msra.mxu0 0.0
        %1298 = vmatprep.subr.mxu0 0.0
        %1299 = vmatpush1.msra.mxu0 0.0
        %1300 = vmatprep.subr.mxu0 0.0
        %1301 = vmatpush1.msra.mxu0 0.0
        %1302 = vmatprep.subr.mxu0 0.0
        %1303 = vmatpush1.msra.mxu0 0.0
        %1304 = vmatprep.subr.mxu0 0.0
        %1305 = vmatpush1.msra.mxu0 0.0
        %1306 = vmatprep.subr.mxu0 0.0
        %1307 = vmatpush1.msra.mxu0 0.0
        %1308 = vmatprep.subr.mxu0 0.0
        %1309 = vmatpush1.msra.mxu0 0.0
        %1310 = vmatprep.subr.mxu0 0.0
        %1311 = vmatpush1.msra.mxu0 0.0
        %1312 = vmatprep.subr.mxu0 0.0
        %1313 = vmatpush1.msra.mxu0 0.0
        %1314 = vmatprep.subr.mxu0 0.0
        %1315 = vmatpush1.msra.mxu0 0.0
        %1316 = vmatprep.subr.mxu0 0.0
        %1317 = vmatpush1.msra.mxu0 0.0
        %1318 = vmatprep.subr.mxu0 0.0
        %1319 = vmatpush1.msra.mxu0 0.0
        %1320 = vmatprep.subr.mxu0 0.0
        %1321 = vmatpush1.msra.mxu0 0.0
        %1322 = vmatprep.subr.mxu0 0.0
        %1323 = vmatpush1.msra.mxu0 0.0
        %1324 = vmatprep.subr.mxu0 0.0
        %1325 = vmatpush1.msra.mxu0 0.0
        %1326 = vmatprep.subr.mxu0 0.0
        %1327 = vmatpush1.msra.mxu0 0.0
        %1328 = vmatprep.subr.mxu0 0.0
        %1329 = vmatpush1.msra.mxu0 0.0
        %1330 = vmatprep.subr.mxu0 0.0
        %1331 = vmatpush1.msra.mxu0 0.0
        %1332 = vmatprep.subr.mxu0 0.0
        %1333 = vmatpush1.msra.mxu0 0.0
        %1334 = vmatprep.subr.mxu0 0.0
        %1335 = vmatpush1.msra.mxu0 0.0
        %1336 = vmatprep.subr.mxu0 0.0
        %1337 = vmatpush1.msra.mxu0 0.0
        %1338 = vmatprep.subr.mxu0 0.0
        %1339 = vmatpush1.msra.mxu0 0.0
        %1340 = vmatprep.mubr.f32.mxu0 0.0
        %1341 = vmatmul.mubr.f32.gmra.mrb[0].mxu0 %v1274
        %v1342 = vpop.f32.mrb[0].mxu0
        %v1343 = vadd.f32 %v1271, %v1342
        %v1344 = vpop.f32.mrb[0].mxu0
        %1345 = vdwg.mxu0
        %v1346 = vmul.f32 %v1343, 0.5
        %v1347 = vmul.f32 %v1343, 0.044715
        %v1348 = vmul.f32 %v1347, %v1343
        %v1349 = vmul.f32 %v1348, %v1343
        %v1350 = vadd.f32 %v1343, %v1349
        %v1351 = vmul.f32 %v1350, 0.7978846
        %v1352 = vtanh.pop %v1351
        %v1353 = vadd.f32 %v1352, 1.0
        %v1354 = vmul.f32 %v1346, %v1353
        %v1355 = vld [vmem:[%s14] sm:$0xff]
        %v1356 = vld [vmem:[%s14 + $0x8] sm:$0xff]
        %v1357 = vld [vmem:[%s14 + $0x10] sm:$0xff]
        %v1358 = vld [vmem:[%s14 + $0x18] sm:$0xff]
        %v1359 = vld [vmem:[%s14 + $0x20] sm:$0xff]
        %v1360 = vld [vmem:[%s14 + $0x28] sm:$0xff]
        %v1361 = vld [vmem:[%s14 + $0x30] sm:$0xff]
        %v1362 = vld [vmem:[%s14 + $0x38] sm:$0xff]
        %v1363 = vld [vmem:[%s14 + $0x40] sm:$0xff]
        %v1364 = vld [vmem:[%s14 + $0x48] sm:$0xff]
        %v1365 = vld [vmem:[%s14 + $0x50] sm:$0xff]
        %v1366 = vld [vmem:[%s14 + $0x58] sm:$0xff]
        %v1367 = vld [vmem:[%s14 + $0x60] sm:$0xff]
        %v1368 = vld [vmem:[%s14 + $0x68] sm:$0xff]
        %v1369 = vld [vmem:[%s14 + $0x70] sm:$0xff]
        %v1370 = vld [vmem:[%s14 + $0x78] sm:$0xff]
        %v1371 = vld [vmem:[%s15] sm:$0x1]
        %v1373 = vlaneseq
        %v1374 = vshrl.u32 %v1373, 7
        %v1375 = vsub.s32 0, %v1374
        %v1376 = vrot.slane %v1371, %v1375
        %1378 = vmatprep.subr.mxu0 0.0
        %1379 = vmatpush1.msra.mxu0 %v1355
        %1380 = vmatprep.subr.mxu0 0.0
        %1381 = vmatpush1.msra.mxu0 %v1356
        %1382 = vmatprep.subr.mxu0 0.0
        %1383 = vmatpush1.msra.mxu0 %v1357
        %1384 = vmatprep.subr.mxu0 0.0
        %1385 = vmatpush1.msra.mxu0 %v1358
        %1386 = vmatprep.subr.mxu0 0.0
        %1387 = vmatpush1.msra.mxu0 %v1359
        %1388 = vmatprep.subr.mxu0 0.0
        %1389 = vmatpush1.msra.mxu0 %v1360
        %1390 = vmatprep.subr.mxu0 0.0
        %1391 = vmatpush1.msra.mxu0 %v1361
        %1392 = vmatprep.subr.mxu0 0.0
        %1393 = vmatpush1.msra.mxu0 %v1362
        %1394 = vmatprep.subr.mxu0 0.0
        %1395 = vmatpush1.msra.mxu0 %v1363
        %1396 = vmatprep.subr.mxu0 0.0
        %1397 = vmatpush1.msra.mxu0 %v1364
        %1398 = vmatprep.subr.mxu0 0.0
        %1399 = vmatpush1.msra.mxu0 %v1365
        %1400 = vmatprep.subr.mxu0 0.0
        %1401 = vmatpush1.msra.mxu0 %v1366
        %1402 = vmatprep.subr.mxu0 0.0
        %1403 = vmatpush1.msra.mxu0 %v1367
        %1404 = vmatprep.subr.mxu0 0.0
        %1405 = vmatpush1.msra.mxu0 %v1368
        %1406 = vmatprep.subr.mxu0 0.0
        %1407 = vmatpush1.msra.mxu0 %v1369
        %1408 = vmatprep.subr.mxu0 0.0
        %1409 = vmatpush1.msra.mxu0 %v1370
        %1410 = vmatprep.subr.mxu0 0.0
        %1411 = vmatpush1.msra.mxu0 0.0
        %1412 = vmatprep.subr.mxu0 0.0
        %1413 = vmatpush1.msra.mxu0 0.0
        %1414 = vmatprep.subr.mxu0 0.0
        %1415 = vmatpush1.msra.mxu0 0.0
        %1416 = vmatprep.subr.mxu0 0.0
        %1417 = vmatpush1.msra.mxu0 0.0
        %1418 = vmatprep.subr.mxu0 0.0
        %1419 = vmatpush1.msra.mxu0 0.0
        %1420 = vmatprep.subr.mxu0 0.0
        %1421 = vmatpush1.msra.mxu0 0.0
        %1422 = vmatprep.subr.mxu0 0.0
        %1423 = vmatpush1.msra.mxu0 0.0
        %1424 = vmatprep.subr.mxu0 0.0
        %1425 = vmatpush1.msra.mxu0 0.0
        %1426 = vmatprep.subr.mxu0 0.0
        %1427 = vmatpush1.msra.mxu0 0.0
        %1428 = vmatprep.subr.mxu0 0.0
        %1429 = vmatpush1.msra.mxu0 0.0
        %1430 = vmatprep.subr.mxu0 0.0
        %1431 = vmatpush1.msra.mxu0 0.0
        %1432 = vmatprep.subr.mxu0 0.0
        %1433 = vmatpush1.msra.mxu0 0.0
        %1434 = vmatprep.subr.mxu0 0.0
        %1435 = vmatpush1.msra.mxu0 0.0
        %1436 = vmatprep.subr.mxu0 0.0
        %1437 = vmatpush1.msra.mxu0 0.0
        %1438 = vmatprep.subr.mxu0 0.0
        %1439 = vmatpush1.msra.mxu0 0.0
        %1440 = vmatprep.subr.mxu0 0.0
        %1441 = vmatpush1.msra.mxu0 0.0
        %1442 = vmatprep.mubr.f32.mxu0 0.0
        %1443 = vmatmul.mubr.f32.gmra.mrb[0].mxu0 %v1354
        %v1444 = vpop.f32.mrb[0].mxu0
        %v1445 = vadd.f32 %v1376, %v1444
        %v1446 = vpop.f32.mrb[0].mxu0
        %1447 = vdwg.mxu0
        %v1448 = vadd.f32 %v1232, %v1445
        %s1449 = scalar_lea.vmem %s4, 1
        %v1450 = vld [vmem:[%s1449] sm:$0x1]
        %s1451 = scalar_lea.vmem %s5, 1
        %v1452 = vld [vmem:[%s1451] sm:$0x1]
        %v1453 = vsel %vm695, %v1448, 0.0
        %1454 = vadd.xlane.f32.xlu0 %v1453
        %v1455 = vpop.xlane.xlu0 %1454
        %v1456 = vmul.f32 %v1455, %v699
        %v1457 = vsub.f32 %v1448, %v1456
        %v1458 = vmul.f32 %v1457, %v1457
        %v1459 = vsel %vm695, %v1458, 0.0
        %1460 = vadd.xlane.f32.xlu0 %v1459
        %v1461 = vpop.xlane.xlu0 %1460
        %v1462 = vmul.f32 %v1461, %v699
        %v1463 = vadd.f32 %v1462, 1e-05
        %v1464 = vrsqrt.pop %v1463
        %v1465 = vmul.f32 %v1457, %v1464
        %v1467 = vlaneseq
        %v1468 = vshrl.u32 %v1467, 7
        %v1469 = vsub.s32 0, %v1468
        %v1470 = vrot.slane %v1450, %v1469
        %v1472 = vmul.f32 %v1465, %v1470
        %v1474 = vlaneseq
        %v1475 = vshrl.u32 %v1474, 7
        %v1476 = vsub.s32 0, %v1475
        %v1477 = vrot.slane %v1452, %v1476
        %v1479 = vadd.f32 %v1472, %v1477
        %s1480 = scalar_lea.vmem %s6, 32
        %v1481 = vld [vmem:[%s1480] sm:$0xff]
        %v1482 = vld [vmem:[%s1480 + $0x8] sm:$0xff]
        %v1483 = vld [vmem:[%s1480 + $0x10] sm:$0xff]
        %v1484 = vld [vmem:[%s1480 + $0x18] sm:$0xff]
        %s1485 = scalar_lea.vmem %s7, 1
        %v1486 = vld [vmem:[%s1485] sm:$0x1]
        %v1488 = vlaneseq
        %v1489 = vshrl.u32 %v1488, 7
        %v1490 = vsub.s32 0, %v1489
        %v1491 = vrot.slane %v1486, %v1490
        %v1494 = vsel %vm695, %v1479, 0
        %1496 = vmatprep.subr.mxu0 0.0
        %1497 = vmatpush1.msra.mxu0 %v1481
        %1498 = vmatprep.subr.mxu0 0.0
        %1499 = vmatpush1.msra.mxu0 %v1482
        %1500 = vmatprep.subr.mxu0 0.0
        %1501 = vmatpush1.msra.mxu0 %v1483
        %1502 = vmatprep.subr.mxu0 0.0
        %1503 = vmatpush1.msra.mxu0 %v1484
        %1504 = vmatprep.subr.mxu0 0.0
        %1505 = vmatpush1.msra.mxu0 0.0
        %1506 = vmatprep.subr.mxu0 0.0
        %1507 = vmatpush1.msra.mxu0 0.0
        %1508 = vmatprep.subr.mxu0 0.0
        %1509 = vmatpush1.msra.mxu0 0.0
        %1510 = vmatprep.subr.mxu0 0.0
        %1511 = vmatpush1.msra.mxu0 0.0
        %1512 = vmatprep.subr.mxu0 0.0
        %1513 = vmatpush1.msra.mxu0 0.0
        %1514 = vmatprep.subr.mxu0 0.0
        %1515 = vmatpush1.msra.mxu0 0.0
        %1516 = vmatprep.subr.mxu0 0.0
        %1517 = vmatpush1.msra.mxu0 0.0
        %1518 = vmatprep.subr.mxu0 0.0
        %1519 = vmatpush1.msra.mxu0 0.0
        %1520 = vmatprep.subr.mxu0 0.0
        %1521 = vmatpush1.msra.mxu0 0.0
        %1522 = vmatprep.subr.mxu0 0.0
        %1523 = vmatpush1.msra.mxu0 0.0
        %1524 = vmatprep.subr.mxu0 0.0
        %1525 = vmatpush1.msra.mxu0 0.0
        %1526 = vmatprep.subr.mxu0 0.0
        %1527 = vmatpush1.msra.mxu0 0.0
        %1528 = vmatprep.subr.mxu0 0.0
        %1529 = vmatpush1.msra.mxu0 0.0
        %1530 = vmatprep.subr.mxu0 0.0
        %1531 = vmatpush1.msra.mxu0 0.0
        %1532 = vmatprep.subr.mxu0 0.0
        %1533 = vmatpush1.msra.mxu0 0.0
        %1534 = vmatprep.subr.mxu0 0.0
        %1535 = vmatpush1.msra.mxu0 0.0
        %1536 = vmatprep.subr.mxu0 0.0
        %1537 = vmatpush1.msra.mxu0 0.0
        %1538 = vmatprep.subr.mxu0 0.0
        %1539 = vmatpush1.msra.mxu0 0.0
        %1540 = vmatprep.subr.mxu0 0.0
        %1541 = vmatpush1.msra.mxu0 0.0
        %1542 = vmatprep.subr.mxu0 0.0
        %1543 = vmatpush1.msra.mxu0 0.0
        %1544 = vmatprep.subr.mxu0 0.0
        %1545 = vmatpush1.msra.mxu0 0.0
        %1546 = vmatprep.subr.mxu0 0.0
        %1547 = vmatpush1.msra.mxu0 0.0
        %1548 = vmatprep.subr.mxu0 0.0
        %1549 = vmatpush1.msra.mxu0 0.0
        %1550 = vmatprep.subr.mxu0 0.0
        %1551 = vmatpush1.msra.mxu0 0.0
        %1552 = vmatprep.subr.mxu0 0.0
        %1553 = vmatpush1.msra.mxu0 0.0
        %1554 = vmatprep.subr.mxu0 0.0
        %1555 = vmatpush1.msra.mxu0 0.0
        %1556 = vmatprep.subr.mxu0 0.0
        %1557 = vmatpush1.msra.mxu0 0.0
        %1558 = vmatprep.subr.mxu0 0.0
        %1559 = vmatpush1.msra.mxu0 0.0
        %1560 = vmatprep.mubr.f32.mxu0 0.0
        %1561 = vmatmul.mubr.f32.gmra.mrb[0].mxu0 %v1494
        %v1562 = vpop.f32.mrb[0].mxu0
        %v1563 = vadd.f32 %v1491, %v1562
        %v1564 = vpop.f32.mrb[0].mxu0
        %1565 = vdwg.mxu0
        %v1566 = vmul.f32 %v1563, 0.25
        %1568 = vrot.lane.b32.xlu0 %v1563, 96
        %v1569 = vpop.permute.xlu0 %1568
        %v1571 = vsel %vm812, %v1566, 0
        %v1573 = vsel %vm812, %v1569, 0
        %1575 = vmatprep.subr.mxu0 0.0
        %1576 = vmatpush1.xpose.msra.mxu0 %v1573
        %1577 = vmatprep.subr.mxu0 0.0
        %1578 = vmatpush1.xpose.msra.mxu0 0.0
        %1579 = vmatprep.subr.mxu0 0.0
        %1580 = vmatpush1.xpose.msra.mxu0 0.0
        %1581 = vmatprep.subr.mxu0 0.0
        %1582 = vmatpush1.xpose.msra.mxu0 0.0
        %1583 = vmatprep.subr.mxu0 0.0
        %1584 = vmatpush1.xpose.msra.mxu0 0.0
        %1585 = vmatprep.subr.mxu0 0.0
        %1586 = vmatpush1.xpose.msra.mxu0 0.0
        %1587 = vmatprep.subr.mxu0 0.0
        %1588 = vmatpush1.xpose.msra.mxu0 0.0
        %1589 = vmatprep.subr.mxu0 0.0
        %1590 = vmatpush1.xpose.msra.mxu0 0.0
        %1591 = vmatprep.subr.mxu0 0.0
        %1592 = vmatpush1.xpose.msra.mxu0 0.0
        %1593 = vmatprep.subr.mxu0 0.0
        %1594 = vmatpush1.xpose.msra.mxu0 0.0
        %1595 = vmatprep.subr.mxu0 0.0
        %1596 = vmatpush1.xpose.msra.mxu0 0.0
        %1597 = vmatprep.subr.mxu0 0.0
        %1598 = vmatpush1.xpose.msra.mxu0 0.0
        %1599 = vmatprep.subr.mxu0 0.0
        %1600 = vmatpush1.xpose.msra.mxu0 0.0
        %1601 = vmatprep.subr.mxu0 0.0
        %1602 = vmatpush1.xpose.msra.mxu0 0.0
        %1603 = vmatprep.subr.mxu0 0.0
        %1604 = vmatpush1.xpose.msra.mxu0 0.0
        %1605 = vmatprep.subr.mxu0 0.0
        %1606 = vmatpush1.xpose.msra.mxu0 0.0
        %1607 = vmatprep.subr.mxu0 0.0
        %1608 = vmatpush1.xpose.msra.mxu0 0.0
        %1609 = vmatprep.subr.mxu0 0.0
        %1610 = vmatpush1.xpose.msra.mxu0 0.0
        %1611 = vmatprep.subr.mxu0 0.0
        %1612 = vmatpush1.xpose.msra.mxu0 0.0
        %1613 = vmatprep.subr.mxu0 0.0
        %1614 = vmatpush1.xpose.msra.mxu0 0.0
        %1615 = vmatprep.subr.mxu0 0.0
        %1616 = vmatpush1.xpose.msra.mxu0 0.0
        %1617 = vmatprep.subr.mxu0 0.0
        %1618 = vmatpush1.xpose.msra.mxu0 0.0
        %1619 = vmatprep.subr.mxu0 0.0
        %1620 = vmatpush1.xpose.msra.mxu0 0.0
        %1621 = vmatprep.subr.mxu0 0.0
        %1622 = vmatpush1.xpose.msra.mxu0 0.0
        %1623 = vmatprep.subr.mxu0 0.0
        %1624 = vmatpush1.xpose.msra.mxu0 0.0
        %1625 = vmatprep.subr.mxu0 0.0
        %1626 = vmatpush1.xpose.msra.mxu0 0.0
        %1627 = vmatprep.subr.mxu0 0.0
        %1628 = vmatpush1.xpose.msra.mxu0 0.0
        %1629 = vmatprep.subr.mxu0 0.0
        %1630 = vmatpush1.xpose.msra.mxu0 0.0
        %1631 = vmatprep.subr.mxu0 0.0
        %1632 = vmatpush1.xpose.msra.mxu0 0.0
        %1633 = vmatprep.subr.mxu0 0.0
        %1634 = vmatpush1.xpose.msra.mxu0 0.0
        %1635 = vmatprep.subr.mxu0 0.0
        %1636 = vmatpush1.xpose.msra.mxu0 0.0
        %1637 = vmatprep.subr.mxu0 0.0
        %1638 = vmatpush1.xpose.msra.mxu0 0.0
        %1639 = vmatprep.mubr.f32.mxu0 0.0
        %1640 = vmatmul.mubr.f32.gmra.mrb[0].mxu0 %v1571
        %v1641 = vpop.f32.mrb[0].mxu0
        %v1642 = vadd.f32 0.0, %v1641
        %v1643 = vpop.f32.mrb[0].mxu0
        %1644 = vdwg.mxu0
        %v1645 = vsel %vm692, %v1642, -1e+30
        %v1646 = vsel %vm889, %v1645, -inf
        %1647 = vmax.xlane.f32.xlu0 %v1646
        %v1648 = vpop.xlane.xlu0 %1647
        %v1649 = vsub.f32 %v1645, %v1648
        %v1650 = vmul.f32 %v1649, 1.442695
        %v1651 = vpow.pop %v1650
        %v1652 = vsel %vm889, %v1651, 0.0
        %1653 = vadd.xlane.f32.xlu0 %v1652
        %v1654 = vpop.xlane.xlu0 %1653
        %v1655 = vrcp.pop %v1654
        %v1656 = vmul.f32 %v1651, %v1655
        %1657 = vrot.lane.b32.xlu0 %v1563, 64
        %v1658 = vpop.permute.xlu0 %1657
        %v1661 = vsel %vm889, %v1656, 0
        %1663 = vmatprep.subr.mxu0 0.0
        %1664 = vmatpush1.msra.mxu0 %v1658
        %1665 = vmatprep.subr.mxu0 0.0
        %1666 = vmatpush1.msra.mxu0 0.0
        %1667 = vmatprep.subr.mxu0 0.0
        %1668 = vmatpush1.msra.mxu0 0.0
        %1669 = vmatprep.subr.mxu0 0.0
        %1670 = vmatpush1.msra.mxu0 0.0
        %1671 = vmatprep.subr.mxu0 0.0
        %1672 = vmatpush1.msra.mxu0 0.0
        %1673 = vmatprep.subr.mxu0 0.0
        %1674 = vmatpush1.msra.mxu0 0.0
        %1675 = vmatprep.subr.mxu0 0.0
        %1676 = vmatpush1.msra.mxu0 0.0
        %1677 = vmatprep.subr.mxu0 0.0
        %1678 = vmatpush1.msra.mxu0 0.0
        %1679 = vmatprep.subr.mxu0 0.0
        %1680 = vmatpush1.msra.mxu0 0.0
        %1681 = vmatprep.subr.mxu0 0.0
        %1682 = vmatpush1.msra.mxu0 0.0
        %1683 = vmatprep.subr.mxu0 0.0
        %1684 = vmatpush1.msra.mxu0 0.0
        %1685 = vmatprep.subr.mxu0 0.0
        %1686 = vmatpush1.msra.mxu0 0.0
        %1687 = vmatprep.subr.mxu0 0.0
        %1688 = vmatpush1.msra.mxu0 0.0
        %1689 = vmatprep.subr.mxu0 0.0
        %1690 = vmatpush1.msra.mxu0 0.0
        %1691 = vmatprep.subr.mxu0 0.0
        %1692 = vmatpush1.msra.mxu0 0.0
        %1693 = vmatprep.subr.mxu0 0.0
        %1694 = vmatpush1.msra.mxu0 0.0
        %1695 = vmatprep.subr.mxu0 0.0
        %1696 = vmatpush1.msra.mxu0 0.0
        %1697 = vmatprep.subr.mxu0 0.0
        %1698 = vmatpush1.msra.mxu0 0.0
        %1699 = vmatprep.subr.mxu0 0.0
        %1700 = vmatpush1.msra.mxu0 0.0
        %1701 = vmatprep.subr.mxu0 0.0
        %1702 = vmatpush1.msra.mxu0 0.0
        %1703 = vmatprep.subr.mxu0 0.0
        %1704 = vmatpush1.msra.mxu0 0.0
        %1705 = vmatprep.subr.mxu0 0.0
        %1706 = vmatpush1.msra.mxu0 0.0
        %1707 = vmatprep.subr.mxu0 0.0
        %1708 = vmatpush1.msra.mxu0 0.0
        %1709 = vmatprep.subr.mxu0 0.0
        %1710 = vmatpush1.msra.mxu0 0.0
        %1711 = vmatprep.subr.mxu0 0.0
        %1712 = vmatpush1.msra.mxu0 0.0
        %1713 = vmatprep.subr.mxu0 0.0
        %1714 = vmatpush1.msra.mxu0 0.0
        %1715 = vmatprep.subr.mxu0 0.0
        %1716 = vmatpush1.msra.mxu0 0.0
        %1717 = vmatprep.subr.mxu0 0.0
        %1718 = vmatpush1.msra.mxu0 0.0
        %1719 = vmatprep.subr.mxu0 0.0
        %1720 = vmatpush1.msra.mxu0 0.0
        %1721 = vmatprep.subr.mxu0 0.0
        %1722 = vmatpush1.msra.mxu0 0.0
        %1723 = vmatprep.subr.mxu0 0.0
        %1724 = vmatpush1.msra.mxu0 0.0
        %1725 = vmatprep.subr.mxu0 0.0
        %1726 = vmatpush1.msra.mxu0 0.0
        %1727 = vmatprep.mubr.f32.mxu0 0.0
        %1728 = vmatmul.mubr.f32.gmra.mrb[0].mxu0 %v1661
        %v1729 = vpop.f32.mrb[0].mxu0
        %v1730 = vadd.f32 0.0, %v1729
        %v1731 = vpop.f32.mrb[0].mxu0
        %1732 = vdwg.mxu0
        %1733 = vrot.lane.b32.xlu0 %v1566, 112
        %v1734 = vpop.permute.xlu0 %1733
        %1735 = vrot.lane.b32.xlu0 %v1563, 80
        %v1736 = vpop.permute.xlu0 %1735
        %v1737 = vsel %vm812, %v1734, 0
        %v1739 = vsel %vm812, %v1736, 0
        %1741 = vmatprep.subr.mxu0 0.0
        %1742 = vmatpush1.xpose.msra.mxu0 %v1739
        %1743 = vmatprep.subr.mxu0 0.0
        %1744 = vmatpush1.xpose.msra.mxu0 0.0
        %1745 = vmatprep.subr.mxu0 0.0
        %1746 = vmatpush1.xpose.msra.mxu0 0.0
        %1747 = vmatprep.subr.mxu0 0.0
        %1748 = vmatpush1.xpose.msra.mxu0 0.0
        %1749 = vmatprep.subr.mxu0 0.0
        %1750 = vmatpush1.xpose.msra.mxu0 0.0
        %1751 = vmatprep.subr.mxu0 0.0
        %1752 = vmatpush1.xpose.msra.mxu0 0.0
        %1753 = vmatprep.subr.mxu0 0.0
        %1754 = vmatpush1.xpose.msra.mxu0 0.0
        %1755 = vmatprep.subr.mxu0 0.0
        %1756 = vmatpush1.xpose.msra.mxu0 0.0
        %1757 = vmatprep.subr.mxu0 0.0
        %1758 = vmatpush1.xpose.msra.mxu0 0.0
        %1759 = vmatprep.subr.mxu0 0.0
        %1760 = vmatpush1.xpose.msra.mxu0 0.0
        %1761 = vmatprep.subr.mxu0 0.0
        %1762 = vmatpush1.xpose.msra.mxu0 0.0
        %1763 = vmatprep.subr.mxu0 0.0
        %1764 = vmatpush1.xpose.msra.mxu0 0.0
        %1765 = vmatprep.subr.mxu0 0.0
        %1766 = vmatpush1.xpose.msra.mxu0 0.0
        %1767 = vmatprep.subr.mxu0 0.0
        %1768 = vmatpush1.xpose.msra.mxu0 0.0
        %1769 = vmatprep.subr.mxu0 0.0
        %1770 = vmatpush1.xpose.msra.mxu0 0.0
        %1771 = vmatprep.subr.mxu0 0.0
        %1772 = vmatpush1.xpose.msra.mxu0 0.0
        %1773 = vmatprep.subr.mxu0 0.0
        %1774 = vmatpush1.xpose.msra.mxu0 0.0
        %1775 = vmatprep.subr.mxu0 0.0
        %1776 = vmatpush1.xpose.msra.mxu0 0.0
        %1777 = vmatprep.subr.mxu0 0.0
        %1778 = vmatpush1.xpose.msra.mxu0 0.0
        %1779 = vmatprep.subr.mxu0 0.0
        %1780 = vmatpush1.xpose.msra.mxu0 0.0
        %1781 = vmatprep.subr.mxu0 0.0
        %1782 = vmatpush1.xpose.msra.mxu0 0.0
        %1783 = vmatprep.subr.mxu0 0.0
        %1784 = vmatpush1.xpose.msra.mxu0 0.0
        %1785 = vmatprep.subr.mxu0 0.0
        %1786 = vmatpush1.xpose.msra.mxu0 0.0
        %1787 = vmatprep.subr.mxu0 0.0
        %1788 = vmatpush1.xpose.msra.mxu0 0.0
        %1789 = vmatprep.subr.mxu0 0.0
        %1790 = vmatpush1.xpose.msra.mxu0 0.0
        %1791 = vmatprep.subr.mxu0 0.0
        %1792 = vmatpush1.xpose.msra.mxu0 0.0
        %1793 = vmatprep.subr.mxu0 0.0
        %1794 = vmatpush1.xpose.msra.mxu0 0.0
        %1795 = vmatprep.subr.mxu0 0.0
        %1796 = vmatpush1.xpose.msra.mxu0 0.0
        %1797 = vmatprep.subr.mxu0 0.0
        %1798 = vmatpush1.xpose.msra.mxu0 0.0
        %1799 = vmatprep.subr.mxu0 0.0
        %1800 = vmatpush1.xpose.msra.mxu0 0.0
        %1801 = vmatprep.subr.mxu0 0.0
        %1802 = vmatpush1.xpose.msra.mxu0 0.0
        %1803 = vmatprep.subr.mxu0 0.0
        %1804 = vmatpush1.xpose.msra.mxu0 0.0
        %1805 = vmatprep.mubr.f32.mxu0 0.0
        %1806 = vmatmul.mubr.f32.gmra.mrb[0].mxu0 %v1737
        %v1807 = vpop.f32.mrb[0].mxu0
        %v1808 = vadd.f32 0.0, %v1807
        %v1809 = vpop.f32.mrb[0].mxu0
        %1810 = vdwg.mxu0
        %v1811 = vsel %vm692, %v1808, -1e+30
        %v1812 = vsel %vm889, %v1811, -inf
        %1813 = vmax.xlane.f32.xlu0 %v1812
        %v1814 = vpop.xlane.xlu0 %1813
        %v1815 = vsub.f32 %v1811, %v1814
        %v1816 = vmul.f32 %v1815, 1.442695
        %v1817 = vpow.pop %v1816
        %v1818 = vsel %vm889, %v1817, 0.0
        %1819 = vadd.xlane.f32.xlu0 %v1818
        %v1820 = vpop.xlane.xlu0 %1819
        %v1821 = vrcp.pop %v1820
        %v1822 = vmul.f32 %v1817, %v1821
        %1823 = vrot.lane.b32.xlu0 %v1563, 48
        %v1824 = vpop.permute.xlu0 %1823
        %v1827 = vsel %vm889, %v1822, 0
        %1829 = vmatprep.subr.mxu0 0.0
        %1830 = vmatpush1.msra.mxu0 %v1824
        %1831 = vmatprep.subr.mxu0 0.0
        %1832 = vmatpush1.msra.mxu0 0.0
        %1833 = vmatprep.subr.mxu0 0.0
        %1834 = vmatpush1.msra.mxu0 0.0
        %1835 = vmatprep.subr.mxu0 0.0
        %1836 = vmatpush1.msra.mxu0 0.0
        %1837 = vmatprep.subr.mxu0 0.0
        %1838 = vmatpush1.msra.mxu0 0.0
        %1839 = vmatprep.subr.mxu0 0.0
        %1840 = vmatpush1.msra.mxu0 0.0
        %1841 = vmatprep.subr.mxu0 0.0
        %1842 = vmatpush1.msra.mxu0 0.0
        %1843 = vmatprep.subr.mxu0 0.0
        %1844 = vmatpush1.msra.mxu0 0.0
        %1845 = vmatprep.subr.mxu0 0.0
        %1846 = vmatpush1.msra.mxu0 0.0
        %1847 = vmatprep.subr.mxu0 0.0
        %1848 = vmatpush1.msra.mxu0 0.0
        %1849 = vmatprep.subr.mxu0 0.0
        %1850 = vmatpush1.msra.mxu0 0.0
        %1851 = vmatprep.subr.mxu0 0.0
        %1852 = vmatpush1.msra.mxu0 0.0
        %1853 = vmatprep.subr.mxu0 0.0
        %1854 = vmatpush1.msra.mxu0 0.0
        %1855 = vmatprep.subr.mxu0 0.0
        %1856 = vmatpush1.msra.mxu0 0.0
        %1857 = vmatprep.subr.mxu0 0.0
        %1858 = vmatpush1.msra.mxu0 0.0
        %1859 = vmatprep.subr.mxu0 0.0
        %1860 = vmatpush1.msra.mxu0 0.0
        %1861 = vmatprep.subr.mxu0 0.0
        %1862 = vmatpush1.msra.mxu0 0.0
        %1863 = vmatprep.subr.mxu0 0.0
        %1864 = vmatpush1.msra.mxu0 0.0
        %1865 = vmatprep.subr.mxu0 0.0
        %1866 = vmatpush1.msra.mxu0 0.0
        %1867 = vmatprep.subr.mxu0 0.0
        %1868 = vmatpush1.msra.mxu0 0.0
        %1869 = vmatprep.subr.mxu0 0.0
        %1870 = vmatpush1.msra.mxu0 0.0
        %1871 = vmatprep.subr.mxu0 0.0
        %1872 = vmatpush1.msra.mxu0 0.0
        %1873 = vmatprep.subr.mxu0 0.0
        %1874 = vmatpush1.msra.mxu0 0.0
        %1875 = vmatprep.subr.mxu0 0.0
        %1876 = vmatpush1.msra.mxu0 0.0
        %1877 = vmatprep.subr.mxu0 0.0
        %1878 = vmatpush1.msra.mxu0 0.0
        %1879 = vmatprep.subr.mxu0 0.0
        %1880 = vmatpush1.msra.mxu0 0.0
        %1881 = vmatprep.subr.mxu0 0.0
        %1882 = vmatpush1.msra.mxu0 0.0
        %1883 = vmatprep.subr.mxu0 0.0
        %1884 = vmatpush1.msra.mxu0 0.0
        %1885 = vmatprep.subr.mxu0 0.0
        %1886 = vmatpush1.msra.mxu0 0.0
        %1887 = vmatprep.subr.mxu0 0.0
        %1888 = vmatpush1.msra.mxu0 0.0
        %1889 = vmatprep.subr.mxu0 0.0
        %1890 = vmatpush1.msra.mxu0 0.0
        %1891 = vmatprep.subr.mxu0 0.0
        %1892 = vmatpush1.msra.mxu0 0.0
        %1893 = vmatprep.mubr.f32.mxu0 0.0
        %1894 = vmatmul.mubr.f32.gmra.mrb[0].mxu0 %v1827
        %v1895 = vpop.f32.mrb[0].mxu0
        %v1896 = vadd.f32 0.0, %v1895
        %v1897 = vpop.f32.mrb[0].mxu0
        %1898 = vdwg.mxu0
        %1900 = vrot.lane.b32.xlu0 %v1896, 16
        %v1901 = vpop.permute.xlu0 %1900
        %v1903 = vsel %vm812, %v1730, %v1901
        %s1904 = scalar_lea.vmem %s8, 32
        %v1905 = vld [vmem:[%s1904] sm:$0xff]
        %v1906 = vld [vmem:[%s1904 + $0x8] sm:$0xff]
        %v1907 = vld [vmem:[%s1904 + $0x10] sm:$0xff]
        %v1908 = vld [vmem:[%s1904 + $0x18] sm:$0xff]
        %s1909 = scalar_lea.vmem %s9, 1
        %v1910 = vld [vmem:[%s1909] sm:$0x1]
        %v1912 = vlaneseq
        %v1913 = vshrl.u32 %v1912, 7
        %v1914 = vsub.s32 0, %v1913
        %v1915 = vrot.slane %v1910, %v1914
        %v1918 = vsel %vm695, %v1903, 0
        %1920 = vmatprep.subr.mxu0 0.0
        %1921 = vmatpush1.msra.mxu0 %v1905
        %1922 = vmatprep.subr.mxu0 0.0
        %1923 = vmatpush1.msra.mxu0 %v1906
        %1924 = vmatprep.subr.mxu0 0.0
        %1925 = vmatpush1.msra.mxu0 %v1907
        %1926 = vmatprep.subr.mxu0 0.0
        %1927 = vmatpush1.msra.mxu0 %v1908
        %1928 = vmatprep.subr.mxu0 0.0
        %1929 = vmatpush1.msra.mxu0 0.0
        %1930 = vmatprep.subr.mxu0 0.0
        %1931 = vmatpush1.msra.mxu0 0.0
        %1932 = vmatprep.subr.mxu0 0.0
        %1933 = vmatpush1.msra.mxu0 0.0
        %1934 = vmatprep.subr.mxu0 0.0
        %1935 = vmatpush1.msra.mxu0 0.0
        %1936 = vmatprep.subr.mxu0 0.0
        %1937 = vmatpush1.msra.mxu0 0.0
        %1938 = vmatprep.subr.mxu0 0.0
        %1939 = vmatpush1.msra.mxu0 0.0
        %1940 = vmatprep.subr.mxu0 0.0
        %1941 = vmatpush1.msra.mxu0 0.0
        %1942 = vmatprep.subr.mxu0 0.0
        %1943 = vmatpush1.msra.mxu0 0.0
        %1944 = vmatprep.subr.mxu0 0.0
        %1945 = vmatpush1.msra.mxu0 0.0
        %1946 = vmatprep.subr.mxu0 0.0
        %1947 = vmatpush1.msra.mxu0 0.0
        %1948 = vmatprep.subr.mxu0 0.0
        %1949 = vmatpush1.msra.mxu0 0.0
        %1950 = vmatprep.subr.mxu0 0.0
        %1951 = vmatpush1.msra.mxu0 0.0
        %1952 = vmatprep.subr.mxu0 0.0
        %1953 = vmatpush1.msra.mxu0 0.0
        %1954 = vmatprep.subr.mxu0 0.0
        %1955 = vmatpush1.msra.mxu0 0.0
        %1956 = vmatprep.subr.mxu0 0.0
        %1957 = vmatpush1.msra.mxu0 0.0
        %1958 = vmatprep.subr.mxu0 0.0
        %1959 = vmatpush1.msra.mxu0 0.0
        %1960 = vmatprep.subr.mxu0 0.0
        %1961 = vmatpush1.msra.mxu0 0.0
        %1962 = vmatprep.subr.mxu0 0.0
        %1963 = vmatpush1.msra.mxu0 0.0
        %1964 = vmatprep.subr.mxu0 0.0
        %1965 = vmatpush1.msra.mxu0 0.0
        %1966 = vmatprep.subr.mxu0 0.0
        %1967 = vmatpush1.msra.mxu0 0.0
        %1968 = vmatprep.subr.mxu0 0.0
        %1969 = vmatpush1.msra.mxu0 0.0
        %1970 = vmatprep.subr.mxu0 0.0
        %1971 = vmatpush1.msra.mxu0 0.0
        %1972 = vmatprep.subr.mxu0 0.0
        %1973 = vmatpush1.msra.mxu0 0.0
        %1974 = vmatprep.subr.mxu0 0.0
        %1975 = vmatpush1.msra.mxu0 0.0
        %1976 = vmatprep.subr.mxu0 0.0
        %1977 = vmatpush1.msra.mxu0 0.0
        %1978 = vmatprep.subr.mxu0 0.0
        %1979 = vmatpush1.msra.mxu0 0.0
        %1980 = vmatprep.subr.mxu0 0.0
        %1981 = vmatpush1.msra.mxu0 0.0
        %1982 = vmatprep.subr.mxu0 0.0
        %1983 = vmatpush1.msra.mxu0 0.0
        %1984 = vmatprep.mubr.f32.mxu0 0.0
        %1985 = vmatmul.mubr.f32.gmra.mrb[0].mxu0 %v1918
        %v1986 = vpop.f32.mrb[0].mxu0
        %v1987 = vadd.f32 %v1915, %v1986
        %v1988 = vpop.f32.mrb[0].mxu0
        %1989 = vdwg.mxu0
        %v1990 = vadd.f32 %v1448, %v1987
        %s1991 = scalar_lea.vmem %s10, 1
        %v1992 = vld [vmem:[%s1991] sm:$0x1]
        %s1993 = scalar_lea.vmem %s11, 1
        %v1994 = vld [vmem:[%s1993] sm:$0x1]
        %v1995 = vsel %vm695, %v1990, 0.0
        %1996 = vadd.xlane.f32.xlu0 %v1995
        %v1997 = vpop.xlane.xlu0 %1996
        %v1998 = vmul.f32 %v1997, %v699
        %v1999 = vsub.f32 %v1990, %v1998
        %v2000 = vmul.f32 %v1999, %v1999
        %v2001 = vsel %vm695, %v2000, 0.0
        %2002 = vadd.xlane.f32.xlu0 %v2001
        %v2003 = vpop.xlane.xlu0 %2002
        %v2004 = vmul.f32 %v2003, %v699
        %v2005 = vadd.f32 %v2004, 1e-05
        %v2006 = vrsqrt.pop %v2005
        %v2007 = vmul.f32 %v1999, %v2006
        %v2009 = vlaneseq
        %v2010 = vshrl.u32 %v2009, 7
        %v2011 = vsub.s32 0, %v2010
        %v2012 = vrot.slane %v1992, %v2011
        %v2014 = vmul.f32 %v2007, %v2012
        %v2016 = vlaneseq
        %v2017 = vshrl.u32 %v2016, 7
        %v2018 = vsub.s32 0, %v2017
        %v2019 = vrot.slane %v1994, %v2018
        %v2021 = vadd.f32 %v2014, %v2019
        %s2022 = scalar_lea.vmem %s12, 32
        %v2023 = vld [vmem:[%s2022] sm:$0xff]
        %v2024 = vld [vmem:[%s2022 + $0x8] sm:$0xff]
        %v2025 = vld [vmem:[%s2022 + $0x10] sm:$0xff]
        %v2026 = vld [vmem:[%s2022 + $0x18] sm:$0xff]
        %s2027 = scalar_lea.vmem %s13, 1
        %v2028 = vld [vmem:[%s2027] sm:$0x1]
        %v2030 = vlaneseq
        %v2031 = vshrl.u32 %v2030, 7
        %v2032 = vsub.s32 0, %v2031
        %v2033 = vrot.slane %v2028, %v2032
        %v2036 = vsel %vm695, %v2021, 0
        %2038 = vmatprep.subr.mxu0 0.0
        %2039 = vmatpush1.msra.mxu0 %v2023
        %2040 = vmatprep.subr.mxu0 0.0
        %2041 = vmatpush1.msra.mxu0 %v2024
        %2042 = vmatprep.subr.mxu0 0.0
        %2043 = vmatpush1.msra.mxu0 %v2025
        %2044 = vmatprep.subr.mxu0 0.0
        %2045 = vmatpush1.msra.mxu0 %v2026
        %2046 = vmatprep.subr.mxu0 0.0
        %2047 = vmatpush1.msra.mxu0 0.0
        %2048 = vmatprep.subr.mxu0 0.0
        %2049 = vmatpush1.msra.mxu0 0.0
        %2050 = vmatprep.subr.mxu0 0.0
        %2051 = vmatpush1.msra.mxu0 0.0
        %2052 = vmatprep.subr.mxu0 0.0
        %2053 = vmatpush1.msra.mxu0 0.0
        %2054 = vmatprep.subr.mxu0 0.0
        %2055 = vmatpush1.msra.mxu0 0.0
        %2056 = vmatprep.subr.mxu0 0.0
        %2057 = vmatpush1.msra.mxu0 0.0
        %2058 = vmatprep.subr.mxu0 0.0
        %2059 = vmatpush1.msra.mxu0 0.0
        %2060 = vmatprep.subr.mxu0 0.0
        %2061 = vmatpush1.msra.mxu0 0.0
        %2062 = vmatprep.subr.mxu0 0.0
        %2063 = vmatpush1.msra.mxu0 0.0
        %2064 = vmatprep.subr.mxu0 0.0
        %2065 = vmatpush1.msra.mxu0 0.0
        %2066 = vmatprep.subr.mxu0 0.0
        %2067 = vmatpush1.msra.mxu0 0.0
        %2068 = vmatprep.subr.mxu0 0.0
        %2069 = vmatpush1.msra.mxu0 0.0
        %2070 = vmatprep.subr.mxu0 0.0
        %2071 = vmatpush1.msra.mxu0 0.0
        %2072 = vmatprep.subr.mxu0 0.0
        %2073 = vmatpush1.msra.mxu0 0.0
        %2074 = vmatprep.subr.mxu0 0.0
        %2075 = vmatpush1.msra.mxu0 0.0
        %2076 = vmatprep.subr.mxu0 0.0
        %2077 = vmatpush1.msra.mxu0 0.0
        %2078 = vmatprep.subr.mxu0 0.0
        %2079 = vmatpush1.msra.mxu0 0.0
        %2080 = vmatprep.subr.mxu0 0.0
        %2081 = vmatpush1.msra.mxu0 0.0
        %2082 = vmatprep.subr.mxu0 0.0
        %2083 = vmatpush1.msra.mxu0 0.0
        %2084 = vmatprep.subr.mxu0 0.0
        %2085 = vmatpush1.msra.mxu0 0.0
        %2086 = vmatprep.subr.mxu0 0.0
        %2087 = vmatpush1.msra.mxu0 0.0
        %2088 = vmatprep.subr.mxu0 0.0
        %2089 = vmatpush1.msra.mxu0 0.0
        %2090 = vmatprep.subr.mxu0 0.0
        %2091 = vmatpush1.msra.mxu0 0.0
        %2092 = vmatprep.subr.mxu0 0.0
        %2093 = vmatpush1.msra.mxu0 0.0
        %2094 = vmatprep.subr.mxu0 0.0
        %2095 = vmatpush1.msra.mxu0 0.0
        %2096 = vmatprep.subr.mxu0 0.0
        %2097 = vmatpush1.msra.mxu0 0.0
        %2098 = vmatprep.subr.mxu0 0.0
        %2099 = vmatpush1.msra.mxu0 0.0
        %2100 = vmatprep.subr.mxu0 0.0
        %2101 = vmatpush1.msra.mxu0 0.0
        %2102 = vmatprep.mubr.f32.mxu0 0.0
        %2103 = vmatmul.mubr.f32.gmra.mrb[0].mxu0 %v2036
        %v2104 = vpop.f32.mrb[0].mxu0
        %v2105 = vadd.f32 %v2033, %v2104
        %v2106 = vpop.f32.mrb[0].mxu0
        %2107 = vdwg.mxu0
        %v2108 = vmul.f32 %v2105, 0.5
        %v2109 = vmul.f32 %v2105, 0.044715
        %v2110 = vmul.f32 %v2109, %v2105
        %v2111 = vmul.f32 %v2110, %v2105
        %v2112 = vadd.f32 %v2105, %v2111
        %v2113 = vmul.f32 %v2112, 0.7978846
        %v2114 = vtanh.pop %v2113
        %v2115 = vadd.f32 %v2114, 1.0
        %v2116 = vmul.f32 %v2108, %v2115
        %s2117 = scalar_lea.vmem %s14, 128
        %v2118 = vld [vmem:[%s2117] sm:$0xff]
        %v2119 = vld [vmem:[%s2117 + $0x8] sm:$0xff]
        %v2120 = vld [vmem:[%s2117 + $0x10] sm:$0xff]
        %v2121 = vld [vmem:[%s2117 + $0x18] sm:$0xff]
        %v2122 = vld [vmem:[%s2117 + $0x20] sm:$0xff]
        %v2123 = vld [vmem:[%s2117 + $0x28] sm:$0xff]
        %v2124 = vld [vmem:[%s2117 + $0x30] sm:$0xff]
        %v2125 = vld [vmem:[%s2117 + $0x38] sm:$0xff]
        %v2126 = vld [vmem:[%s2117 + $0x40] sm:$0xff]
        %v2127 = vld [vmem:[%s2117 + $0x48] sm:$0xff]
        %v2128 = vld [vmem:[%s2117 + $0x50] sm:$0xff]
        %v2129 = vld [vmem:[%s2117 + $0x58] sm:$0xff]
        %v2130 = vld [vmem:[%s2117 + $0x60] sm:$0xff]
        %v2131 = vld [vmem:[%s2117 + $0x68] sm:$0xff]
        %v2132 = vld [vmem:[%s2117 + $0x70] sm:$0xff]
        %v2133 = vld [vmem:[%s2117 + $0x78] sm:$0xff]
        %s2134 = scalar_lea.vmem %s15, 1
        %v2135 = vld [vmem:[%s2134] sm:$0x1]
        %v2137 = vlaneseq
        %v2138 = vshrl.u32 %v2137, 7
        %v2139 = vsub.s32 0, %v2138
        %v2140 = vrot.slane %v2135, %v2139
        %2142 = vmatprep.subr.mxu0 0.0
        %2143 = vmatpush1.msra.mxu0 %v2118
        %2144 = vmatprep.subr.mxu0 0.0
        %2145 = vmatpush1.msra.mxu0 %v2119
        %2146 = vmatprep.subr.mxu0 0.0
        %2147 = vmatpush1.msra.mxu0 %v2120
        %2148 = vmatprep.subr.mxu0 0.0
        %2149 = vmatpush1.msra.mxu0 %v2121
        %2150 = vmatprep.subr.mxu0 0.0
        %2151 = vmatpush1.msra.mxu0 %v2122
        %2152 = vmatprep.subr.mxu0 0.0
        %2153 = vmatpush1.msra.mxu0 %v2123
        %2154 = vmatprep.subr.mxu0 0.0
        %2155 = vmatpush1.msra.mxu0 %v2124
        %2156 = vmatprep.subr.mxu0 0.0
        %2157 = vmatpush1.msra.mxu0 %v2125
        %2158 = vmatprep.subr.mxu0 0.0
        %2159 = vmatpush1.msra.mxu0 %v2126
        %2160 = vmatprep.subr.mxu0 0.0
        %2161 = vmatpush1.msra.mxu0 %v2127
        %2162 = vmatprep.subr.mxu0 0.0
        %2163 = vmatpush1.msra.mxu0 %v2128
        %2164 = vmatprep.subr.mxu0 0.0
        %2165 = vmatpush1.msra.mxu0 %v2129
        %2166 = vmatprep.subr.mxu0 0.0
        %2167 = vmatpush1.msra.mxu0 %v2130
        %2168 = vmatprep.subr.mxu0 0.0
        %2169 = vmatpush1.msra.mxu0 %v2131
        %2170 = vmatprep.subr.mxu0 0.0
        %2171 = vmatpush1.msra.mxu0 %v2132
        %2172 = vmatprep.subr.mxu0 0.0
        %2173 = vmatpush1.msra.mxu0 %v2133
        %2174 = vmatprep.subr.mxu0 0.0
        %2175 = vmatpush1.msra.mxu0 0.0
        %2176 = vmatprep.subr.mxu0 0.0
        %2177 = vmatpush1.msra.mxu0 0.0
        %2178 = vmatprep.subr.mxu0 0.0
        %2179 = vmatpush1.msra.mxu0 0.0
        %2180 = vmatprep.subr.mxu0 0.0
        %2181 = vmatpush1.msra.mxu0 0.0
        %2182 = vmatprep.subr.mxu0 0.0
        %2183 = vmatpush1.msra.mxu0 0.0
        %2184 = vmatprep.subr.mxu0 0.0
        %2185 = vmatpush1.msra.mxu0 0.0
        %2186 = vmatprep.subr.mxu0 0.0
        %2187 = vmatpush1.msra.mxu0 0.0
        %2188 = vmatprep.subr.mxu0 0.0
        %2189 = vmatpush1.msra.mxu0 0.0
        %2190 = vmatprep.subr.mxu0 0.0
        %2191 = vmatpush1.msra.mxu0 0.0
        %2192 = vmatprep.subr.mxu0 0.0
        %2193 = vmatpush1.msra.mxu0 0.0
        %2194 = vmatprep.subr.mxu0 0.0
        %2195 = vmatpush1.msra.mxu0 0.0
        %2196 = vmatprep.subr.mxu0 0.0
        %2197 = vmatpush1.msra.mxu0 0.0
        %2198 = vmatprep.subr.mxu0 0.0
        %2199 = vmatpush1.msra.mxu0 0.0
        %2200 = vmatprep.subr.mxu0 0.0
        %2201 = vmatpush1.msra.mxu0 0.0
        %2202 = vmatprep.subr.mxu0 0.0
        %2203 = vmatpush1.msra.mxu0 0.0
        %2204 = vmatprep.subr.mxu0 0.0
        %2205 = vmatpush1.msra.mxu0 0.0
        %2206 = vmatprep.mubr.f32.mxu0 0.0
        %2207 = vmatmul.mubr.f32.gmra.mrb[0].mxu0 %v2116
        %v2208 = vpop.f32.mrb[0].mxu0
        %v2209 = vadd.f32 %v2140, %v2208
        %v2210 = vpop.f32.mrb[0].mxu0
        %2211 = vdwg.mxu0
        %v2212 = vadd.f32 %v1990, %v2209
        %v2213 = vld [vmem:[%s16] sm:$0x1]
        %v2214 = vld [vmem:[%s17] sm:$0x1]
        %v2215 = vsel %vm695, %v2212, 0.0
        %2216 = vadd.xlane.f32.xlu0 %v2215
        %v2217 = vpop.xlane.xlu0 %2216
        %v2218 = vmul.f32 %v2217, %v699
        %v2219 = vsub.f32 %v2212, %v2218
        %v2220 = vmul.f32 %v2219, %v2219
        %v2221 = vsel %vm695, %v2220, 0.0
        %2222 = vadd.xlane.f32.xlu0 %v2221
        %v2223 = vpop.xlane.xlu0 %2222
        %v2224 = vmul.f32 %v2223, %v699
        %v2225 = vadd.f32 %v2224, 1e-05
        %v2226 = vrsqrt.pop %v2225
        %v2227 = vmul.f32 %v2219, %v2226
        %v2229 = vlaneseq
        %v2230 = vshrl.u32 %v2229, 7
        %v2231 = vsub.s32 0, %v2230
        %v2232 = vrot.slane %v2213, %v2231
        %v2234 = vmul.f32 %v2227, %v2232
        %v2236 = vlaneseq
        %v2237 = vshrl.u32 %v2236, 7
        %v2238 = vsub.s32 0, %v2237
        %v2239 = vrot.slane %v2214, %v2238
        %v2241 = vadd.f32 %v2234, %v2239
        %v2243 = vsel %vm695, %v2241, 0
        %v2246 = vsel %vm695, %v585, 0
        %v2249 = vsel %vm695, %v586, 0
        %v2252 = vsel %vm695, %v587, 0
        %v2255 = vsel %vm695, %v588, 0
        %v2258 = vsel %vm695, %v589, 0
        %v2261 = vsel %vm695, %v590, 0
        %v2264 = vsel %vm695, %v591, 0
        %v2267 = vsel %vm695, %v592, 0
        %v2270 = vsel %vm695, %v593, 0
        %v2273 = vsel %vm695, %v594, 0
        %v2276 = vsel %vm695, %v595, 0
        %v2279 = vsel %vm695, %v596, 0
        %v2282 = vsel %vm695, %v597, 0
        %v2285 = vsel %vm695, %v598, 0
        %v2288 = vsel %vm695, %v599, 0
        %v2291 = vsel %vm695, %v600, 0
        %2293 = vmatprep.subr.mxu0 0.0
        %2294 = vmatpush1.xpose.msra.mxu0 %v2246
        %2295 = vmatprep.subr.mxu0 0.0
        %2296 = vmatpush1.xpose.msra.mxu0 %v2249
        %2297 = vmatprep.subr.mxu0 0.0
        %2298 = vmatpush1.xpose.msra.mxu0 %v2252
        %2299 = vmatprep.subr.mxu0 0.0
        %2300 = vmatpush1.xpose.msra.mxu0 %v2255
        %2301 = vmatprep.subr.mxu0 0.0
        %2302 = vmatpush1.xpose.msra.mxu0 %v2258
        %2303 = vmatprep.subr.mxu0 0.0
        %2304 = vmatpush1.xpose.msra.mxu0 %v2261
        %2305 = vmatprep.subr.mxu0 0.0
        %2306 = vmatpush1.xpose.msra.mxu0 %v2264
        %2307 = vmatprep.subr.mxu0 0.0
        %2308 = vmatpush1.xpose.msra.mxu0 %v2267
        %2309 = vmatprep.subr.mxu0 0.0
        %2310 = vmatpush1.xpose.msra.mxu0 %v2270
        %2311 = vmatprep.subr.mxu0 0.0
        %2312 = vmatpush1.xpose.msra.mxu0 %v2273
        %2313 = vmatprep.subr.mxu0 0.0
        %2314 = vmatpush1.xpose.msra.mxu0 %v2276
        %2315 = vmatprep.subr.mxu0 0.0
        %2316 = vmatpush1.xpose.msra.mxu0 %v2279
        %2317 = vmatprep.subr.mxu0 0.0
        %2318 = vmatpush1.xpose.msra.mxu0 %v2282
        %2319 = vmatprep.subr.mxu0 0.0
        %2320 = vmatpush1.xpose.msra.mxu0 %v2285
        %2321 = vmatprep.subr.mxu0 0.0
        %2322 = vmatpush1.xpose.msra.mxu0 %v2288
        %2323 = vmatprep.subr.mxu0 0.0
        %2324 = vmatpush1.xpose.msra.mxu0 %v2291
        %2325 = vmatprep.subr.mxu0 0.0
        %2326 = vmatpush1.xpose.msra.mxu0 0.0
        %2327 = vmatprep.subr.mxu0 0.0
        %2328 = vmatpush1.xpose.msra.mxu0 0.0
        %2329 = vmatprep.subr.mxu0 0.0
        %2330 = vmatpush1.xpose.msra.mxu0 0.0
        %2331 = vmatprep.subr.mxu0 0.0
        %2332 = vmatpush1.xpose.msra.mxu0 0.0
        %2333 = vmatprep.subr.mxu0 0.0
        %2334 = vmatpush1.xpose.msra.mxu0 0.0
        %2335 = vmatprep.subr.mxu0 0.0
        %2336 = vmatpush1.xpose.msra.mxu0 0.0
        %2337 = vmatprep.subr.mxu0 0.0
        %2338 = vmatpush1.xpose.msra.mxu0 0.0
        %2339 = vmatprep.subr.mxu0 0.0
        %2340 = vmatpush1.xpose.msra.mxu0 0.0
        %2341 = vmatprep.subr.mxu0 0.0
        %2342 = vmatpush1.xpose.msra.mxu0 0.0
        %2343 = vmatprep.subr.mxu0 0.0
        %2344 = vmatpush1.xpose.msra.mxu0 0.0
        %2345 = vmatprep.subr.mxu0 0.0
        %2346 = vmatpush1.xpose.msra.mxu0 0.0
        %2347 = vmatprep.subr.mxu0 0.0
        %2348 = vmatpush1.xpose.msra.mxu0 0.0
        %2349 = vmatprep.subr.mxu0 0.0
        %2350 = vmatpush1.xpose.msra.mxu0 0.0
        %2351 = vmatprep.subr.mxu0 0.0
        %2352 = vmatpush1.xpose.msra.mxu0 0.0
        %2353 = vmatprep.subr.mxu0 0.0
        %2354 = vmatpush1.xpose.msra.mxu0 0.0
        %2355 = vmatprep.subr.mxu0 0.0
        %2356 = vmatpush1.xpose.msra.mxu0 0.0
        %2357 = vmatprep.mubr.f32.mxu0 0.0
        %2358 = vmatmul.mubr.f32.gmra.mrb[0].mxu0 %v2243
        %v2359 = vpop.f32.mrb[0].mxu0
        %v2360 = vadd.f32 0.0, %v2359
        %v2361 = vpop.f32.mrb[0].mxu0
        %2362 = vdwg.mxu0
        %2363 = vst [vmem:[%s577] sm:$0xff] %v2360
        %s2364 = sand.u32 %s428, 1
        %s2365 = scalar_lea.sflag [#allocation3], %s2364
        %s2366 = sand.u32 %s428, 1
        %s2367 = smul.addr %s2366, 8
        %s2368 = scalar_lea.vmem [#allocation2], %s2367
        // Predicated region
        $region93: #{policy_model_forward.1} parent=91 // pred_check
          %p2369 = pneg %p438
        $region94: #{policy_model_forward.1} parent=91 // pred_check_branch
          %2371 = sbr.rel (%p2369) target = $region96
        $region95: #{policy_model_forward.1} parent=91 // pred_region
          %s2373 = ssub.s32 128, 128
          %2374 = vsyncadd %s2365, %s2373
          %s2375 = smul.addr %s32, 128
          %s2376 = scalar_lea.hbm %s18, %s2375
          %s2378 = sshll.u32 %s2368, 4
          %s2379 = int_to_ptr.vmem [resolvable:$true] %s2378
          %2381 = dma.vmem_to_hbm [thread:$0]  %s2379, 128, %s2376, %s2365
        $region96: #{policy_model_forward.1} parent=91 // pred_fallthru
          _
      $region92: #{policy_model_forward.1} parent=5 // pred_fallthru
        _
      %p2382 = scmp.le.s32.totalorder 2, %s27
      // Predicated region
      $region97: #{policy_model_forward.1} parent=5 // pred_check
        %p2383 = pneg %p2382
      $region98: #{policy_model_forward.1} parent=5 // pred_check_branch
        %2385 = sbr.rel (%p2383) target = $region100
      $region99: #{policy_model_forward.1} parent=5 // pred_region
        %s2386 = ssub.s32 %s27, 2
        // Predicated region
        $region101: #{policy_model_forward.1} parent=99 // pred_check
          %p2387 = pneg %p444
        $region102: #{policy_model_forward.1} parent=99 // pred_check_branch
          %2389 = sbr.rel (%p2387) target = $region104
        $region103: #{policy_model_forward.1} parent=99 // pred_region
          %s2390 = sand.u32 %s429, 1
          %s2391 = scalar_lea.sflag [#allocation3], %s2390
          %s2392 = sand.u32 %s429, 1
          %s2393 = smul.addr %s2392, 8
          %s2394 = scalar_lea.vmem [#allocation2], %s2393
          %2395 = dma.done %s2391, 128
        $region104: #{policy_model_forward.1} parent=99 // pred_fallthru
          _
      $region100: #{policy_model_forward.1} parent=5 // pred_fallthru
        _
    $region6: #{policy_model_forward.1} parent=1 // loop_footer
      %s31 = sadd.s32 1, %s27
    $region7: #{policy_model_forward.1} parent=1 // loop_footer_branch
      %26 = sbr.rel target = $region3
    $region8: #{policy_model_forward.1} parent=1 // loop_exit
      _
    %2396 = vsyncpa [#allocation3], 1
    %s2397 = scalar_lea.sflag [#allocation3], 1
    %2398 = vsyncpa %s2397, 1

</llo_original>
